<compile_context>
chip_gen: v7x
topology: tpu7x:2x2x1
jax: 0.10.0
libtpu: 0.0.40
codegen_flags: <defaults>
</compile_context>

<pallas_src>
import jax
import jax.numpy as jnp
from jax.experimental import pallas as pl
from jax.experimental.pallas import tpu as pltpu
import numpy as np

H1 = 64    # lstm1 hidden size
H2 = 1     # lstm2 hidden size
IN1 = 1    # lstm1 input size
GP = 128   # gate pitch: each of the 4 gates gets its own 128-lane column block


def _sigmoid(x):
    # sigmoid(x) == 0.5*tanh(0.5*x) + 0.5 : one EUP op instead of exp+recip.
    return 0.5 * jnp.tanh(0.5 * x) + 0.5


def _sequence_kernel(mask_ref,                        # SMEM (T,) int32 (scalar prefetch)
                     seq_ref,                         # VMEM (T, B, 1)
                     wih1_ref, whh1_ref, b1_ref,      # (1,4GP), (H1,4GP), (1,4GP)
                     wih2_ref, whh2_ref, b2_ref,      # (H1,4GP), (1,4GP), (1,4GP)
                     out_ref,                         # (T, B, 1) full output, 1 DMA
                     h1_out, c1_out, h2_out, c2_out): # final states, written once
    T = seq_ref.shape[0]
    B = seq_ref.shape[1]

    h1 = jnp.zeros((B, H1), jnp.float32)
    c1 = jnp.zeros((B, H1), jnp.float32)
    h2 = jnp.zeros((B, H2), jnp.float32)
    c2 = jnp.zeros((B, H2), jnp.float32)
    x_in = seq_ref[0]                                 # (B, 1)

    # T is static and tiny -> fully unrolled in-kernel loop; all state stays in
    # vregs, no per-step DMA or grid bookkeeping.
    for t in range(T):
        x_t = seq_ref[t]                              # (B, 1)
        x_in = jnp.where(mask_ref[t] != 0, x_t, x_in)

        # ---- LSTM1: 1 -> 64 (PyTorch gate order i,f,g,o; gate k at lanes
        #      [k*GP, k*GP+H1) so every slice is 128-lane aligned) ------------
        g1 = (x_in * wih1_ref[...]                    # K=1 matmul == broadcast mul (VPU)
              + jnp.dot(h1, whh1_ref[...],
                        preferred_element_type=jnp.float32)   # (B,64)@(64,512) on MXU
              + b1_ref[...])                          # (B, 4*GP)
        i1 = _sigmoid(g1[:, 0 * GP:0 * GP + H1])
        f1 = _sigmoid(g1[:, 1 * GP:1 * GP + H1])
        gg1 = jnp.tanh(g1[:, 2 * GP:2 * GP + H1])
        o1 = _sigmoid(g1[:, 3 * GP:3 * GP + H1])
        c1 = f1 * c1 + i1 * gg1
        h1 = o1 * jnp.tanh(c1)

        # ---- LSTM2: 64 -> 1 (gate k at lane k*GP) ---------------------------
        g2 = (jnp.dot(h1, wih2_ref[...],
                      preferred_element_type=jnp.float32)
              + h2 * whh2_ref[...]                    # H2=1 recurrent matmul == broadcast mul
              + b2_ref[...])                          # (B, 4*GP)
        i2 = _sigmoid(g2[:, 0 * GP:0 * GP + H2])
        f2 = _sigmoid(g2[:, 1 * GP:1 * GP + H2])
        gg2 = jnp.tanh(g2[:, 2 * GP:2 * GP + H2])
        o2 = _sigmoid(g2[:, 3 * GP:3 * GP + H2])
        c2 = f2 * c2 + i2 * gg2
        h2 = o2 * jnp.tanh(c2)
        x_in = h2                                     # feed back as next X_in

        out_ref[t] = h2                               # VMEM store; single DMA at end

    # Final states stored exactly once (not per step).
    h1_out[...] = h1
    c1_out[...] = c1
    h2_out[...] = h2
    c2_out[...] = c2


def _pad_gate_cols(w, h, gp=GP):
    """PyTorch-layout weight (4*h, cols) -> (cols, 4*gp) with gate k occupying
    columns [k*gp, k*gp+h).  Works for weights and (reshaped) biases."""
    cols = w.shape[1]
    out = jnp.zeros((cols, 4 * gp), jnp.float32)
    for k in range(4):
        out = out.at[:, k * gp:k * gp + h].set(w[k * h:(k + 1) * h, :].T)
    return out


def prepare_params(params):
    """One-time weight transpose + 128-lane gate padding + bias fusion."""
    b1 = (params["b_ih1"] + params["b_hh1"]).reshape(4 * H1, 1)
    b2 = (params["b_ih2"] + params["b_hh2"]).reshape(4 * H2, 1)
    return {
        "wih1": _pad_gate_cols(params["w_ih1"], H1),   # (1, 4*GP)
        "whh1": _pad_gate_cols(params["w_hh1"], H1),   # (H1, 4*GP)
        "b1":   _pad_gate_cols(b1, H1),                # (1, 4*GP)
        "wih2": _pad_gate_cols(params["w_ih2"], H2),   # (H1, 4*GP)
        "whh2": _pad_gate_cols(params["w_hh2"], H2),   # (1, 4*GP)
        "b2":   _pad_gate_cols(b2, H2),                # (1, 4*GP)
    }


@jax.jit
def sequence_forward(seq, padded, mask):
    """seq: (T, B, 1) f32; mask: (T,) int32 (1 => use seq[t] as input)."""
    T, B, _ = seq.shape
    const = lambda i, m: (0, 0)
    grid_spec = pltpu.PrefetchScalarGridSpec(
        num_scalar_prefetch=1,
        grid=(1,),                                   # single invocation
        in_specs=[
            pl.BlockSpec((T, B, 1), lambda i, m: (0, 0, 0)),  # whole seq (tiny)
            pl.BlockSpec((1, 4 * GP), const),
            pl.BlockSpec((H1, 4 * GP), const),
            pl.BlockSpec((1, 4 * GP), const),
            pl.BlockSpec((H1, 4 * GP), const),
            pl.BlockSpec((1, 4 * GP), const),
            pl.BlockSpec((1, 4 * GP), const),
        ],
        out_specs=[
            pl.BlockSpec((T, B, 1), lambda i, m: (0, 0, 0)),  # stacked outputs
            pl.BlockSpec((B, H1), const),
            pl.BlockSpec((B, H1), const),
            pl.BlockSpec((B, H2), const),
            pl.BlockSpec((B, H2), const),
        ],
    )
    out_shapes = (
        jax.ShapeDtypeStruct((T, B, 1), jnp.float32),
        jax.ShapeDtypeStruct((B, H1), jnp.float32),
        jax.ShapeDtypeStruct((B, H1), jnp.float32),
        jax.ShapeDtypeStruct((B, H2), jnp.float32),
        jax.ShapeDtypeStruct((B, H2), jnp.float32),
    )
    out, h1, c1, h2, c2 = pl.pallas_call(
        _sequence_kernel,
        out_shape=out_shapes,
        grid_spec=grid_spec,
        compiler_params=pltpu.CompilerParams(
            dimension_semantics=("arbitrary",)),     # sequential recurrence
    )(mask, seq, padded["wih1"], padded["whh1"], padded["b1"],
      padded["wih2"], padded["whh2"], padded["b2"])
    # Match PyTorch return convention: (T, B, 1), ((h1, c1), (h2, c2)) with a
    # leading num_layers=1 axis on each state.
    return out, ((h1[None], c1[None]), (h2[None], c2[None]))


def _reference(seq, params, mask):
    """Pure-JAX reference of the same forward pass (for verification)."""
    T, B, _ = seq.shape
    h1 = jnp.zeros((B, H1)); c1 = jnp.zeros((B, H1))
    h2 = jnp.zeros((B, H2)); c2 = jnp.zeros((B, H2))
    x_in = seq[0]
    outs = []
    for t in range(T):
        if int(mask[t]):
            x_in = seq[t]
        g = (x_in @ params["w_ih1"].T + h1 @ params["w_hh1"].T
             + params["b_ih1"] + params["b_hh1"])
        i, f, gg, o = jnp.split(g, 4, axis=-1)
        c1 = jax.nn.sigmoid(f) * c1 + jax.nn.sigmoid(i) * jnp.tanh(gg)
        h1 = jax.nn.sigmoid(o) * jnp.tanh(c1)
        g = (h1 @ params["w_ih2"].T + h2 @ params["w_hh2"].T
             + params["b_ih2"] + params["b_hh2"])
        i, f, gg, o = jnp.split(g, 4, axis=-1)
        c2 = jax.nn.sigmoid(f) * c2 + jax.nn.sigmoid(i) * jnp.tanh(gg)
        h2 = jax.nn.sigmoid(o) * jnp.tanh(c2)
        x_in = h2
        outs.append(h2)
    return jnp.stack(outs), (h1, c1), (h2, c2)


def init_params(key):
    """Deterministic PyTorch-style uniform(-1/sqrt(H), 1/sqrt(H)) init."""
    ks = jax.random.split(key, 8)
    k1 = 1.0 / np.sqrt(H1)
    k2 = 1.0 / np.sqrt(H2)
    u = lambda k, shape, s: jax.random.uniform(k, shape, jnp.float32, -s, s)
    return {
        "w_ih1": u(ks[0], (4 * H1, IN1), k1),
        "w_hh1": u(ks[1], (4 * H1, H1), k1),
        "b_ih1": u(ks[2], (4 * H1,), k1),
        "b_hh1": u(ks[3], (4 * H1,), k1),
        "w_ih2": u(ks[4], (4 * H2, H1), k2),
        "w_hh2": u(ks[5], (4 * H2, H2), k2),
        "b_ih2": u(ks[6], (4 * H2,), k2),
        "b_hh2": u(ks[7], (4 * H2,), k2),
    }


if __name__ == "__main__":
    T, B = 8, 2
    key = jax.random.PRNGKey(0)
    k_seq, k_mask, k_par = jax.random.split(key, 3)

    seq = jax.random.normal(k_seq, (T, B, 1), dtype=jnp.float32)
    # TODO(synk): PyTorch draws np.random.rand() per step (global RNG); here the
    # scheduled-sampling mask is a deterministic precomputed Bernoulli(0.5) draw.
    mask = (jax.random.uniform(k_mask, (T,)) > 0.5).astype(jnp.int32)
    params = init_params(k_par)
    padded = prepare_params(params)   # one-time weight padding/transposition

    out, ((h1, c1), (h2, c2)) = sequence_forward(seq, padded, mask)
    jax.block_until_ready(out)

    # Verify against the pure-JAX reference.
    ref_out, (rh1, rc1), (rh2, rc2) = _reference(seq, params, mask)
    np.testing.assert_allclose(np.asarray(out), np.asarray(ref_out),
                               rtol=1e-4, atol=1e-4)
    np.testing.assert_allclose(np.asarray(h1[0]), np.asarray(rh1), rtol=1e-4, atol=1e-4)
    np.testing.assert_allclose(np.asarray(c1[0]), np.asarray(rc1), rtol=1e-4, atol=1e-4)
    np.testing.assert_allclose(np.asarray(h2[0]), np.asarray(rh2), rtol=1e-4, atol=1e-4)
    np.testing.assert_allclose(np.asarray(c2[0]), np.asarray(rc2), rtol=1e-4, atol=1e-4)

    assert out.shape == (T, B, 1)
    assert h1.shape == (1, B, H1) and c1.shape == (1, B, H1)
    assert h2.shape == (1, B, H2) and c2.shape == (1, B, H2)
    print("KERNEL_OK")
</pallas_src>

<mosaic_0001>
module attributes {stable_mosaic.version = 11 : i64} {
  func.func @_sequence_kernel(%arg0: i32, %arg1: memref<8xi32, #tpu.memory_space<smem>>, %arg2: memref<8x2x1xf32, #tpu.memory_space<vmem>>, %arg3: memref<1x512xf32, #tpu.memory_space<vmem>>, %arg4: memref<64x512xf32, #tpu.memory_space<vmem>>, %arg5: memref<1x512xf32, #tpu.memory_space<vmem>>, %arg6: memref<64x512xf32, #tpu.memory_space<vmem>>, %arg7: memref<1x512xf32, #tpu.memory_space<vmem>>, %arg8: memref<1x512xf32, #tpu.memory_space<vmem>>, %arg9: memref<8x2x1xf32, #tpu.memory_space<vmem>>, %arg10: memref<2x64xf32, #tpu.memory_space<vmem>>, %arg11: memref<2x64xf32, #tpu.memory_space<vmem>>, %arg12: memref<2x1xf32, #tpu.memory_space<vmem>>, %arg13: memref<2x1xf32, #tpu.memory_space<vmem>>) attributes {dimension_semantics = [#tpu.dimension_semantics<arbitrary>], iteration_bounds = array<i64: 1>, scalar_prefetch = 1 : i64, scratch_operands = 0 : i64, tpu.core_type = #tpu.core_type<tc>, window_params = [{pipeline_mode = #tpu.pipeline_mode<synchronous>, transform_indices = @transform_0, window_bounds = array<i64: 8, 2, 1>}, {pipeline_mode = #tpu.pipeline_mode<synchronous>, transform_indices = @transform_1, window_bounds = array<i64: 1, 512>}, {pipeline_mode = #tpu.pipeline_mode<synchronous>, transform_indices = @transform_2, window_bounds = array<i64: 64, 512>}, {pipeline_mode = #tpu.pipeline_mode<synchronous>, transform_indices = @transform_3, window_bounds = array<i64: 1, 512>}, {pipeline_mode = #tpu.pipeline_mode<synchronous>, transform_indices = @transform_4, window_bounds = array<i64: 64, 512>}, {pipeline_mode = #tpu.pipeline_mode<synchronous>, transform_indices = @transform_5, window_bounds = array<i64: 1, 512>}, {pipeline_mode = #tpu.pipeline_mode<synchronous>, transform_indices = @transform_6, window_bounds = array<i64: 1, 512>}, {pipeline_mode = #tpu.pipeline_mode<synchronous>, transform_indices = @transform_7, window_bounds = array<i64: 8, 2, 1>}, {pipeline_mode = #tpu.pipeline_mode<synchronous>, transform_indices = @transform_8, window_bounds = array<i64: 2, 64>}, {pipeline_mode = #tpu.pipeline_mode<synchronous>, transform_indices = @transform_9, window_bounds = array<i64: 2, 64>}, {pipeline_mode = #tpu.pipeline_mode<synchronous>, transform_indices = @transform_10, window_bounds = array<i64: 2, 1>}, {pipeline_mode = #tpu.pipeline_mode<synchronous>, transform_indices = @transform_11, window_bounds = array<i64: 2, 1>}]} {
    %cst = arith.constant 0.000000e+00 : f32
    %0 = vector.broadcast %cst : f32 to vector<2x64xf32>
    %cst_0 = arith.constant 0.000000e+00 : f32
    %1 = vector.broadcast %cst_0 : f32 to vector<2x64xf32>
    %cst_1 = arith.constant 0.000000e+00 : f32
    %2 = vector.broadcast %cst_1 : f32 to vector<2x1xf32>
    %cst_2 = arith.constant 0.000000e+00 : f32
    %3 = vector.broadcast %cst_2 : f32 to vector<2x1xf32>
    %c0 = arith.constant 0 : index
    %c0_3 = arith.constant 0 : index
    %c0_4 = arith.constant 0 : index
    %4 = vector.load %arg2[%c0, %c0_3, %c0_4] : memref<8x2x1xf32, #tpu.memory_space<vmem>>, vector<1x2x1xf32>
    %5 = vector.shape_cast %4 : vector<1x2x1xf32> to vector<2x1xf32>
    %c0_5 = arith.constant 0 : index
    %c0_6 = arith.constant 0 : index
    %c0_7 = arith.constant 0 : index
    %6 = vector.load %arg2[%c0_5, %c0_6, %c0_7] : memref<8x2x1xf32, #tpu.memory_space<vmem>>, vector<1x2x1xf32>
    %7 = vector.shape_cast %6 : vector<1x2x1xf32> to vector<2x1xf32>
    %c0_8 = arith.constant 0 : index
    %8 = memref.load %arg1[%c0_8] : memref<8xi32, #tpu.memory_space<smem>>
    %c0_i32 = arith.constant 0 : i32
    %9 = arith.cmpi ne, %8, %c0_i32 : i32
    %10 = arith.select %9, %7, %5 : vector<2x1xf32>
    %c0_9 = arith.constant 0 : index
    %c0_10 = arith.constant 0 : index
    %11 = vector.load %arg3[%c0_9, %c0_10] : memref<1x512xf32, #tpu.memory_space<vmem>>, vector<1x512xf32>
    %12 = vector.broadcast %10 : vector<2x1xf32> to vector<2x512xf32>
    %13 = vector.broadcast %11 : vector<1x512xf32> to vector<2x512xf32>
    %14 = arith.mulf %12, %13 : vector<2x512xf32>
    %c0_11 = arith.constant 0 : index
    %c0_12 = arith.constant 0 : index
    %15 = vector.load %arg4[%c0_11, %c0_12] : memref<64x512xf32, #tpu.memory_space<vmem>>, vector<64x512xf32>
    %cst_13 = arith.constant dense<0.000000e+00> : vector<2x512xf32>
    %16 = tpu.matmul %0, %15, %cst_13 {dimension_numbers = #tpu.dot_dimension_numbers<[1], [0], [0], [1], [0, 0, 1, 1], [], []>} : vector<2x64xf32>, vector<64x512xf32>, vector<2x512xf32> -> vector<2x512xf32>
    %17 = arith.addf %14, %16 : vector<2x512xf32>
    %c0_14 = arith.constant 0 : index
    %c0_15 = arith.constant 0 : index
    %18 = vector.load %arg5[%c0_14, %c0_15] : memref<1x512xf32, #tpu.memory_space<vmem>>, vector<1x512xf32>
    %19 = vector.broadcast %18 : vector<1x512xf32> to vector<2x512xf32>
    %20 = arith.addf %17, %19 : vector<2x512xf32>
    %21 = vector.extract_strided_slice %20 {offsets = [0, 0], sizes = [2, 64], strides = [1, 1]} : vector<2x512xf32> to vector<2x64xf32>
    %cst_16 = arith.constant 5.000000e-01 : f32
    %22 = vector.broadcast %cst_16 : f32 to vector<2x64xf32>
    %23 = arith.mulf %22, %21 : vector<2x64xf32>
    %24 = math.tanh %23 : vector<2x64xf32>
    %cst_17 = arith.constant 5.000000e-01 : f32
    %25 = vector.broadcast %cst_17 : f32 to vector<2x64xf32>
    %26 = arith.mulf %25, %24 : vector<2x64xf32>
    %cst_18 = arith.constant 5.000000e-01 : f32
    %27 = vector.broadcast %cst_18 : f32 to vector<2x64xf32>
    %28 = arith.addf %26, %27 : vector<2x64xf32>
    %29 = vector.extract_strided_slice %20 {offsets = [0, 128], sizes = [2, 64], strides = [1, 1]} : vector<2x512xf32> to vector<2x64xf32>
    %cst_19 = arith.constant 5.000000e-01 : f32
    %30 = vector.broadcast %cst_19 : f32 to vector<2x64xf32>
    %31 = arith.mulf %30, %29 : vector<2x64xf32>
    %32 = math.tanh %31 : vector<2x64xf32>
    %cst_20 = arith.constant 5.000000e-01 : f32
    %33 = vector.broadcast %cst_20 : f32 to vector<2x64xf32>
    %34 = arith.mulf %33, %32 : vector<2x64xf32>
    %cst_21 = arith.constant 5.000000e-01 : f32
    %35 = vector.broadcast %cst_21 : f32 to vector<2x64xf32>
    %36 = arith.addf %34, %35 : vector<2x64xf32>
    %37 = vector.extract_strided_slice %20 {offsets = [0, 256], sizes = [2, 64], strides = [1, 1]} : vector<2x512xf32> to vector<2x64xf32>
    %38 = math.tanh %37 : vector<2x64xf32>
    %39 = vector.extract_strided_slice %20 {offsets = [0, 384], sizes = [2, 64], strides = [1, 1]} : vector<2x512xf32> to vector<2x64xf32>
    %cst_22 = arith.constant 5.000000e-01 : f32
    %40 = vector.broadcast %cst_22 : f32 to vector<2x64xf32>
    %41 = arith.mulf %40, %39 : vector<2x64xf32>
    %42 = math.tanh %41 : vector<2x64xf32>
    %cst_23 = arith.constant 5.000000e-01 : f32
    %43 = vector.broadcast %cst_23 : f32 to vector<2x64xf32>
    %44 = arith.mulf %43, %42 : vector<2x64xf32>
    %cst_24 = arith.constant 5.000000e-01 : f32
    %45 = vector.broadcast %cst_24 : f32 to vector<2x64xf32>
    %46 = arith.addf %44, %45 : vector<2x64xf32>
    %47 = arith.mulf %36, %1 : vector<2x64xf32>
    %48 = arith.mulf %28, %38 : vector<2x64xf32>
    %49 = arith.addf %47, %48 : vector<2x64xf32>
    %50 = math.tanh %49 : vector<2x64xf32>
    %51 = arith.mulf %46, %50 : vector<2x64xf32>
    %c0_25 = arith.constant 0 : index
    %c0_26 = arith.constant 0 : index
    %52 = vector.load %arg6[%c0_25, %c0_26] : memref<64x512xf32, #tpu.memory_space<vmem>>, vector<64x512xf32>
    %cst_27 = arith.constant dense<0.000000e+00> : vector<2x512xf32>
    %53 = tpu.matmul %51, %52, %cst_27 {dimension_numbers = #tpu.dot_dimension_numbers<[1], [0], [0], [1], [0, 0, 1, 1], [], []>} : vector<2x64xf32>, vector<64x512xf32>, vector<2x512xf32> -> vector<2x512xf32>
    %c0_28 = arith.constant 0 : index
    %c0_29 = arith.constant 0 : index
    %54 = vector.load %arg7[%c0_28, %c0_29] : memref<1x512xf32, #tpu.memory_space<vmem>>, vector<1x512xf32>
    %55 = vector.broadcast %2 : vector<2x1xf32> to vector<2x512xf32>
    %56 = vector.broadcast %54 : vector<1x512xf32> to vector<2x512xf32>
    %57 = arith.mulf %55, %56 : vector<2x512xf32>
    %58 = arith.addf %53, %57 : vector<2x512xf32>
    %c0_30 = arith.constant 0 : index
    %c0_31 = arith.constant 0 : index
    %59 = vector.load %arg8[%c0_30, %c0_31] : memref<1x512xf32, #tpu.memory_space<vmem>>, vector<1x512xf32>
    %60 = vector.broadcast %59 : vector<1x512xf32> to vector<2x512xf32>
    %61 = arith.addf %58, %60 : vector<2x512xf32>
    %62 = vector.extract_strided_slice %61 {offsets = [0, 0], sizes = [2, 1], strides = [1, 1]} : vector<2x512xf32> to vector<2x1xf32>
    %cst_32 = arith.constant 5.000000e-01 : f32
    %63 = vector.broadcast %cst_32 : f32 to vector<2x1xf32>
    %64 = arith.mulf %63, %62 : vector<2x1xf32>
    %65 = math.tanh %64 : vector<2x1xf32>
    %cst_33 = arith.constant 5.000000e-01 : f32
    %66 = vector.broadcast %cst_33 : f32 to vector<2x1xf32>
    %67 = arith.mulf %66, %65 : vector<2x1xf32>
    %cst_34 = arith.constant 5.000000e-01 : f32
    %68 = vector.broadcast %cst_34 : f32 to vector<2x1xf32>
    %69 = arith.addf %67, %68 : vector<2x1xf32>
    %70 = vector.extract_strided_slice %61 {offsets = [0, 128], sizes = [2, 1], strides = [1, 1]} : vector<2x512xf32> to vector<2x1xf32>
    %cst_35 = arith.constant 5.000000e-01 : f32
    %71 = vector.broadcast %cst_35 : f32 to vector<2x1xf32>
    %72 = arith.mulf %71, %70 : vector<2x1xf32>
    %73 = math.tanh %72 : vector<2x1xf32>
    %cst_36 = arith.constant 5.000000e-01 : f32
    %74 = vector.broadcast %cst_36 : f32 to vector<2x1xf32>
    %75 = arith.mulf %74, %73 : vector<2x1xf32>
    %cst_37 = arith.constant 5.000000e-01 : f32
    %76 = vector.broadcast %cst_37 : f32 to vector<2x1xf32>
    %77 = arith.addf %75, %76 : vector<2x1xf32>
    %78 = vector.extract_strided_slice %61 {offsets = [0, 256], sizes = [2, 1], strides = [1, 1]} : vector<2x512xf32> to vector<2x1xf32>
    %79 = math.tanh %78 : vector<2x1xf32>
    %80 = vector.extract_strided_slice %61 {offsets = [0, 384], sizes = [2, 1], strides = [1, 1]} : vector<2x512xf32> to vector<2x1xf32>
    %cst_38 = arith.constant 5.000000e-01 : f32
    %81 = vector.broadcast %cst_38 : f32 to vector<2x1xf32>
    %82 = arith.mulf %81, %80 : vector<2x1xf32>
    %83 = math.tanh %82 : vector<2x1xf32>
    %cst_39 = arith.constant 5.000000e-01 : f32
    %84 = vector.broadcast %cst_39 : f32 to vector<2x1xf32>
    %85 = arith.mulf %84, %83 : vector<2x1xf32>
    %cst_40 = arith.constant 5.000000e-01 : f32
    %86 = vector.broadcast %cst_40 : f32 to vector<2x1xf32>
    %87 = arith.addf %85, %86 : vector<2x1xf32>
    %88 = arith.mulf %77, %3 : vector<2x1xf32>
    %89 = arith.mulf %69, %79 : vector<2x1xf32>
    %90 = arith.addf %88, %89 : vector<2x1xf32>
    %91 = math.tanh %90 : vector<2x1xf32>
    %92 = arith.mulf %87, %91 : vector<2x1xf32>
    %c0_41 = arith.constant 0 : index
    %c0_42 = arith.constant 0 : index
    %c0_43 = arith.constant 0 : index
    %93 = vector.load %arg9[%c0_41, %c0_42, %c0_43] : memref<8x2x1xf32, #tpu.memory_space<vmem>>, vector<1x2x1xf32>
    %94 = vector.shape_cast %93 : vector<1x2x1xf32> to vector<2x1xf32>
    %95 = vector.shape_cast %92 : vector<2x1xf32> to vector<1x2x1xf32>
    tpu.vector_store %arg9[%c0_41, %c0_42, %c0_43], %95 {strides = array<i32>} : memref<8x2x1xf32, #tpu.memory_space<vmem>>, vector<1x2x1xf32>,
    %c1 = arith.constant 1 : index
    %c0_44 = arith.constant 0 : index
    %c0_45 = arith.constant 0 : index
    %96 = vector.load %arg2[%c1, %c0_44, %c0_45] : memref<8x2x1xf32, #tpu.memory_space<vmem>>, vector<1x2x1xf32>
    %97 = vector.shape_cast %96 : vector<1x2x1xf32> to vector<2x1xf32>
    %c1_46 = arith.constant 1 : index
    %98 = memref.load %arg1[%c1_46] : memref<8xi32, #tpu.memory_space<smem>>
    %c0_i32_47 = arith.constant 0 : i32
    %99 = arith.cmpi ne, %98, %c0_i32_47 : i32
    %100 = arith.select %99, %97, %92 : vector<2x1xf32>
    %c0_48 = arith.constant 0 : index
    %c0_49 = arith.constant 0 : index
    %101 = vector.load %arg3[%c0_48, %c0_49] : memref<1x512xf32, #tpu.memory_space<vmem>>, vector<1x512xf32>
    %102 = vector.broadcast %100 : vector<2x1xf32> to vector<2x512xf32>
    %103 = vector.broadcast %101 : vector<1x512xf32> to vector<2x512xf32>
    %104 = arith.mulf %102, %103 : vector<2x512xf32>
    %c0_50 = arith.constant 0 : index
    %c0_51 = arith.constant 0 : index
    %105 = vector.load %arg4[%c0_50, %c0_51] : memref<64x512xf32, #tpu.memory_space<vmem>>, vector<64x512xf32>
    %cst_52 = arith.constant dense<0.000000e+00> : vector<2x512xf32>
    %106 = tpu.matmul %51, %105, %cst_52 {dimension_numbers = #tpu.dot_dimension_numbers<[1], [0], [0], [1], [0, 0, 1, 1], [], []>} : vector<2x64xf32>, vector<64x512xf32>, vector<2x512xf32> -> vector<2x512xf32>
    %107 = arith.addf %104, %106 : vector<2x512xf32>
    %c0_53 = arith.constant 0 : index
    %c0_54 = arith.constant 0 : index
    %108 = vector.load %arg5[%c0_53, %c0_54] : memref<1x512xf32, #tpu.memory_space<vmem>>, vector<1x512xf32>
    %109 = vector.broadcast %108 : vector<1x512xf32> to vector<2x512xf32>
    %110 = arith.addf %107, %109 : vector<2x512xf32>
    %111 = vector.extract_strided_slice %110 {offsets = [0, 0], sizes = [2, 64], strides = [1, 1]} : vector<2x512xf32> to vector<2x64xf32>
    %cst_55 = arith.constant 5.000000e-01 : f32
    %112 = vector.broadcast %cst_55 : f32 to vector<2x64xf32>
    %113 = arith.mulf %112, %111 : vector<2x64xf32>
    %114 = math.tanh %113 : vector<2x64xf32>
    %cst_56 = arith.constant 5.000000e-01 : f32
    %115 = vector.broadcast %cst_56 : f32 to vector<2x64xf32>
    %116 = arith.mulf %115, %114 : vector<2x64xf32>
    %cst_57 = arith.constant 5.000000e-01 : f32
    %117 = vector.broadcast %cst_57 : f32 to vector<2x64xf32>
    %118 = arith.addf %116, %117 : vector<2x64xf32>
    %119 = vector.extract_strided_slice %110 {offsets = [0, 128], sizes = [2, 64], strides = [1, 1]} : vector<2x512xf32> to vector<2x64xf32>
    %cst_58 = arith.constant 5.000000e-01 : f32
    %120 = vector.broadcast %cst_58 : f32 to vector<2x64xf32>
    %121 = arith.mulf %120, %119 : vector<2x64xf32>
    %122 = math.tanh %121 : vector<2x64xf32>
    %cst_59 = arith.constant 5.000000e-01 : f32
    %123 = vector.broadcast %cst_59 : f32 to vector<2x64xf32>
    %124 = arith.mulf %123, %122 : vector<2x64xf32>
    %cst_60 = arith.constant 5.000000e-01 : f32
    %125 = vector.broadcast %cst_60 : f32 to vector<2x64xf32>
    %126 = arith.addf %124, %125 : vector<2x64xf32>
    %127 = vector.extract_strided_slice %110 {offsets = [0, 256], sizes = [2, 64], strides = [1, 1]} : vector<2x512xf32> to vector<2x64xf32>
    %128 = math.tanh %127 : vector<2x64xf32>
    %129 = vector.extract_strided_slice %110 {offsets = [0, 384], sizes = [2, 64], strides = [1, 1]} : vector<2x512xf32> to vector<2x64xf32>
    %cst_61 = arith.constant 5.000000e-01 : f32
    %130 = vector.broadcast %cst_61 : f32 to vector<2x64xf32>
    %131 = arith.mulf %130, %129 : vector<2x64xf32>
    %132 = math.tanh %131 : vector<2x64xf32>
    %cst_62 = arith.constant 5.000000e-01 : f32
    %133 = vector.broadcast %cst_62 : f32 to vector<2x64xf32>
    %134 = arith.mulf %133, %132 : vector<2x64xf32>
    %cst_63 = arith.constant 5.000000e-01 : f32
    %135 = vector.broadcast %cst_63 : f32 to vector<2x64xf32>
    %136 = arith.addf %134, %135 : vector<2x64xf32>
    %137 = arith.mulf %126, %49 : vector<2x64xf32>
    %138 = arith.mulf %118, %128 : vector<2x64xf32>
    %139 = arith.addf %137, %138 : vector<2x64xf32>
    %140 = math.tanh %139 : vector<2x64xf32>
    %141 = arith.mulf %136, %140 : vector<2x64xf32>
    %c0_64 = arith.constant 0 : index
    %c0_65 = arith.constant 0 : index
    %142 = vector.load %arg6[%c0_64, %c0_65] : memref<64x512xf32, #tpu.memory_space<vmem>>, vector<64x512xf32>
    %cst_66 = arith.constant dense<0.000000e+00> : vector<2x512xf32>
    %143 = tpu.matmul %141, %142, %cst_66 {dimension_numbers = #tpu.dot_dimension_numbers<[1], [0], [0], [1], [0, 0, 1, 1], [], []>} : vector<2x64xf32>, vector<64x512xf32>, vector<2x512xf32> -> vector<2x512xf32>
    %c0_67 = arith.constant 0 : index
    %c0_68 = arith.constant 0 : index
    %144 = vector.load %arg7[%c0_67, %c0_68] : memref<1x512xf32, #tpu.memory_space<vmem>>, vector<1x512xf32>
    %145 = vector.broadcast %92 : vector<2x1xf32> to vector<2x512xf32>
    %146 = vector.broadcast %144 : vector<1x512xf32> to vector<2x512xf32>
    %147 = arith.mulf %145, %146 : vector<2x512xf32>
    %148 = arith.addf %143, %147 : vector<2x512xf32>
    %c0_69 = arith.constant 0 : index
    %c0_70 = arith.constant 0 : index
    %149 = vector.load %arg8[%c0_69, %c0_70] : memref<1x512xf32, #tpu.memory_space<vmem>>, vector<1x512xf32>
    %150 = vector.broadcast %149 : vector<1x512xf32> to vector<2x512xf32>
    %151 = arith.addf %148, %150 : vector<2x512xf32>
    %152 = vector.extract_strided_slice %151 {offsets = [0, 0], sizes = [2, 1], strides = [1, 1]} : vector<2x512xf32> to vector<2x1xf32>
    %cst_71 = arith.constant 5.000000e-01 : f32
    %153 = vector.broadcast %cst_71 : f32 to vector<2x1xf32>
    %154 = arith.mulf %153, %152 : vector<2x1xf32>
    %155 = math.tanh %154 : vector<2x1xf32>
    %cst_72 = arith.constant 5.000000e-01 : f32
    %156 = vector.broadcast %cst_72 : f32 to vector<2x1xf32>
    %157 = arith.mulf %156, %155 : vector<2x1xf32>
    %cst_73 = arith.constant 5.000000e-01 : f32
    %158 = vector.broadcast %cst_73 : f32 to vector<2x1xf32>
    %159 = arith.addf %157, %158 : vector<2x1xf32>
    %160 = vector.extract_strided_slice %151 {offsets = [0, 128], sizes = [2, 1], strides = [1, 1]} : vector<2x512xf32> to vector<2x1xf32>
    %cst_74 = arith.constant 5.000000e-01 : f32
    %161 = vector.broadcast %cst_74 : f32 to vector<2x1xf32>
    %162 = arith.mulf %161, %160 : vector<2x1xf32>
    %163 = math.tanh %162 : vector<2x1xf32>
    %cst_75 = arith.constant 5.000000e-01 : f32
    %164 = vector.broadcast %cst_75 : f32 to vector<2x1xf32>
    %165 = arith.mulf %164, %163 : vector<2x1xf32>
    %cst_76 = arith.constant 5.000000e-01 : f32
    %166 = vector.broadcast %cst_76 : f32 to vector<2x1xf32>
    %167 = arith.addf %165, %166 : vector<2x1xf32>
    %168 = vector.extract_strided_slice %151 {offsets = [0, 256], sizes = [2, 1], strides = [1, 1]} : vector<2x512xf32> to vector<2x1xf32>
    %169 = math.tanh %168 : vector<2x1xf32>
    %170 = vector.extract_strided_slice %151 {offsets = [0, 384], sizes = [2, 1], strides = [1, 1]} : vector<2x512xf32> to vector<2x1xf32>
    %cst_77 = arith.constant 5.000000e-01 : f32
    %171 = vector.broadcast %cst_77 : f32 to vector<2x1xf32>
    %172 = arith.mulf %171, %170 : vector<2x1xf32>
    %173 = math.tanh %172 : vector<2x1xf32>
    %cst_78 = arith.constant 5.000000e-01 : f32
    %174 = vector.broadcast %cst_78 : f32 to vector<2x1xf32>
    %175 = arith.mulf %174, %173 : vector<2x1xf32>
    %cst_79 = arith.constant 5.000000e-01 : f32
    %176 = vector.broadcast %cst_79 : f32 to vector<2x1xf32>
    %177 = arith.addf %175, %176 : vector<2x1xf32>
    %178 = arith.mulf %167, %90 : vector<2x1xf32>
    %179 = arith.mulf %159, %169 : vector<2x1xf32>
    %180 = arith.addf %178, %179 : vector<2x1xf32>
    %181 = math.tanh %180 : vector<2x1xf32>
    %182 = arith.mulf %177, %181 : vector<2x1xf32>
    %c1_80 = arith.constant 1 : index
    %c0_81 = arith.constant 0 : index
    %c0_82 = arith.constant 0 : index
    %183 = vector.load %arg9[%c1_80, %c0_81, %c0_82] : memref<8x2x1xf32, #tpu.memory_space<vmem>>, vector<1x2x1xf32>
    %184 = vector.shape_cast %183 : vector<1x2x1xf32> to vector<2x1xf32>
    %185 = vector.shape_cast %182 : vector<2x1xf32> to vector<1x2x1xf32>
    tpu.vector_store %arg9[%c1_80, %c0_81, %c0_82], %185 {strides = array<i32>} : memref<8x2x1xf32, #tpu.memory_space<vmem>>, vector<1x2x1xf32>,
    %c2 = arith.constant 2 : index
    %c0_83 = arith.constant 0 : index
    %c0_84 = arith.constant 0 : index
    %186 = vector.load %arg2[%c2, %c0_83, %c0_84] : memref<8x2x1xf32, #tpu.memory_space<vmem>>, vector<1x2x1xf32>
    %187 = vector.shape_cast %186 : vector<1x2x1xf32> to vector<2x1xf32>
    %c2_85 = arith.constant 2 : index
    %188 = memref.load %arg1[%c2_85] : memref<8xi32, #tpu.memory_space<smem>>
    %c0_i32_86 = arith.constant 0 : i32
    %189 = arith.cmpi ne, %188, %c0_i32_86 : i32
    %190 = arith.select %189, %187, %182 : vector<2x1xf32>
    %c0_87 = arith.constant 0 : index
    %c0_88 = arith.constant 0 : index
    %191 = vector.load %arg3[%c0_87, %c0_88] : memref<1x512xf32, #tpu.memory_space<vmem>>, vector<1x512xf32>
    %192 = vector.broadcast %190 : vector<2x1xf32> to vector<2x512xf32>
    %193 = vector.broadcast %191 : vector<1x512xf32> to vector<2x512xf32>
    %194 = arith.mulf %192, %193 : vector<2x512xf32>
    %c0_89 = arith.constant 0 : index
    %c0_90 = arith.constant 0 : index
    %195 = vector.load %arg4[%c0_89, %c0_90] : memref<64x512xf32, #tpu.memory_space<vmem>>, vector<64x512xf32>
    %cst_91 = arith.constant dense<0.000000e+00> : vector<2x512xf32>
    %196 = tpu.matmul %141, %195, %cst_91 {dimension_numbers = #tpu.dot_dimension_numbers<[1], [0], [0], [1], [0, 0, 1, 1], [], []>} : vector<2x64xf32>, vector<64x512xf32>, vector<2x512xf32> -> vector<2x512xf32>
    %197 = arith.addf %194, %196 : vector<2x512xf32>
    %c0_92 = arith.constant 0 : index
    %c0_93 = arith.constant 0 : index
    %198 = vector.load %arg5[%c0_92, %c0_93] : memref<1x512xf32, #tpu.memory_space<vmem>>, vector<1x512xf32>
    %199 = vector.broadcast %198 : vector<1x512xf32> to vector<2x512xf32>
    %200 = arith.addf %197, %199 : vector<2x512xf32>
    %201 = vector.extract_strided_slice %200 {offsets = [0, 0], sizes = [2, 64], strides = [1, 1]} : vector<2x512xf32> to vector<2x64xf32>
    %cst_94 = arith.constant 5.000000e-01 : f32
    %202 = vector.broadcast %cst_94 : f32 to vector<2x64xf32>
    %203 = arith.mulf %202, %201 : vector<2x64xf32>
    %204 = math.tanh %203 : vector<2x64xf32>
    %cst_95 = arith.constant 5.000000e-01 : f32
    %205 = vector.broadcast %cst_95 : f32 to vector<2x64xf32>
    %206 = arith.mulf %205, %204 : vector<2x64xf32>
    %cst_96 = arith.constant 5.000000e-01 : f32
    %207 = vector.broadcast %cst_96 : f32 to vector<2x64xf32>
    %208 = arith.addf %206, %207 : vector<2x64xf32>
    %209 = vector.extract_strided_slice %200 {offsets = [0, 128], sizes = [2, 64], strides = [1, 1]} : vector<2x512xf32> to vector<2x64xf32>
    %cst_97 = arith.constant 5.000000e-01 : f32
    %210 = vector.broadcast %cst_97 : f32 to vector<2x64xf32>
    %211 = arith.mulf %210, %209 : vector<2x64xf32>
    %212 = math.tanh %211 : vector<2x64xf32>
    %cst_98 = arith.constant 5.000000e-01 : f32
    %213 = vector.broadcast %cst_98 : f32 to vector<2x64xf32>
    %214 = arith.mulf %213, %212 : vector<2x64xf32>
    %cst_99 = arith.constant 5.000000e-01 : f32
    %215 = vector.broadcast %cst_99 : f32 to vector<2x64xf32>
    %216 = arith.addf %214, %215 : vector<2x64xf32>
    %217 = vector.extract_strided_slice %200 {offsets = [0, 256], sizes = [2, 64], strides = [1, 1]} : vector<2x512xf32> to vector<2x64xf32>
    %218 = math.tanh %217 : vector<2x64xf32>
    %219 = vector.extract_strided_slice %200 {offsets = [0, 384], sizes = [2, 64], strides = [1, 1]} : vector<2x512xf32> to vector<2x64xf32>
    %cst_100 = arith.constant 5.000000e-01 : f32
    %220 = vector.broadcast %cst_100 : f32 to vector<2x64xf32>
    %221 = arith.mulf %220, %219 : vector<2x64xf32>
    %222 = math.tanh %221 : vector<2x64xf32>
    %cst_101 = arith.constant 5.000000e-01 : f32
    %223 = vector.broadcast %cst_101 : f32 to vector<2x64xf32>
    %224 = arith.mulf %223, %222 : vector<2x64xf32>
    %cst_102 = arith.constant 5.000000e-01 : f32
    %225 = vector.broadcast %cst_102 : f32 to vector<2x64xf32>
    %226 = arith.addf %224, %225 : vector<2x64xf32>
    %227 = arith.mulf %216, %139 : vector<2x64xf32>
    %228 = arith.mulf %208, %218 : vector<2x64xf32>
    %229 = arith.addf %227, %228 : vector<2x64xf32>
    %230 = math.tanh %229 : vector<2x64xf32>
    %231 = arith.mulf %226, %230 : vector<2x64xf32>
    %c0_103 = arith.constant 0 : index
    %c0_104 = arith.constant 0 : index
    %232 = vector.load %arg6[%c0_103, %c0_104] : memref<64x512xf32, #tpu.memory_space<vmem>>, vector<64x512xf32>
    %cst_105 = arith.constant dense<0.000000e+00> : vector<2x512xf32>
    %233 = tpu.matmul %231, %232, %cst_105 {dimension_numbers = #tpu.dot_dimension_numbers<[1], [0], [0], [1], [0, 0, 1, 1], [], []>} : vector<2x64xf32>, vector<64x512xf32>, vector<2x512xf32> -> vector<2x512xf32>
    %c0_106 = arith.constant 0 : index
    %c0_107 = arith.constant 0 : index
    %234 = vector.load %arg7[%c0_106, %c0_107] : memref<1x512xf32, #tpu.memory_space<vmem>>, vector<1x512xf32>
    %235 = vector.broadcast %182 : vector<2x1xf32> to vector<2x512xf32>
    %236 = vector.broadcast %234 : vector<1x512xf32> to vector<2x512xf32>
    %237 = arith.mulf %235, %236 : vector<2x512xf32>
    %238 = arith.addf %233, %237 : vector<2x512xf32>
    %c0_108 = arith.constant 0 : index
    %c0_109 = arith.constant 0 : index
    %239 = vector.load %arg8[%c0_108, %c0_109] : memref<1x512xf32, #tpu.memory_space<vmem>>, vector<1x512xf32>
    %240 = vector.broadcast %239 : vector<1x512xf32> to vector<2x512xf32>
    %241 = arith.addf %238, %240 : vector<2x512xf32>
    %242 = vector.extract_strided_slice %241 {offsets = [0, 0], sizes = [2, 1], strides = [1, 1]} : vector<2x512xf32> to vector<2x1xf32>
    %cst_110 = arith.constant 5.000000e-01 : f32
    %243 = vector.broadcast %cst_110 : f32 to vector<2x1xf32>
    %244 = arith.mulf %243, %242 : vector<2x1xf32>
    %245 = math.tanh %244 : vector<2x1xf32>
    %cst_111 = arith.constant 5.000000e-01 : f32
    %246 = vector.broadcast %cst_111 : f32 to vector<2x1xf32>
    %247 = arith.mulf %246, %245 : vector<2x1xf32>
    %cst_112 = arith.constant 5.000000e-01 : f32
    %248 = vector.broadcast %cst_112 : f32 to vector<2x1xf32>
    %249 = arith.addf %247, %248 : vector<2x1xf32>
    %250 = vector.extract_strided_slice %241 {offsets = [0, 128], sizes = [2, 1], strides = [1, 1]} : vector<2x512xf32> to vector<2x1xf32>
    %cst_113 = arith.constant 5.000000e-01 : f32
    %251 = vector.broadcast %cst_113 : f32 to vector<2x1xf32>
    %252 = arith.mulf %251, %250 : vector<2x1xf32>
    %253 = math.tanh %252 : vector<2x1xf32>
    %cst_114 = arith.constant 5.000000e-01 : f32
    %254 = vector.broadcast %cst_114 : f32 to vector<2x1xf32>
    %255 = arith.mulf %254, %253 : vector<2x1xf32>
    %cst_115 = arith.constant 5.000000e-01 : f32
    %256 = vector.broadcast %cst_115 : f32 to vector<2x1xf32>
    %257 = arith.addf %255, %256 : vector<2x1xf32>
    %258 = vector.extract_strided_slice %241 {offsets = [0, 256], sizes = [2, 1], strides = [1, 1]} : vector<2x512xf32> to vector<2x1xf32>
    %259 = math.tanh %258 : vector<2x1xf32>
    %260 = vector.extract_strided_slice %241 {offsets = [0, 384], sizes = [2, 1], strides = [1, 1]} : vector<2x512xf32> to vector<2x1xf32>
    %cst_116 = arith.constant 5.000000e-01 : f32
    %261 = vector.broadcast %cst_116 : f32 to vector<2x1xf32>
    %262 = arith.mulf %261, %260 : vector<2x1xf32>
    %263 = math.tanh %262 : vector<2x1xf32>
    %cst_117 = arith.constant 5.000000e-01 : f32
    %264 = vector.broadcast %cst_117 : f32 to vector<2x1xf32>
    %265 = arith.mulf %264, %263 : vector<2x1xf32>
    %cst_118 = arith.constant 5.000000e-01 : f32
    %266 = vector.broadcast %cst_118 : f32 to vector<2x1xf32>
    %267 = arith.addf %265, %266 : vector<2x1xf32>
    %268 = arith.mulf %257, %180 : vector<2x1xf32>
    %269 = arith.mulf %249, %259 : vector<2x1xf32>
    %270 = arith.addf %268, %269 : vector<2x1xf32>
    %271 = math.tanh %270 : vector<2x1xf32>
    %272 = arith.mulf %267, %271 : vector<2x1xf32>
    %c2_119 = arith.constant 2 : index
    %c0_120 = arith.constant 0 : index
    %c0_121 = arith.constant 0 : index
    %273 = vector.load %arg9[%c2_119, %c0_120, %c0_121] : memref<8x2x1xf32, #tpu.memory_space<vmem>>, vector<1x2x1xf32>
    %274 = vector.shape_cast %273 : vector<1x2x1xf32> to vector<2x1xf32>
    %275 = vector.shape_cast %272 : vector<2x1xf32> to vector<1x2x1xf32>
    tpu.vector_store %arg9[%c2_119, %c0_120, %c0_121], %275 {strides = array<i32>} : memref<8x2x1xf32, #tpu.memory_space<vmem>>, vector<1x2x1xf32>,
    %c3 = arith.constant 3 : index
    %c0_122 = arith.constant 0 : index
    %c0_123 = arith.constant 0 : index
    %276 = vector.load %arg2[%c3, %c0_122, %c0_123] : memref<8x2x1xf32, #tpu.memory_space<vmem>>, vector<1x2x1xf32>
    %277 = vector.shape_cast %276 : vector<1x2x1xf32> to vector<2x1xf32>
    %c3_124 = arith.constant 3 : index
    %278 = memref.load %arg1[%c3_124] : memref<8xi32, #tpu.memory_space<smem>>
    %c0_i32_125 = arith.constant 0 : i32
    %279 = arith.cmpi ne, %278, %c0_i32_125 : i32
    %280 = arith.select %279, %277, %272 : vector<2x1xf32>
    %c0_126 = arith.constant 0 : index
    %c0_127 = arith.constant 0 : index
    %281 = vector.load %arg3[%c0_126, %c0_127] : memref<1x512xf32, #tpu.memory_space<vmem>>, vector<1x512xf32>
    %282 = vector.broadcast %280 : vector<2x1xf32> to vector<2x512xf32>
    %283 = vector.broadcast %281 : vector<1x512xf32> to vector<2x512xf32>
    %284 = arith.mulf %282, %283 : vector<2x512xf32>
    %c0_128 = arith.constant 0 : index
    %c0_129 = arith.constant 0 : index
    %285 = vector.load %arg4[%c0_128, %c0_129] : memref<64x512xf32, #tpu.memory_space<vmem>>, vector<64x512xf32>
    %cst_130 = arith.constant dense<0.000000e+00> : vector<2x512xf32>
    %286 = tpu.matmul %231, %285, %cst_130 {dimension_numbers = #tpu.dot_dimension_numbers<[1], [0], [0], [1], [0, 0, 1, 1], [], []>} : vector<2x64xf32>, vector<64x512xf32>, vector<2x512xf32> -> vector<2x512xf32>
    %287 = arith.addf %284, %286 : vector<2x512xf32>
    %c0_131 = arith.constant 0 : index
    %c0_132 = arith.constant 0 : index
    %288 = vector.load %arg5[%c0_131, %c0_132] : memref<1x512xf32, #tpu.memory_space<vmem>>, vector<1x512xf32>
    %289 = vector.broadcast %288 : vector<1x512xf32> to vector<2x512xf32>
    %290 = arith.addf %287, %289 : vector<2x512xf32>
    %291 = vector.extract_strided_slice %290 {offsets = [0, 0], sizes = [2, 64], strides = [1, 1]} : vector<2x512xf32> to vector<2x64xf32>
    %cst_133 = arith.constant 5.000000e-01 : f32
    %292 = vector.broadcast %cst_133 : f32 to vector<2x64xf32>
    %293 = arith.mulf %292, %291 : vector<2x64xf32>
    %294 = math.tanh %293 : vector<2x64xf32>
    %cst_134 = arith.constant 5.000000e-01 : f32
    %295 = vector.broadcast %cst_134 : f32 to vector<2x64xf32>
    %296 = arith.mulf %295, %294 : vector<2x64xf32>
    %cst_135 = arith.constant 5.000000e-01 : f32
    %297 = vector.broadcast %cst_135 : f32 to vector<2x64xf32>
    %298 = arith.addf %296, %297 : vector<2x64xf32>
    %299 = vector.extract_strided_slice %290 {offsets = [0, 128], sizes = [2, 64], strides = [1, 1]} : vector<2x512xf32> to vector<2x64xf32>
    %cst_136 = arith.constant 5.000000e-01 : f32
    %300 = vector.broadcast %cst_136 : f32 to vector<2x64xf32>
    %301 = arith.mulf %300, %299 : vector<2x64xf32>
    %302 = math.tanh %301 : vector<2x64xf32>
    %cst_137 = arith.constant 5.000000e-01 : f32
    %303 = vector.broadcast %cst_137 : f32 to vector<2x64xf32>
    %304 = arith.mulf %303, %302 : vector<2x64xf32>
    %cst_138 = arith.constant 5.000000e-01 : f32
    %305 = vector.broadcast %cst_138 : f32 to vector<2x64xf32>
    %306 = arith.addf %304, %305 : vector<2x64xf32>
    %307 = vector.extract_strided_slice %290 {offsets = [0, 256], sizes = [2, 64], strides = [1, 1]} : vector<2x512xf32> to vector<2x64xf32>
    %308 = math.tanh %307 : vector<2x64xf32>
    %309 = vector.extract_strided_slice %290 {offsets = [0, 384], sizes = [2, 64], strides = [1, 1]} : vector<2x512xf32> to vector<2x64xf32>
    %cst_139 = arith.constant 5.000000e-01 : f32
    %310 = vector.broadcast %cst_139 : f32 to vector<2x64xf32>
    %311 = arith.mulf %310, %309 : vector<2x64xf32>
    %312 = math.tanh %311 : vector<2x64xf32>
    %cst_140 = arith.constant 5.000000e-01 : f32
    %313 = vector.broadcast %cst_140 : f32 to vector<2x64xf32>
    %314 = arith.mulf %313, %312 : vector<2x64xf32>
    %cst_141 = arith.constant 5.000000e-01 : f32
    %315 = vector.broadcast %cst_141 : f32 to vector<2x64xf32>
    %316 = arith.addf %314, %315 : vector<2x64xf32>
    %317 = arith.mulf %306, %229 : vector<2x64xf32>
    %318 = arith.mulf %298, %308 : vector<2x64xf32>
    %319 = arith.addf %317, %318 : vector<2x64xf32>
    %320 = math.tanh %319 : vector<2x64xf32>
    %321 = arith.mulf %316, %320 : vector<2x64xf32>
    %c0_142 = arith.constant 0 : index
    %c0_143 = arith.constant 0 : index
    %322 = vector.load %arg6[%c0_142, %c0_143] : memref<64x512xf32, #tpu.memory_space<vmem>>, vector<64x512xf32>
    %cst_144 = arith.constant dense<0.000000e+00> : vector<2x512xf32>
    %323 = tpu.matmul %321, %322, %cst_144 {dimension_numbers = #tpu.dot_dimension_numbers<[1], [0], [0], [1], [0, 0, 1, 1], [], []>} : vector<2x64xf32>, vector<64x512xf32>, vector<2x512xf32> -> vector<2x512xf32>
    %c0_145 = arith.constant 0 : index
    %c0_146 = arith.constant 0 : index
    %324 = vector.load %arg7[%c0_145, %c0_146] : memref<1x512xf32, #tpu.memory_space<vmem>>, vector<1x512xf32>
    %325 = vector.broadcast %272 : vector<2x1xf32> to vector<2x512xf32>
    %326 = vector.broadcast %324 : vector<1x512xf32> to vector<2x512xf32>
    %327 = arith.mulf %325, %326 : vector<2x512xf32>
    %328 = arith.addf %323, %327 : vector<2x512xf32>
    %c0_147 = arith.constant 0 : index
    %c0_148 = arith.constant 0 : index
    %329 = vector.load %arg8[%c0_147, %c0_148] : memref<1x512xf32, #tpu.memory_space<vmem>>, vector<1x512xf32>
    %330 = vector.broadcast %329 : vector<1x512xf32> to vector<2x512xf32>
    %331 = arith.addf %328, %330 : vector<2x512xf32>
    %332 = vector.extract_strided_slice %331 {offsets = [0, 0], sizes = [2, 1], strides = [1, 1]} : vector<2x512xf32> to vector<2x1xf32>
    %cst_149 = arith.constant 5.000000e-01 : f32
    %333 = vector.broadcast %cst_149 : f32 to vector<2x1xf32>
    %334 = arith.mulf %333, %332 : vector<2x1xf32>
    %335 = math.tanh %334 : vector<2x1xf32>
    %cst_150 = arith.constant 5.000000e-01 : f32
    %336 = vector.broadcast %cst_150 : f32 to vector<2x1xf32>
    %337 = arith.mulf %336, %335 : vector<2x1xf32>
    %cst_151 = arith.constant 5.000000e-01 : f32
    %338 = vector.broadcast %cst_151 : f32 to vector<2x1xf32>
    %339 = arith.addf %337, %338 : vector<2x1xf32>
    %340 = vector.extract_strided_slice %331 {offsets = [0, 128], sizes = [2, 1], strides = [1, 1]} : vector<2x512xf32> to vector<2x1xf32>
    %cst_152 = arith.constant 5.000000e-01 : f32
    %341 = vector.broadcast %cst_152 : f32 to vector<2x1xf32>
    %342 = arith.mulf %341, %340 : vector<2x1xf32>
    %343 = math.tanh %342 : vector<2x1xf32>
    %cst_153 = arith.constant 5.000000e-01 : f32
    %344 = vector.broadcast %cst_153 : f32 to vector<2x1xf32>
    %345 = arith.mulf %344, %343 : vector<2x1xf32>
    %cst_154 = arith.constant 5.000000e-01 : f32
    %346 = vector.broadcast %cst_154 : f32 to vector<2x1xf32>
    %347 = arith.addf %345, %346 : vector<2x1xf32>
    %348 = vector.extract_strided_slice %331 {offsets = [0, 256], sizes = [2, 1], strides = [1, 1]} : vector<2x512xf32> to vector<2x1xf32>
    %349 = math.tanh %348 : vector<2x1xf32>
    %350 = vector.extract_strided_slice %331 {offsets = [0, 384], sizes = [2, 1], strides = [1, 1]} : vector<2x512xf32> to vector<2x1xf32>
    %cst_155 = arith.constant 5.000000e-01 : f32
    %351 = vector.broadcast %cst_155 : f32 to vector<2x1xf32>
    %352 = arith.mulf %351, %350 : vector<2x1xf32>
    %353 = math.tanh %352 : vector<2x1xf32>
    %cst_156 = arith.constant 5.000000e-01 : f32
    %354 = vector.broadcast %cst_156 : f32 to vector<2x1xf32>
    %355 = arith.mulf %354, %353 : vector<2x1xf32>
    %cst_157 = arith.constant 5.000000e-01 : f32
    %356 = vector.broadcast %cst_157 : f32 to vector<2x1xf32>
    %357 = arith.addf %355, %356 : vector<2x1xf32>
    %358 = arith.mulf %347, %270 : vector<2x1xf32>
    %359 = arith.mulf %339, %349 : vector<2x1xf32>
    %360 = arith.addf %358, %359 : vector<2x1xf32>
    %361 = math.tanh %360 : vector<2x1xf32>
    %362 = arith.mulf %357, %361 : vector<2x1xf32>
    %c3_158 = arith.constant 3 : index
    %c0_159 = arith.constant 0 : index
    %c0_160 = arith.constant 0 : index
    %363 = vector.load %arg9[%c3_158, %c0_159, %c0_160] : memref<8x2x1xf32, #tpu.memory_space<vmem>>, vector<1x2x1xf32>
    %364 = vector.shape_cast %363 : vector<1x2x1xf32> to vector<2x1xf32>
    %365 = vector.shape_cast %362 : vector<2x1xf32> to vector<1x2x1xf32>
    tpu.vector_store %arg9[%c3_158, %c0_159, %c0_160], %365 {strides = array<i32>} : memref<8x2x1xf32, #tpu.memory_space<vmem>>, vector<1x2x1xf32>,
    %c4 = arith.constant 4 : index
    %c0_161 = arith.constant 0 : index
    %c0_162 = arith.constant 0 : index
    %366 = vector.load %arg2[%c4, %c0_161, %c0_162] : memref<8x2x1xf32, #tpu.memory_space<vmem>>, vector<1x2x1xf32>
    %367 = vector.shape_cast %366 : vector<1x2x1xf32> to vector<2x1xf32>
    %c4_163 = arith.constant 4 : index
    %368 = memref.load %arg1[%c4_163] : memref<8xi32, #tpu.memory_space<smem>>
    %c0_i32_164 = arith.constant 0 : i32
    %369 = arith.cmpi ne, %368, %c0_i32_164 : i32
    %370 = arith.select %369, %367, %362 : vector<2x1xf32>
    %c0_165 = arith.constant 0 : index
    %c0_166 = arith.constant 0 : index
    %371 = vector.load %arg3[%c0_165, %c0_166] : memref<1x512xf32, #tpu.memory_space<vmem>>, vector<1x512xf32>
    %372 = vector.broadcast %370 : vector<2x1xf32> to vector<2x512xf32>
    %373 = vector.broadcast %371 : vector<1x512xf32> to vector<2x512xf32>
    %374 = arith.mulf %372, %373 : vector<2x512xf32>
    %c0_167 = arith.constant 0 : index
    %c0_168 = arith.constant 0 : index
    %375 = vector.load %arg4[%c0_167, %c0_168] : memref<64x512xf32, #tpu.memory_space<vmem>>, vector<64x512xf32>
    %cst_169 = arith.constant dense<0.000000e+00> : vector<2x512xf32>
    %376 = tpu.matmul %321, %375, %cst_169 {dimension_numbers = #tpu.dot_dimension_numbers<[1], [0], [0], [1], [0, 0, 1, 1], [], []>} : vector<2x64xf32>, vector<64x512xf32>, vector<2x512xf32> -> vector<2x512xf32>
    %377 = arith.addf %374, %376 : vector<2x512xf32>
    %c0_170 = arith.constant 0 : index
    %c0_171 = arith.constant 0 : index
    %378 = vector.load %arg5[%c0_170, %c0_171] : memref<1x512xf32, #tpu.memory_space<vmem>>, vector<1x512xf32>
    %379 = vector.broadcast %378 : vector<1x512xf32> to vector<2x512xf32>
    %380 = arith.addf %377, %379 : vector<2x512xf32>
    %381 = vector.extract_strided_slice %380 {offsets = [0, 0], sizes = [2, 64], strides = [1, 1]} : vector<2x512xf32> to vector<2x64xf32>
    %cst_172 = arith.constant 5.000000e-01 : f32
    %382 = vector.broadcast %cst_172 : f32 to vector<2x64xf32>
    %383 = arith.mulf %382, %381 : vector<2x64xf32>
    %384 = math.tanh %383 : vector<2x64xf32>
    %cst_173 = arith.constant 5.000000e-01 : f32
    %385 = vector.broadcast %cst_173 : f32 to vector<2x64xf32>
    %386 = arith.mulf %385, %384 : vector<2x64xf32>
    %cst_174 = arith.constant 5.000000e-01 : f32
    %387 = vector.broadcast %cst_174 : f32 to vector<2x64xf32>
    %388 = arith.addf %386, %387 : vector<2x64xf32>
    %389 = vector.extract_strided_slice %380 {offsets = [0, 128], sizes = [2, 64], strides = [1, 1]} : vector<2x512xf32> to vector<2x64xf32>
    %cst_175 = arith.constant 5.000000e-01 : f32
    %390 = vector.broadcast %cst_175 : f32 to vector<2x64xf32>
    %391 = arith.mulf %390, %389 : vector<2x64xf32>
    %392 = math.tanh %391 : vector<2x64xf32>
    %cst_176 = arith.constant 5.000000e-01 : f32
    %393 = vector.broadcast %cst_176 : f32 to vector<2x64xf32>
    %394 = arith.mulf %393, %392 : vector<2x64xf32>
    %cst_177 = arith.constant 5.000000e-01 : f32
    %395 = vector.broadcast %cst_177 : f32 to vector<2x64xf32>
    %396 = arith.addf %394, %395 : vector<2x64xf32>
    %397 = vector.extract_strided_slice %380 {offsets = [0, 256], sizes = [2, 64], strides = [1, 1]} : vector<2x512xf32> to vector<2x64xf32>
    %398 = math.tanh %397 : vector<2x64xf32>
    %399 = vector.extract_strided_slice %380 {offsets = [0, 384], sizes = [2, 64], strides = [1, 1]} : vector<2x512xf32> to vector<2x64xf32>
    %cst_178 = arith.constant 5.000000e-01 : f32
    %400 = vector.broadcast %cst_178 : f32 to vector<2x64xf32>
    %401 = arith.mulf %400, %399 : vector<2x64xf32>
    %402 = math.tanh %401 : vector<2x64xf32>
    %cst_179 = arith.constant 5.000000e-01 : f32
    %403 = vector.broadcast %cst_179 : f32 to vector<2x64xf32>
    %404 = arith.mulf %403, %402 : vector<2x64xf32>
    %cst_180 = arith.constant 5.000000e-01 : f32
    %405 = vector.broadcast %cst_180 : f32 to vector<2x64xf32>
    %406 = arith.addf %404, %405 : vector<2x64xf32>
    %407 = arith.mulf %396, %319 : vector<2x64xf32>
    %408 = arith.mulf %388, %398 : vector<2x64xf32>
    %409 = arith.addf %407, %408 : vector<2x64xf32>
    %410 = math.tanh %409 : vector<2x64xf32>
    %411 = arith.mulf %406, %410 : vector<2x64xf32>
    %c0_181 = arith.constant 0 : index
    %c0_182 = arith.constant 0 : index
    %412 = vector.load %arg6[%c0_181, %c0_182] : memref<64x512xf32, #tpu.memory_space<vmem>>, vector<64x512xf32>
    %cst_183 = arith.constant dense<0.000000e+00> : vector<2x512xf32>
    %413 = tpu.matmul %411, %412, %cst_183 {dimension_numbers = #tpu.dot_dimension_numbers<[1], [0], [0], [1], [0, 0, 1, 1], [], []>} : vector<2x64xf32>, vector<64x512xf32>, vector<2x512xf32> -> vector<2x512xf32>
    %c0_184 = arith.constant 0 : index
    %c0_185 = arith.constant 0 : index
    %414 = vector.load %arg7[%c0_184, %c0_185] : memref<1x512xf32, #tpu.memory_space<vmem>>, vector<1x512xf32>
    %415 = vector.broadcast %362 : vector<2x1xf32> to vector<2x512xf32>
    %416 = vector.broadcast %414 : vector<1x512xf32> to vector<2x512xf32>
    %417 = arith.mulf %415, %416 : vector<2x512xf32>
    %418 = arith.addf %413, %417 : vector<2x512xf32>
    %c0_186 = arith.constant 0 : index
    %c0_187 = arith.constant 0 : index
    %419 = vector.load %arg8[%c0_186, %c0_187] : memref<1x512xf32, #tpu.memory_space<vmem>>, vector<1x512xf32>
    %420 = vector.broadcast %419 : vector<1x512xf32> to vector<2x512xf32>
    %421 = arith.addf %418, %420 : vector<2x512xf32>
    %422 = vector.extract_strided_slice %421 {offsets = [0, 0], sizes = [2, 1], strides = [1, 1]} : vector<2x512xf32> to vector<2x1xf32>
    %cst_188 = arith.constant 5.000000e-01 : f32
    %423 = vector.broadcast %cst_188 : f32 to vector<2x1xf32>
    %424 = arith.mulf %423, %422 : vector<2x1xf32>
    %425 = math.tanh %424 : vector<2x1xf32>
    %cst_189 = arith.constant 5.000000e-01 : f32
    %426 = vector.broadcast %cst_189 : f32 to vector<2x1xf32>
    %427 = arith.mulf %426, %425 : vector<2x1xf32>
    %cst_190 = arith.constant 5.000000e-01 : f32
    %428 = vector.broadcast %cst_190 : f32 to vector<2x1xf32>
    %429 = arith.addf %427, %428 : vector<2x1xf32>
    %430 = vector.extract_strided_slice %421 {offsets = [0, 128], sizes = [2, 1], strides = [1, 1]} : vector<2x512xf32> to vector<2x1xf32>
    %cst_191 = arith.constant 5.000000e-01 : f32
    %431 = vector.broadcast %cst_191 : f32 to vector<2x1xf32>
    %432 = arith.mulf %431, %430 : vector<2x1xf32>
    %433 = math.tanh %432 : vector<2x1xf32>
    %cst_192 = arith.constant 5.000000e-01 : f32
    %434 = vector.broadcast %cst_192 : f32 to vector<2x1xf32>
    %435 = arith.mulf %434, %433 : vector<2x1xf32>
    %cst_193 = arith.constant 5.000000e-01 : f32
    %436 = vector.broadcast %cst_193 : f32 to vector<2x1xf32>
    %437 = arith.addf %435, %436 : vector<2x1xf32>
    %438 = vector.extract_strided_slice %421 {offsets = [0, 256], sizes = [2, 1], strides = [1, 1]} : vector<2x512xf32> to vector<2x1xf32>
    %439 = math.tanh %438 : vector<2x1xf32>
    %440 = vector.extract_strided_slice %421 {offsets = [0, 384], sizes = [2, 1], strides = [1, 1]} : vector<2x512xf32> to vector<2x1xf32>
    %cst_194 = arith.constant 5.000000e-01 : f32
    %441 = vector.broadcast %cst_194 : f32 to vector<2x1xf32>
    %442 = arith.mulf %441, %440 : vector<2x1xf32>
    %443 = math.tanh %442 : vector<2x1xf32>
    %cst_195 = arith.constant 5.000000e-01 : f32
    %444 = vector.broadcast %cst_195 : f32 to vector<2x1xf32>
    %445 = arith.mulf %444, %443 : vector<2x1xf32>
    %cst_196 = arith.constant 5.000000e-01 : f32
    %446 = vector.broadcast %cst_196 : f32 to vector<2x1xf32>
    %447 = arith.addf %445, %446 : vector<2x1xf32>
    %448 = arith.mulf %437, %360 : vector<2x1xf32>
    %449 = arith.mulf %429, %439 : vector<2x1xf32>
    %450 = arith.addf %448, %449 : vector<2x1xf32>
    %451 = math.tanh %450 : vector<2x1xf32>
    %452 = arith.mulf %447, %451 : vector<2x1xf32>
    %c4_197 = arith.constant 4 : index
    %c0_198 = arith.constant 0 : index
    %c0_199 = arith.constant 0 : index
    %453 = vector.load %arg9[%c4_197, %c0_198, %c0_199] : memref<8x2x1xf32, #tpu.memory_space<vmem>>, vector<1x2x1xf32>
    %454 = vector.shape_cast %453 : vector<1x2x1xf32> to vector<2x1xf32>
    %455 = vector.shape_cast %452 : vector<2x1xf32> to vector<1x2x1xf32>
    tpu.vector_store %arg9[%c4_197, %c0_198, %c0_199], %455 {strides = array<i32>} : memref<8x2x1xf32, #tpu.memory_space<vmem>>, vector<1x2x1xf32>,
    %c5 = arith.constant 5 : index
    %c0_200 = arith.constant 0 : index
    %c0_201 = arith.constant 0 : index
    %456 = vector.load %arg2[%c5, %c0_200, %c0_201] : memref<8x2x1xf32, #tpu.memory_space<vmem>>, vector<1x2x1xf32>
    %457 = vector.shape_cast %456 : vector<1x2x1xf32> to vector<2x1xf32>
    %c5_202 = arith.constant 5 : index
    %458 = memref.load %arg1[%c5_202] : memref<8xi32, #tpu.memory_space<smem>>
    %c0_i32_203 = arith.constant 0 : i32
    %459 = arith.cmpi ne, %458, %c0_i32_203 : i32
    %460 = arith.select %459, %457, %452 : vector<2x1xf32>
    %c0_204 = arith.constant 0 : index
    %c0_205 = arith.constant 0 : index
    %461 = vector.load %arg3[%c0_204, %c0_205] : memref<1x512xf32, #tpu.memory_space<vmem>>, vector<1x512xf32>
    %462 = vector.broadcast %460 : vector<2x1xf32> to vector<2x512xf32>
    %463 = vector.broadcast %461 : vector<1x512xf32> to vector<2x512xf32>
    %464 = arith.mulf %462, %463 : vector<2x512xf32>
    %c0_206 = arith.constant 0 : index
    %c0_207 = arith.constant 0 : index
    %465 = vector.load %arg4[%c0_206, %c0_207] : memref<64x512xf32, #tpu.memory_space<vmem>>, vector<64x512xf32>
    %cst_208 = arith.constant dense<0.000000e+00> : vector<2x512xf32>
    %466 = tpu.matmul %411, %465, %cst_208 {dimension_numbers = #tpu.dot_dimension_numbers<[1], [0], [0], [1], [0, 0, 1, 1], [], []>} : vector<2x64xf32>, vector<64x512xf32>, vector<2x512xf32> -> vector<2x512xf32>
    %467 = arith.addf %464, %466 : vector<2x512xf32>
    %c0_209 = arith.constant 0 : index
    %c0_210 = arith.constant 0 : index
    %468 = vector.load %arg5[%c0_209, %c0_210] : memref<1x512xf32, #tpu.memory_space<vmem>>, vector<1x512xf32>
    %469 = vector.broadcast %468 : vector<1x512xf32> to vector<2x512xf32>
    %470 = arith.addf %467, %469 : vector<2x512xf32>
    %471 = vector.extract_strided_slice %470 {offsets = [0, 0], sizes = [2, 64], strides = [1, 1]} : vector<2x512xf32> to vector<2x64xf32>
    %cst_211 = arith.constant 5.000000e-01 : f32
    %472 = vector.broadcast %cst_211 : f32 to vector<2x64xf32>
    %473 = arith.mulf %472, %471 : vector<2x64xf32>
    %474 = math.tanh %473 : vector<2x64xf32>
    %cst_212 = arith.constant 5.000000e-01 : f32
    %475 = vector.broadcast %cst_212 : f32 to vector<2x64xf32>
    %476 = arith.mulf %475, %474 : vector<2x64xf32>
    %cst_213 = arith.constant 5.000000e-01 : f32
    %477 = vector.broadcast %cst_213 : f32 to vector<2x64xf32>
    %478 = arith.addf %476, %477 : vector<2x64xf32>
    %479 = vector.extract_strided_slice %470 {offsets = [0, 128], sizes = [2, 64], strides = [1, 1]} : vector<2x512xf32> to vector<2x64xf32>
    %cst_214 = arith.constant 5.000000e-01 : f32
    %480 = vector.broadcast %cst_214 : f32 to vector<2x64xf32>
    %481 = arith.mulf %480, %479 : vector<2x64xf32>
    %482 = math.tanh %481 : vector<2x64xf32>
    %cst_215 = arith.constant 5.000000e-01 : f32
    %483 = vector.broadcast %cst_215 : f32 to vector<2x64xf32>
    %484 = arith.mulf %483, %482 : vector<2x64xf32>
    %cst_216 = arith.constant 5.000000e-01 : f32
    %485 = vector.broadcast %cst_216 : f32 to vector<2x64xf32>
    %486 = arith.addf %484, %485 : vector<2x64xf32>
    %487 = vector.extract_strided_slice %470 {offsets = [0, 256], sizes = [2, 64], strides = [1, 1]} : vector<2x512xf32> to vector<2x64xf32>
    %488 = math.tanh %487 : vector<2x64xf32>
    %489 = vector.extract_strided_slice %470 {offsets = [0, 384], sizes = [2, 64], strides = [1, 1]} : vector<2x512xf32> to vector<2x64xf32>
    %cst_217 = arith.constant 5.000000e-01 : f32
    %490 = vector.broadcast %cst_217 : f32 to vector<2x64xf32>
    %491 = arith.mulf %490, %489 : vector<2x64xf32>
    %492 = math.tanh %491 : vector<2x64xf32>
    %cst_218 = arith.constant 5.000000e-01 : f32
    %493 = vector.broadcast %cst_218 : f32 to vector<2x64xf32>
    %494 = arith.mulf %493, %492 : vector<2x64xf32>
    %cst_219 = arith.constant 5.000000e-01 : f32
    %495 = vector.broadcast %cst_219 : f32 to vector<2x64xf32>
    %496 = arith.addf %494, %495 : vector<2x64xf32>
    %497 = arith.mulf %486, %409 : vector<2x64xf32>
    %498 = arith.mulf %478, %488 : vector<2x64xf32>
    %499 = arith.addf %497, %498 : vector<2x64xf32>
    %500 = math.tanh %499 : vector<2x64xf32>
    %501 = arith.mulf %496, %500 : vector<2x64xf32>
    %c0_220 = arith.constant 0 : index
    %c0_221 = arith.constant 0 : index
    %502 = vector.load %arg6[%c0_220, %c0_221] : memref<64x512xf32, #tpu.memory_space<vmem>>, vector<64x512xf32>
    %cst_222 = arith.constant dense<0.000000e+00> : vector<2x512xf32>
    %503 = tpu.matmul %501, %502, %cst_222 {dimension_numbers = #tpu.dot_dimension_numbers<[1], [0], [0], [1], [0, 0, 1, 1], [], []>} : vector<2x64xf32>, vector<64x512xf32>, vector<2x512xf32> -> vector<2x512xf32>
    %c0_223 = arith.constant 0 : index
    %c0_224 = arith.constant 0 : index
    %504 = vector.load %arg7[%c0_223, %c0_224] : memref<1x512xf32, #tpu.memory_space<vmem>>, vector<1x512xf32>
    %505 = vector.broadcast %452 : vector<2x1xf32> to vector<2x512xf32>
    %506 = vector.broadcast %504 : vector<1x512xf32> to vector<2x512xf32>
    %507 = arith.mulf %505, %506 : vector<2x512xf32>
    %508 = arith.addf %503, %507 : vector<2x512xf32>
    %c0_225 = arith.constant 0 : index
    %c0_226 = arith.constant 0 : index
    %509 = vector.load %arg8[%c0_225, %c0_226] : memref<1x512xf32, #tpu.memory_space<vmem>>, vector<1x512xf32>
    %510 = vector.broadcast %509 : vector<1x512xf32> to vector<2x512xf32>
    %511 = arith.addf %508, %510 : vector<2x512xf32>
    %512 = vector.extract_strided_slice %511 {offsets = [0, 0], sizes = [2, 1], strides = [1, 1]} : vector<2x512xf32> to vector<2x1xf32>
    %cst_227 = arith.constant 5.000000e-01 : f32
    %513 = vector.broadcast %cst_227 : f32 to vector<2x1xf32>
    %514 = arith.mulf %513, %512 : vector<2x1xf32>
    %515 = math.tanh %514 : vector<2x1xf32>
    %cst_228 = arith.constant 5.000000e-01 : f32
    %516 = vector.broadcast %cst_228 : f32 to vector<2x1xf32>
    %517 = arith.mulf %516, %515 : vector<2x1xf32>
    %cst_229 = arith.constant 5.000000e-01 : f32
    %518 = vector.broadcast %cst_229 : f32 to vector<2x1xf32>
    %519 = arith.addf %517, %518 : vector<2x1xf32>
    %520 = vector.extract_strided_slice %511 {offsets = [0, 128], sizes = [2, 1], strides = [1, 1]} : vector<2x512xf32> to vector<2x1xf32>
    %cst_230 = arith.constant 5.000000e-01 : f32
    %521 = vector.broadcast %cst_230 : f32 to vector<2x1xf32>
    %522 = arith.mulf %521, %520 : vector<2x1xf32>
    %523 = math.tanh %522 : vector<2x1xf32>
    %cst_231 = arith.constant 5.000000e-01 : f32
    %524 = vector.broadcast %cst_231 : f32 to vector<2x1xf32>
    %525 = arith.mulf %524, %523 : vector<2x1xf32>
    %cst_232 = arith.constant 5.000000e-01 : f32
    %526 = vector.broadcast %cst_232 : f32 to vector<2x1xf32>
    %527 = arith.addf %525, %526 : vector<2x1xf32>
    %528 = vector.extract_strided_slice %511 {offsets = [0, 256], sizes = [2, 1], strides = [1, 1]} : vector<2x512xf32> to vector<2x1xf32>
    %529 = math.tanh %528 : vector<2x1xf32>
    %530 = vector.extract_strided_slice %511 {offsets = [0, 384], sizes = [2, 1], strides = [1, 1]} : vector<2x512xf32> to vector<2x1xf32>
    %cst_233 = arith.constant 5.000000e-01 : f32
    %531 = vector.broadcast %cst_233 : f32 to vector<2x1xf32>
    %532 = arith.mulf %531, %530 : vector<2x1xf32>
    %533 = math.tanh %532 : vector<2x1xf32>
    %cst_234 = arith.constant 5.000000e-01 : f32
    %534 = vector.broadcast %cst_234 : f32 to vector<2x1xf32>
    %535 = arith.mulf %534, %533 : vector<2x1xf32>
    %cst_235 = arith.constant 5.000000e-01 : f32
    %536 = vector.broadcast %cst_235 : f32 to vector<2x1xf32>
    %537 = arith.addf %535, %536 : vector<2x1xf32>
    %538 = arith.mulf %527, %450 : vector<2x1xf32>
    %539 = arith.mulf %519, %529 : vector<2x1xf32>
    %540 = arith.addf %538, %539 : vector<2x1xf32>
    %541 = math.tanh %540 : vector<2x1xf32>
    %542 = arith.mulf %537, %541 : vector<2x1xf32>
    %c5_236 = arith.constant 5 : index
    %c0_237 = arith.constant 0 : index
    %c0_238 = arith.constant 0 : index
    %543 = vector.load %arg9[%c5_236, %c0_237, %c0_238] : memref<8x2x1xf32, #tpu.memory_space<vmem>>, vector<1x2x1xf32>
    %544 = vector.shape_cast %543 : vector<1x2x1xf32> to vector<2x1xf32>
    %545 = vector.shape_cast %542 : vector<2x1xf32> to vector<1x2x1xf32>
    tpu.vector_store %arg9[%c5_236, %c0_237, %c0_238], %545 {strides = array<i32>} : memref<8x2x1xf32, #tpu.memory_space<vmem>>, vector<1x2x1xf32>,
    %c6 = arith.constant 6 : index
    %c0_239 = arith.constant 0 : index
    %c0_240 = arith.constant 0 : index
    %546 = vector.load %arg2[%c6, %c0_239, %c0_240] : memref<8x2x1xf32, #tpu.memory_space<vmem>>, vector<1x2x1xf32>
    %547 = vector.shape_cast %546 : vector<1x2x1xf32> to vector<2x1xf32>
    %c6_241 = arith.constant 6 : index
    %548 = memref.load %arg1[%c6_241] : memref<8xi32, #tpu.memory_space<smem>>
    %c0_i32_242 = arith.constant 0 : i32
    %549 = arith.cmpi ne, %548, %c0_i32_242 : i32
    %550 = arith.select %549, %547, %542 : vector<2x1xf32>
    %c0_243 = arith.constant 0 : index
    %c0_244 = arith.constant 0 : index
    %551 = vector.load %arg3[%c0_243, %c0_244] : memref<1x512xf32, #tpu.memory_space<vmem>>, vector<1x512xf32>
    %552 = vector.broadcast %550 : vector<2x1xf32> to vector<2x512xf32>
    %553 = vector.broadcast %551 : vector<1x512xf32> to vector<2x512xf32>
    %554 = arith.mulf %552, %553 : vector<2x512xf32>
    %c0_245 = arith.constant 0 : index
    %c0_246 = arith.constant 0 : index
    %555 = vector.load %arg4[%c0_245, %c0_246] : memref<64x512xf32, #tpu.memory_space<vmem>>, vector<64x512xf32>
    %cst_247 = arith.constant dense<0.000000e+00> : vector<2x512xf32>
    %556 = tpu.matmul %501, %555, %cst_247 {dimension_numbers = #tpu.dot_dimension_numbers<[1], [0], [0], [1], [0, 0, 1, 1], [], []>} : vector<2x64xf32>, vector<64x512xf32>, vector<2x512xf32> -> vector<2x512xf32>
    %557 = arith.addf %554, %556 : vector<2x512xf32>
    %c0_248 = arith.constant 0 : index
    %c0_249 = arith.constant 0 : index
    %558 = vector.load %arg5[%c0_248, %c0_249] : memref<1x512xf32, #tpu.memory_space<vmem>>, vector<1x512xf32>
    %559 = vector.broadcast %558 : vector<1x512xf32> to vector<2x512xf32>
    %560 = arith.addf %557, %559 : vector<2x512xf32>
    %561 = vector.extract_strided_slice %560 {offsets = [0, 0], sizes = [2, 64], strides = [1, 1]} : vector<2x512xf32> to vector<2x64xf32>
    %cst_250 = arith.constant 5.000000e-01 : f32
    %562 = vector.broadcast %cst_250 : f32 to vector<2x64xf32>
    %563 = arith.mulf %562, %561 : vector<2x64xf32>
    %564 = math.tanh %563 : vector<2x64xf32>
    %cst_251 = arith.constant 5.000000e-01 : f32
    %565 = vector.broadcast %cst_251 : f32 to vector<2x64xf32>
    %566 = arith.mulf %565, %564 : vector<2x64xf32>
    %cst_252 = arith.constant 5.000000e-01 : f32
    %567 = vector.broadcast %cst_252 : f32 to vector<2x64xf32>
    %568 = arith.addf %566, %567 : vector<2x64xf32>
    %569 = vector.extract_strided_slice %560 {offsets = [0, 128], sizes = [2, 64], strides = [1, 1]} : vector<2x512xf32> to vector<2x64xf32>
    %cst_253 = arith.constant 5.000000e-01 : f32
    %570 = vector.broadcast %cst_253 : f32 to vector<2x64xf32>
    %571 = arith.mulf %570, %569 : vector<2x64xf32>
    %572 = math.tanh %571 : vector<2x64xf32>
    %cst_254 = arith.constant 5.000000e-01 : f32
    %573 = vector.broadcast %cst_254 : f32 to vector<2x64xf32>
    %574 = arith.mulf %573, %572 : vector<2x64xf32>
    %cst_255 = arith.constant 5.000000e-01 : f32
    %575 = vector.broadcast %cst_255 : f32 to vector<2x64xf32>
    %576 = arith.addf %574, %575 : vector<2x64xf32>
    %577 = vector.extract_strided_slice %560 {offsets = [0, 256], sizes = [2, 64], strides = [1, 1]} : vector<2x512xf32> to vector<2x64xf32>
    %578 = math.tanh %577 : vector<2x64xf32>
    %579 = vector.extract_strided_slice %560 {offsets = [0, 384], sizes = [2, 64], strides = [1, 1]} : vector<2x512xf32> to vector<2x64xf32>
    %cst_256 = arith.constant 5.000000e-01 : f32
    %580 = vector.broadcast %cst_256 : f32 to vector<2x64xf32>
    %581 = arith.mulf %580, %579 : vector<2x64xf32>
    %582 = math.tanh %581 : vector<2x64xf32>
    %cst_257 = arith.constant 5.000000e-01 : f32
    %583 = vector.broadcast %cst_257 : f32 to vector<2x64xf32>
    %584 = arith.mulf %583, %582 : vector<2x64xf32>
    %cst_258 = arith.constant 5.000000e-01 : f32
    %585 = vector.broadcast %cst_258 : f32 to vector<2x64xf32>
    %586 = arith.addf %584, %585 : vector<2x64xf32>
    %587 = arith.mulf %576, %499 : vector<2x64xf32>
    %588 = arith.mulf %568, %578 : vector<2x64xf32>
    %589 = arith.addf %587, %588 : vector<2x64xf32>
    %590 = math.tanh %589 : vector<2x64xf32>
    %591 = arith.mulf %586, %590 : vector<2x64xf32>
    %c0_259 = arith.constant 0 : index
    %c0_260 = arith.constant 0 : index
    %592 = vector.load %arg6[%c0_259, %c0_260] : memref<64x512xf32, #tpu.memory_space<vmem>>, vector<64x512xf32>
    %cst_261 = arith.constant dense<0.000000e+00> : vector<2x512xf32>
    %593 = tpu.matmul %591, %592, %cst_261 {dimension_numbers = #tpu.dot_dimension_numbers<[1], [0], [0], [1], [0, 0, 1, 1], [], []>} : vector<2x64xf32>, vector<64x512xf32>, vector<2x512xf32> -> vector<2x512xf32>
    %c0_262 = arith.constant 0 : index
    %c0_263 = arith.constant 0 : index
    %594 = vector.load %arg7[%c0_262, %c0_263] : memref<1x512xf32, #tpu.memory_space<vmem>>, vector<1x512xf32>
    %595 = vector.broadcast %542 : vector<2x1xf32> to vector<2x512xf32>
    %596 = vector.broadcast %594 : vector<1x512xf32> to vector<2x512xf32>
    %597 = arith.mulf %595, %596 : vector<2x512xf32>
    %598 = arith.addf %593, %597 : vector<2x512xf32>
    %c0_264 = arith.constant 0 : index
    %c0_265 = arith.constant 0 : index
    %599 = vector.load %arg8[%c0_264, %c0_265] : memref<1x512xf32, #tpu.memory_space<vmem>>, vector<1x512xf32>
    %600 = vector.broadcast %599 : vector<1x512xf32> to vector<2x512xf32>
    %601 = arith.addf %598, %600 : vector<2x512xf32>
    %602 = vector.extract_strided_slice %601 {offsets = [0, 0], sizes = [2, 1], strides = [1, 1]} : vector<2x512xf32> to vector<2x1xf32>
    %cst_266 = arith.constant 5.000000e-01 : f32
    %603 = vector.broadcast %cst_266 : f32 to vector<2x1xf32>
    %604 = arith.mulf %603, %602 : vector<2x1xf32>
    %605 = math.tanh %604 : vector<2x1xf32>
    %cst_267 = arith.constant 5.000000e-01 : f32
    %606 = vector.broadcast %cst_267 : f32 to vector<2x1xf32>
    %607 = arith.mulf %606, %605 : vector<2x1xf32>
    %cst_268 = arith.constant 5.000000e-01 : f32
    %608 = vector.broadcast %cst_268 : f32 to vector<2x1xf32>
    %609 = arith.addf %607, %608 : vector<2x1xf32>
    %610 = vector.extract_strided_slice %601 {offsets = [0, 128], sizes = [2, 1], strides = [1, 1]} : vector<2x512xf32> to vector<2x1xf32>
    %cst_269 = arith.constant 5.000000e-01 : f32
    %611 = vector.broadcast %cst_269 : f32 to vector<2x1xf32>
    %612 = arith.mulf %611, %610 : vector<2x1xf32>
    %613 = math.tanh %612 : vector<2x1xf32>
    %cst_270 = arith.constant 5.000000e-01 : f32
    %614 = vector.broadcast %cst_270 : f32 to vector<2x1xf32>
    %615 = arith.mulf %614, %613 : vector<2x1xf32>
    %cst_271 = arith.constant 5.000000e-01 : f32
    %616 = vector.broadcast %cst_271 : f32 to vector<2x1xf32>
    %617 = arith.addf %615, %616 : vector<2x1xf32>
    %618 = vector.extract_strided_slice %601 {offsets = [0, 256], sizes = [2, 1], strides = [1, 1]} : vector<2x512xf32> to vector<2x1xf32>
    %619 = math.tanh %618 : vector<2x1xf32>
    %620 = vector.extract_strided_slice %601 {offsets = [0, 384], sizes = [2, 1], strides = [1, 1]} : vector<2x512xf32> to vector<2x1xf32>
    %cst_272 = arith.constant 5.000000e-01 : f32
    %621 = vector.broadcast %cst_272 : f32 to vector<2x1xf32>
    %622 = arith.mulf %621, %620 : vector<2x1xf32>
    %623 = math.tanh %622 : vector<2x1xf32>
    %cst_273 = arith.constant 5.000000e-01 : f32
    %624 = vector.broadcast %cst_273 : f32 to vector<2x1xf32>
    %625 = arith.mulf %624, %623 : vector<2x1xf32>
    %cst_274 = arith.constant 5.000000e-01 : f32
    %626 = vector.broadcast %cst_274 : f32 to vector<2x1xf32>
    %627 = arith.addf %625, %626 : vector<2x1xf32>
    %628 = arith.mulf %617, %540 : vector<2x1xf32>
    %629 = arith.mulf %609, %619 : vector<2x1xf32>
    %630 = arith.addf %628, %629 : vector<2x1xf32>
    %631 = math.tanh %630 : vector<2x1xf32>
    %632 = arith.mulf %627, %631 : vector<2x1xf32>
    %c6_275 = arith.constant 6 : index
    %c0_276 = arith.constant 0 : index
    %c0_277 = arith.constant 0 : index
    %633 = vector.load %arg9[%c6_275, %c0_276, %c0_277] : memref<8x2x1xf32, #tpu.memory_space<vmem>>, vector<1x2x1xf32>
    %634 = vector.shape_cast %633 : vector<1x2x1xf32> to vector<2x1xf32>
    %635 = vector.shape_cast %632 : vector<2x1xf32> to vector<1x2x1xf32>
    tpu.vector_store %arg9[%c6_275, %c0_276, %c0_277], %635 {strides = array<i32>} : memref<8x2x1xf32, #tpu.memory_space<vmem>>, vector<1x2x1xf32>,
    %c7 = arith.constant 7 : index
    %c0_278 = arith.constant 0 : index
    %c0_279 = arith.constant 0 : index
    %636 = vector.load %arg2[%c7, %c0_278, %c0_279] : memref<8x2x1xf32, #tpu.memory_space<vmem>>, vector<1x2x1xf32>
    %637 = vector.shape_cast %636 : vector<1x2x1xf32> to vector<2x1xf32>
    %c7_280 = arith.constant 7 : index
    %638 = memref.load %arg1[%c7_280] : memref<8xi32, #tpu.memory_space<smem>>
    %c0_i32_281 = arith.constant 0 : i32
    %639 = arith.cmpi ne, %638, %c0_i32_281 : i32
    %640 = arith.select %639, %637, %632 : vector<2x1xf32>
    %c0_282 = arith.constant 0 : index
    %c0_283 = arith.constant 0 : index
    %641 = vector.load %arg3[%c0_282, %c0_283] : memref<1x512xf32, #tpu.memory_space<vmem>>, vector<1x512xf32>
    %642 = vector.broadcast %640 : vector<2x1xf32> to vector<2x512xf32>
    %643 = vector.broadcast %641 : vector<1x512xf32> to vector<2x512xf32>
    %644 = arith.mulf %642, %643 : vector<2x512xf32>
    %c0_284 = arith.constant 0 : index
    %c0_285 = arith.constant 0 : index
    %645 = vector.load %arg4[%c0_284, %c0_285] : memref<64x512xf32, #tpu.memory_space<vmem>>, vector<64x512xf32>
    %cst_286 = arith.constant dense<0.000000e+00> : vector<2x512xf32>
    %646 = tpu.matmul %591, %645, %cst_286 {dimension_numbers = #tpu.dot_dimension_numbers<[1], [0], [0], [1], [0, 0, 1, 1], [], []>} : vector<2x64xf32>, vector<64x512xf32>, vector<2x512xf32> -> vector<2x512xf32>
    %647 = arith.addf %644, %646 : vector<2x512xf32>
    %c0_287 = arith.constant 0 : index
    %c0_288 = arith.constant 0 : index
    %648 = vector.load %arg5[%c0_287, %c0_288] : memref<1x512xf32, #tpu.memory_space<vmem>>, vector<1x512xf32>
    %649 = vector.broadcast %648 : vector<1x512xf32> to vector<2x512xf32>
    %650 = arith.addf %647, %649 : vector<2x512xf32>
    %651 = vector.extract_strided_slice %650 {offsets = [0, 0], sizes = [2, 64], strides = [1, 1]} : vector<2x512xf32> to vector<2x64xf32>
    %cst_289 = arith.constant 5.000000e-01 : f32
    %652 = vector.broadcast %cst_289 : f32 to vector<2x64xf32>
    %653 = arith.mulf %652, %651 : vector<2x64xf32>
    %654 = math.tanh %653 : vector<2x64xf32>
    %cst_290 = arith.constant 5.000000e-01 : f32
    %655 = vector.broadcast %cst_290 : f32 to vector<2x64xf32>
    %656 = arith.mulf %655, %654 : vector<2x64xf32>
    %cst_291 = arith.constant 5.000000e-01 : f32
    %657 = vector.broadcast %cst_291 : f32 to vector<2x64xf32>
    %658 = arith.addf %656, %657 : vector<2x64xf32>
    %659 = vector.extract_strided_slice %650 {offsets = [0, 128], sizes = [2, 64], strides = [1, 1]} : vector<2x512xf32> to vector<2x64xf32>
    %cst_292 = arith.constant 5.000000e-01 : f32
    %660 = vector.broadcast %cst_292 : f32 to vector<2x64xf32>
    %661 = arith.mulf %660, %659 : vector<2x64xf32>
    %662 = math.tanh %661 : vector<2x64xf32>
    %cst_293 = arith.constant 5.000000e-01 : f32
    %663 = vector.broadcast %cst_293 : f32 to vector<2x64xf32>
    %664 = arith.mulf %663, %662 : vector<2x64xf32>
    %cst_294 = arith.constant 5.000000e-01 : f32
    %665 = vector.broadcast %cst_294 : f32 to vector<2x64xf32>
    %666 = arith.addf %664, %665 : vector<2x64xf32>
    %667 = vector.extract_strided_slice %650 {offsets = [0, 256], sizes = [2, 64], strides = [1, 1]} : vector<2x512xf32> to vector<2x64xf32>
    %668 = math.tanh %667 : vector<2x64xf32>
    %669 = vector.extract_strided_slice %650 {offsets = [0, 384], sizes = [2, 64], strides = [1, 1]} : vector<2x512xf32> to vector<2x64xf32>
    %cst_295 = arith.constant 5.000000e-01 : f32
    %670 = vector.broadcast %cst_295 : f32 to vector<2x64xf32>
    %671 = arith.mulf %670, %669 : vector<2x64xf32>
    %672 = math.tanh %671 : vector<2x64xf32>
    %cst_296 = arith.constant 5.000000e-01 : f32
    %673 = vector.broadcast %cst_296 : f32 to vector<2x64xf32>
    %674 = arith.mulf %673, %672 : vector<2x64xf32>
    %cst_297 = arith.constant 5.000000e-01 : f32
    %675 = vector.broadcast %cst_297 : f32 to vector<2x64xf32>
    %676 = arith.addf %674, %675 : vector<2x64xf32>
    %677 = arith.mulf %666, %589 : vector<2x64xf32>
    %678 = arith.mulf %658, %668 : vector<2x64xf32>
    %679 = arith.addf %677, %678 : vector<2x64xf32>
    %680 = math.tanh %679 : vector<2x64xf32>
    %681 = arith.mulf %676, %680 : vector<2x64xf32>
    %c0_298 = arith.constant 0 : index
    %c0_299 = arith.constant 0 : index
    %682 = vector.load %arg6[%c0_298, %c0_299] : memref<64x512xf32, #tpu.memory_space<vmem>>, vector<64x512xf32>
    %cst_300 = arith.constant dense<0.000000e+00> : vector<2x512xf32>
    %683 = tpu.matmul %681, %682, %cst_300 {dimension_numbers = #tpu.dot_dimension_numbers<[1], [0], [0], [1], [0, 0, 1, 1], [], []>} : vector<2x64xf32>, vector<64x512xf32>, vector<2x512xf32> -> vector<2x512xf32>
    %c0_301 = arith.constant 0 : index
    %c0_302 = arith.constant 0 : index
    %684 = vector.load %arg7[%c0_301, %c0_302] : memref<1x512xf32, #tpu.memory_space<vmem>>, vector<1x512xf32>
    %685 = vector.broadcast %632 : vector<2x1xf32> to vector<2x512xf32>
    %686 = vector.broadcast %684 : vector<1x512xf32> to vector<2x512xf32>
    %687 = arith.mulf %685, %686 : vector<2x512xf32>
    %688 = arith.addf %683, %687 : vector<2x512xf32>
    %c0_303 = arith.constant 0 : index
    %c0_304 = arith.constant 0 : index
    %689 = vector.load %arg8[%c0_303, %c0_304] : memref<1x512xf32, #tpu.memory_space<vmem>>, vector<1x512xf32>
    %690 = vector.broadcast %689 : vector<1x512xf32> to vector<2x512xf32>
    %691 = arith.addf %688, %690 : vector<2x512xf32>
    %692 = vector.extract_strided_slice %691 {offsets = [0, 0], sizes = [2, 1], strides = [1, 1]} : vector<2x512xf32> to vector<2x1xf32>
    %cst_305 = arith.constant 5.000000e-01 : f32
    %693 = vector.broadcast %cst_305 : f32 to vector<2x1xf32>
    %694 = arith.mulf %693, %692 : vector<2x1xf32>
    %695 = math.tanh %694 : vector<2x1xf32>
    %cst_306 = arith.constant 5.000000e-01 : f32
    %696 = vector.broadcast %cst_306 : f32 to vector<2x1xf32>
    %697 = arith.mulf %696, %695 : vector<2x1xf32>
    %cst_307 = arith.constant 5.000000e-01 : f32
    %698 = vector.broadcast %cst_307 : f32 to vector<2x1xf32>
    %699 = arith.addf %697, %698 : vector<2x1xf32>
    %700 = vector.extract_strided_slice %691 {offsets = [0, 128], sizes = [2, 1], strides = [1, 1]} : vector<2x512xf32> to vector<2x1xf32>
    %cst_308 = arith.constant 5.000000e-01 : f32
    %701 = vector.broadcast %cst_308 : f32 to vector<2x1xf32>
    %702 = arith.mulf %701, %700 : vector<2x1xf32>
    %703 = math.tanh %702 : vector<2x1xf32>
    %cst_309 = arith.constant 5.000000e-01 : f32
    %704 = vector.broadcast %cst_309 : f32 to vector<2x1xf32>
    %705 = arith.mulf %704, %703 : vector<2x1xf32>
    %cst_310 = arith.constant 5.000000e-01 : f32
    %706 = vector.broadcast %cst_310 : f32 to vector<2x1xf32>
    %707 = arith.addf %705, %706 : vector<2x1xf32>
    %708 = vector.extract_strided_slice %691 {offsets = [0, 256], sizes = [2, 1], strides = [1, 1]} : vector<2x512xf32> to vector<2x1xf32>
    %709 = math.tanh %708 : vector<2x1xf32>
    %710 = vector.extract_strided_slice %691 {offsets = [0, 384], sizes = [2, 1], strides = [1, 1]} : vector<2x512xf32> to vector<2x1xf32>
    %cst_311 = arith.constant 5.000000e-01 : f32
    %711 = vector.broadcast %cst_311 : f32 to vector<2x1xf32>
    %712 = arith.mulf %711, %710 : vector<2x1xf32>
    %713 = math.tanh %712 : vector<2x1xf32>
    %cst_312 = arith.constant 5.000000e-01 : f32
    %714 = vector.broadcast %cst_312 : f32 to vector<2x1xf32>
    %715 = arith.mulf %714, %713 : vector<2x1xf32>
    %cst_313 = arith.constant 5.000000e-01 : f32
    %716 = vector.broadcast %cst_313 : f32 to vector<2x1xf32>
    %717 = arith.addf %715, %716 : vector<2x1xf32>
    %718 = arith.mulf %707, %630 : vector<2x1xf32>
    %719 = arith.mulf %699, %709 : vector<2x1xf32>
    %720 = arith.addf %718, %719 : vector<2x1xf32>
    %721 = math.tanh %720 : vector<2x1xf32>
    %722 = arith.mulf %717, %721 : vector<2x1xf32>
    %c7_314 = arith.constant 7 : index
    %c0_315 = arith.constant 0 : index
    %c0_316 = arith.constant 0 : index
    %723 = vector.load %arg9[%c7_314, %c0_315, %c0_316] : memref<8x2x1xf32, #tpu.memory_space<vmem>>, vector<1x2x1xf32>
    %724 = vector.shape_cast %723 : vector<1x2x1xf32> to vector<2x1xf32>
    %725 = vector.shape_cast %722 : vector<2x1xf32> to vector<1x2x1xf32>
    tpu.vector_store %arg9[%c7_314, %c0_315, %c0_316], %725 {strides = array<i32>} : memref<8x2x1xf32, #tpu.memory_space<vmem>>, vector<1x2x1xf32>,
    %c0_317 = arith.constant 0 : index
    %c0_318 = arith.constant 0 : index
    %726 = vector.load %arg10[%c0_317, %c0_318] : memref<2x64xf32, #tpu.memory_space<vmem>>, vector<2x64xf32>
    tpu.vector_store %arg10[%c0_317, %c0_318], %681 {strides = array<i32>} : memref<2x64xf32, #tpu.memory_space<vmem>>, vector<2x64xf32>,
    %c0_319 = arith.constant 0 : index
    %c0_320 = arith.constant 0 : index
    %727 = vector.load %arg11[%c0_319, %c0_320] : memref<2x64xf32, #tpu.memory_space<vmem>>, vector<2x64xf32>
    tpu.vector_store %arg11[%c0_319, %c0_320], %679 {strides = array<i32>} : memref<2x64xf32, #tpu.memory_space<vmem>>, vector<2x64xf32>,
    %c0_321 = arith.constant 0 : index
    %c0_322 = arith.constant 0 : index
    %728 = vector.load %arg12[%c0_321, %c0_322] : memref<2x1xf32, #tpu.memory_space<vmem>>, vector<2x1xf32>
    tpu.vector_store %arg12[%c0_321, %c0_322], %722 {strides = array<i32>} : memref<2x1xf32, #tpu.memory_space<vmem>>, vector<2x1xf32>,
    %c0_323 = arith.constant 0 : index
    %c0_324 = arith.constant 0 : index
    %729 = vector.load %arg13[%c0_323, %c0_324] : memref<2x1xf32, #tpu.memory_space<vmem>>, vector<2x1xf32>
    tpu.vector_store %arg13[%c0_323, %c0_324], %720 {strides = array<i32>} : memref<2x1xf32, #tpu.memory_space<vmem>>, vector<2x1xf32>,
    return
  }
  func.func @transform_0(%arg0: i32, %arg1: memref<8xi32, #tpu.memory_space<smem>>) -> (i32, i32, i32) {
    %c0_i32 = arith.constant 0 : i32
    %c0_i32_0 = arith.constant 0 : i32
    %c0_i32_1 = arith.constant 0 : i32
    %c0_i32_2 = arith.constant 0 : i32
    return %c0_i32, %c0_i32_0, %c0_i32_1 : i32, i32, i32
  }
  func.func @transform_1(%arg0: i32, %arg1: memref<8xi32, #tpu.memory_space<smem>>) -> (i32, i32) {
    %c0_i32 = arith.constant 0 : i32
    %c0_i32_0 = arith.constant 0 : i32
    %c0_i32_1 = arith.constant 0 : i32
    return %c0_i32, %c0_i32_0 : i32, i32
  }
  func.func @transform_2(%arg0: i32, %arg1: memref<8xi32, #tpu.memory_space<smem>>) -> (i32, i32) {
    %c0_i32 = arith.constant 0 : i32
    %c0_i32_0 = arith.constant 0 : i32
    %c0_i32_1 = arith.constant 0 : i32
    return %c0_i32, %c0_i32_0 : i32, i32
  }
  func.func @transform_3(%arg0: i32, %arg1: memref<8xi32, #tpu.memory_space<smem>>) -> (i32, i32) {
    %c0_i32 = arith.constant 0 : i32
    %c0_i32_0 = arith.constant 0 : i32
    %c0_i32_1 = arith.constant 0 : i32
    return %c0_i32, %c0_i32_0 : i32, i32
  }
  func.func @transform_4(%arg0: i32, %arg1: memref<8xi32, #tpu.memory_space<smem>>) -> (i32, i32) {
    %c0_i32 = arith.constant 0 : i32
    %c0_i32_0 = arith.constant 0 : i32
    %c0_i32_1 = arith.constant 0 : i32
    return %c0_i32, %c0_i32_0 : i32, i32
  }
  func.func @transform_5(%arg0: i32, %arg1: memref<8xi32, #tpu.memory_space<smem>>) -> (i32, i32) {
    %c0_i32 = arith.constant 0 : i32
    %c0_i32_0 = arith.constant 0 : i32
    %c0_i32_1 = arith.constant 0 : i32
    return %c0_i32, %c0_i32_0 : i32, i32
  }
  func.func @transform_6(%arg0: i32, %arg1: memref<8xi32, #tpu.memory_space<smem>>) -> (i32, i32) {
    %c0_i32 = arith.constant 0 : i32
    %c0_i32_0 = arith.constant 0 : i32
    %c0_i32_1 = arith.constant 0 : i32
    return %c0_i32, %c0_i32_0 : i32, i32
  }
  func.func @transform_7(%arg0: i32, %arg1: memref<8xi32, #tpu.memory_space<smem>>) -> (i32, i32, i32) {
    %c0_i32 = arith.constant 0 : i32
    %c0_i32_0 = arith.constant 0 : i32
    %c0_i32_1 = arith.constant 0 : i32
    %c0_i32_2 = arith.constant 0 : i32
    return %c0_i32, %c0_i32_0, %c0_i32_1 : i32, i32, i32
  }
  func.func @transform_8(%arg0: i32, %arg1: memref<8xi32, #tpu.memory_space<smem>>) -> (i32, i32) {
    %c0_i32 = arith.constant 0 : i32
    %c0_i32_0 = arith.constant 0 : i32
    %c0_i32_1 = arith.constant 0 : i32
    return %c0_i32, %c0_i32_0 : i32, i32
  }
  func.func @transform_9(%arg0: i32, %arg1: memref<8xi32, #tpu.memory_space<smem>>) -> (i32, i32) {
    %c0_i32 = arith.constant 0 : i32
    %c0_i32_0 = arith.constant 0 : i32
    %c0_i32_1 = arith.constant 0 : i32
    return %c0_i32, %c0_i32_0 : i32, i32
  }
  func.func @transform_10(%arg0: i32, %arg1: memref<8xi32, #tpu.memory_space<smem>>) -> (i32, i32) {
    %c0_i32 = arith.constant 0 : i32
    %c0_i32_0 = arith.constant 0 : i32
    %c0_i32_1 = arith.constant 0 : i32
    return %c0_i32, %c0_i32_0 : i32, i32
  }
  func.func @transform_11(%arg0: i32, %arg1: memref<8xi32, #tpu.memory_space<smem>>) -> (i32, i32) {
    %c0_i32 = arith.constant 0 : i32
    %c0_i32_0 = arith.constant 0 : i32
    %c0_i32_1 = arith.constant 0 : i32
    return %c0_i32, %c0_i32_0 : i32, i32
  }
}

</mosaic_0001>

<llo_original>
// kernel: sequence_forward.1
$region0: #{sequence_forward.1}
  #allocation0 [shape = 'u32[]', space=smem, size = 0x4, offset = 0x4, fixed_abs, tag = 'smem constant byte address 0x4 - core index']
  #allocation1 [shape = 'u32[144,128]{1,0:T(1,128)}', space=vmem, size = 0x12000, scoped, tag = 'internal scratch']
  #allocation2 [shape = 's32[1]{0}', space=sflag, size = 0x4, scoped, tag = 'scoped memory for sequence_forward.1']
  #allocation3 [shape = 'u8[512]{0}', space=smem, size = 0x200, scoped, tag = 'prefetched SMEM operand 0']
  %s0 = inlined_call_operand.vmem [shape: s32[8], index: 0, kind: input, shape index: {}]
  %s1 = inlined_call_operand.vmem [shape: f32[8,2,1], index: 1, kind: input, shape index: {}]
  %s2 = inlined_call_operand.vmem [shape: f32[1,512], index: 2, kind: input, shape index: {}]
  %s3 = inlined_call_operand.hbm [shape: f32[64,512], index: 3, kind: input, shape index: {}]
  %s4 = inlined_call_operand.vmem [shape: f32[1,512], index: 4, kind: input, shape index: {}]
  %s5 = inlined_call_operand.hbm [shape: f32[64,512], index: 5, kind: input, shape index: {}]
  %s6 = inlined_call_operand.vmem [shape: f32[1,512], index: 6, kind: input, shape index: {}]
  %s7 = inlined_call_operand.vmem [shape: f32[1,512], index: 7, kind: input, shape index: {}]
  %s8 = inlined_call_operand.vmem [shape: f32[8,2,1], index: 8, kind: output, shape index: {0}]
  %s9 = inlined_call_operand.hbm [shape: f32[2,64], index: 9, kind: output, shape index: {1}]
  %s10 = inlined_call_operand.hbm [shape: f32[2,64], index: 10, kind: output, shape index: {2}]
  %s11 = inlined_call_operand.vmem [shape: f32[2,1], index: 11, kind: output, shape index: {3}]
  %s12 = inlined_call_operand.vmem [shape: f32[2,1], index: 12, kind: output, shape index: {4}]
  %13 = xla_tuple %s8, %s9, %s10, %s11, %s12
  %s14 = sld [smem:[#allocation0]]
  $region78: #{sequence_forward.1} parent=0
    _
  %s16 = ssub.s32 1, %s14
  %s17 = scalar_select 0, %s16, %s14
  %s18 = sshll.u32 %s0, 4
  %s19 = int_to_ptr.vmem [resolvable:$true] %s18
  %21 = dma.vmem_to_smem %s19, 16, [#allocation3], [#allocation2]
  %22 = dma.done [#allocation2], 16
  %23 = sfence
  $region1: #{sequence_forward.1} parent=0
    #allocation4 [shape = 'u8[131072]{0}', space=vmem, size = 0x20000, scoped, tag = 'input window, operand 3, single buffered']
    #allocation5 [shape = 's32[1]{0}', space=sflag, size = 0x4, scoped, tag = 'scoped memory for sequence_forward.1']
    #allocation6 [shape = 's32[1]{0}', space=sflag, size = 0x4, scoped, tag = 'scoped memory for sequence_forward.1']
    #allocation7 [shape = 'u8[131072]{0}', space=vmem, size = 0x20000, scoped, tag = 'input window, operand 5, single buffered']
    #allocation8 [shape = 's32[1]{0}', space=sflag, size = 0x4, scoped, tag = 'scoped memory for sequence_forward.1']
    #allocation9 [shape = 'u8[1024]{0}', space=vmem, size = 0x400, scoped, tag = 'output window, operand 1, single buffered']
    #allocation10 [shape = 'u8[1024]{0}', space=vmem, size = 0x400, scoped, tag = 'output window, operand 2, single buffered']
    #allocation11 [shape = 's32[1]{0}', space=sflag, size = 0x4, scoped, tag = 'scoped memory for sequence_forward.1']
    %24 = vsyncpa [#allocation5], 0
    %25 = vsyncpa [#allocation8], 0
    %26 = vsyncpa [#allocation6], 0
    %27 = vsyncpa [#allocation11], 0
    // Predicated region
    $region2: #{sequence_forward.1} parent=1 // pred_check
      _
    $region3: #{sequence_forward.1} parent=1 // pred_check_branch
      %29 = sbr.rel (0) target = $region5
    $region4: #{sequence_forward.1} parent=1 // pred_region
      _
    $region5: #{sequence_forward.1} parent=1 // pred_fallthru
      _
    // Predicated region
    $region6: #{sequence_forward.1} parent=1 // pred_check
      _
    $region7: #{sequence_forward.1} parent=1 // pred_check_branch
      %31 = sbr.rel (0) target = $region9
    $region8: #{sequence_forward.1} parent=1 // pred_region
      _
    $region9: #{sequence_forward.1} parent=1 // pred_fallthru
      _
    // Predicated region
    $region10: #{sequence_forward.1} parent=1 // pred_check
      _
    $region11: #{sequence_forward.1} parent=1 // pred_check_branch
      %33 = sbr.rel (0) target = $region13
    $region12: #{sequence_forward.1} parent=1 // pred_region
      %s35 = ssub.s32 4096, 4096
      %36 = vsyncadd [#allocation5], %s35
      %s37 = sshll.u32 [#allocation4], 4
      %s38 = int_to_ptr.vmem [resolvable:$true] %s37
      %43 = dma.hbm_to_vmem [thread:$0]  %s3, 4096, %s38, [#allocation5], 512, 512, 32
    $region13: #{sequence_forward.1} parent=1 // pred_fallthru
      _
    // Predicated region
    $region14: #{sequence_forward.1} parent=1 // pred_check
      _
    $region15: #{sequence_forward.1} parent=1 // pred_check_branch
      %45 = sbr.rel (0) target = $region17
    $region16: #{sequence_forward.1} parent=1 // pred_region
      _
    $region17: #{sequence_forward.1} parent=1 // pred_fallthru
      _
    // Predicated region
    $region18: #{sequence_forward.1} parent=1 // pred_check
      _
    $region19: #{sequence_forward.1} parent=1 // pred_check_branch
      %47 = sbr.rel (0) target = $region21
    $region20: #{sequence_forward.1} parent=1 // pred_region
      %s49 = ssub.s32 4096, 4096
      %50 = vsyncadd [#allocation8], %s49
      %s51 = sshll.u32 [#allocation7], 4
      %s52 = int_to_ptr.vmem [resolvable:$true] %s51
      %57 = dma.hbm_to_vmem [thread:$0]  %s5, 4096, %s52, [#allocation8], 512, 512, 32
    $region21: #{sequence_forward.1} parent=1 // pred_fallthru
      _
    // Predicated region
    $region22: #{sequence_forward.1} parent=1 // pred_check
      _
    $region23: #{sequence_forward.1} parent=1 // pred_check_branch
      %59 = sbr.rel (0) target = $region25
    $region24: #{sequence_forward.1} parent=1 // pred_region
      _
    $region25: #{sequence_forward.1} parent=1 // pred_fallthru
      _
    // Predicated region
    $region26: #{sequence_forward.1} parent=1 // pred_check
      _
    $region27: #{sequence_forward.1} parent=1 // pred_check_branch
      %61 = sbr.rel (0) target = $region29
    $region28: #{sequence_forward.1} parent=1 // pred_region
      _
    $region29: #{sequence_forward.1} parent=1 // pred_fallthru
      _
    // Predicated region
    $region30: #{sequence_forward.1} parent=1 // pred_check
      _
    $region31: #{sequence_forward.1} parent=1 // pred_check_branch
      %63 = sbr.rel (0) target = $region33
    $region32: #{sequence_forward.1} parent=1 // pred_region
      %64 = dma.done [#allocation5], 4096
    $region33: #{sequence_forward.1} parent=1 // pred_fallthru
      _
    // Predicated region
    $region34: #{sequence_forward.1} parent=1 // pred_check
      _
    $region35: #{sequence_forward.1} parent=1 // pred_check_branch
      %66 = sbr.rel (0) target = $region37
    $region36: #{sequence_forward.1} parent=1 // pred_region
      %67 = dma.done [#allocation8], 4096
    $region37: #{sequence_forward.1} parent=1 // pred_fallthru
      _
    %v68 = vld [vmem:[%s1] sm:$0x3]
    %v69 = vld [vmem:[%s2] sm:$0xf]
    %71 = vset.pattern.permute.xlu0 0
    %72 = vperm.xlu0 %71, %v68
    %v73 = vpop.permute.xlu0 %72
    %v76 = vlaneseq
    %v77 = vshrl.u32 %v76, 7
    %v78 = vsub.s32 0, %v77
    %v79 = vrot.slane %v69, %v78
    %v80 = vlaneseq
    %v81 = vshrl.u32 %v80, 7
    %v82 = vsub.s32 1, %v81
    %v83 = vrot.slane %v69, %v82
    %v84 = vlaneseq
    %v85 = vshrl.u32 %v84, 7
    %v86 = vsub.s32 2, %v85
    %v87 = vrot.slane %v69, %v86
    %v88 = vlaneseq
    %v89 = vshrl.u32 %v88, 7
    %v90 = vsub.s32 3, %v89
    %v91 = vrot.slane %v69, %v90
    %v96 = vmul.f32 %v73, %v79
    %v97 = vmul.f32 %v73, %v83
    %v98 = vmul.f32 %v73, %v87
    %v99 = vmul.f32 %v73, %v91
    %v100 = vld [vmem:[#allocation4] sm:$0xff]
    %v101 = vld [vmem:[#allocation4 + $0x8] sm:$0xff]
    %v102 = vld [vmem:[#allocation4 + $0x10] sm:$0xff]
    %v103 = vld [vmem:[#allocation4 + $0x18] sm:$0xff]
    %v104 = vld [vmem:[#allocation4 + $0x20] sm:$0xff]
    %v105 = vld [vmem:[#allocation4 + $0x28] sm:$0xff]
    %v106 = vld [vmem:[#allocation4 + $0x30] sm:$0xff]
    %v107 = vld [vmem:[#allocation4 + $0x38] sm:$0xff]
    %v108 = vld [vmem:[#allocation4 + $0x40] sm:$0xff]
    %v109 = vld [vmem:[#allocation4 + $0x48] sm:$0xff]
    %v110 = vld [vmem:[#allocation4 + $0x50] sm:$0xff]
    %v111 = vld [vmem:[#allocation4 + $0x58] sm:$0xff]
    %v112 = vld [vmem:[#allocation4 + $0x60] sm:$0xff]
    %v113 = vld [vmem:[#allocation4 + $0x68] sm:$0xff]
    %v114 = vld [vmem:[#allocation4 + $0x70] sm:$0xff]
    %v115 = vld [vmem:[#allocation4 + $0x78] sm:$0xff]
    %v116 = vld [vmem:[#allocation4 + $0x80] sm:$0xff]
    %v117 = vld [vmem:[#allocation4 + $0x88] sm:$0xff]
    %v118 = vld [vmem:[#allocation4 + $0x90] sm:$0xff]
    %v119 = vld [vmem:[#allocation4 + $0x98] sm:$0xff]
    %v120 = vld [vmem:[#allocation4 + $0xa0] sm:$0xff]
    %v121 = vld [vmem:[#allocation4 + $0xa8] sm:$0xff]
    %v122 = vld [vmem:[#allocation4 + $0xb0] sm:$0xff]
    %v123 = vld [vmem:[#allocation4 + $0xb8] sm:$0xff]
    %v124 = vld [vmem:[#allocation4 + $0xc0] sm:$0xff]
    %v125 = vld [vmem:[#allocation4 + $0xc8] sm:$0xff]
    %v126 = vld [vmem:[#allocation4 + $0xd0] sm:$0xff]
    %v127 = vld [vmem:[#allocation4 + $0xd8] sm:$0xff]
    %v128 = vld [vmem:[#allocation4 + $0xe0] sm:$0xff]
    %v129 = vld [vmem:[#allocation4 + $0xe8] sm:$0xff]
    %v130 = vld [vmem:[#allocation4 + $0xf0] sm:$0xff]
    %v131 = vld [vmem:[#allocation4 + $0xf8] sm:$0xff]
    %vm132 = vcmask 523264
    %v134 = vsel %vm132, 0.0, 0
    %136 = vmatprep.subr.mxu0 %v101
    %137 = vmatpush1.msra.mxu0 %v100
    %138 = vmatprep.subr.mxu0 %v105
    %139 = vmatpush1.msra.mxu0 %v104
    %140 = vmatprep.subr.mxu0 %v109
    %141 = vmatpush1.msra.mxu0 %v108
    %142 = vmatprep.subr.mxu0 %v113
    %143 = vmatpush1.msra.mxu0 %v112
    %144 = vmatprep.subr.mxu0 %v117
    %145 = vmatpush1.msra.mxu0 %v116
    %146 = vmatprep.subr.mxu0 %v121
    %147 = vmatpush1.msra.mxu0 %v120
    %148 = vmatprep.subr.mxu0 %v125
    %149 = vmatpush1.msra.mxu0 %v124
    %150 = vmatprep.subr.mxu0 %v129
    %151 = vmatpush1.msra.mxu0 %v128
    %152 = vmatprep.subr.mxu0 0.0
    %153 = vmatpush1.msra.mxu0 0.0
    %154 = vmatprep.subr.mxu0 0.0
    %155 = vmatpush1.msra.mxu0 0.0
    %156 = vmatprep.subr.mxu0 0.0
    %157 = vmatpush1.msra.mxu0 0.0
    %158 = vmatprep.subr.mxu0 0.0
    %159 = vmatpush1.msra.mxu0 0.0
    %160 = vmatprep.subr.mxu0 0.0
    %161 = vmatpush1.msra.mxu0 0.0
    %162 = vmatprep.subr.mxu0 0.0
    %163 = vmatpush1.msra.mxu0 0.0
    %164 = vmatprep.subr.mxu0 0.0
    %165 = vmatpush1.msra.mxu0 0.0
    %166 = vmatprep.subr.mxu0 0.0
    %167 = vmatpush1.msra.mxu0 0.0
    %168 = vmatprep.subr.mxu0 0.0
    %169 = vmatpush1.msra.mxu0 0.0
    %170 = vmatprep.subr.mxu0 0.0
    %171 = vmatpush1.msra.mxu0 0.0
    %172 = vmatprep.subr.mxu0 0.0
    %173 = vmatpush1.msra.mxu0 0.0
    %174 = vmatprep.subr.mxu0 0.0
    %175 = vmatpush1.msra.mxu0 0.0
    %176 = vmatprep.subr.mxu0 0.0
    %177 = vmatpush1.msra.mxu0 0.0
    %178 = vmatprep.subr.mxu0 0.0
    %179 = vmatpush1.msra.mxu0 0.0
    %180 = vmatprep.subr.mxu0 0.0
    %181 = vmatpush1.msra.mxu0 0.0
    %182 = vmatprep.subr.mxu0 0.0
    %183 = vmatpush1.msra.mxu0 0.0
    %184 = vmatprep.subr.mxu0 0.0
    %185 = vmatpush1.msra.mxu0 0.0
    %186 = vmatprep.subr.mxu0 0.0
    %187 = vmatpush1.msra.mxu0 0.0
    %188 = vmatprep.subr.mxu0 0.0
    %189 = vmatpush1.msra.mxu0 0.0
    %190 = vmatprep.subr.mxu0 0.0
    %191 = vmatpush1.msra.mxu0 0.0
    %192 = vmatprep.subr.mxu0 0.0
    %193 = vmatpush1.msra.mxu0 0.0
    %194 = vmatprep.subr.mxu0 0.0
    %195 = vmatpush1.msra.mxu0 0.0
    %196 = vmatprep.subr.mxu0 0.0
    %197 = vmatpush1.msra.mxu0 0.0
    %198 = vmatprep.subr.mxu0 0.0
    %199 = vmatpush1.msra.mxu0 0.0
    %200 = vmatprep.mubr.f32.mxu0 0.0
    %201 = vmatmul.mubr.f32.gmra.mrb[0].mxu0 %v134
    %v202 = vpop.f32.mrb[0].mxu0
    %v203 = vadd.f32 0.0, %v202
    %v204 = vpop.f32.mrb[0].mxu0
    %v205 = vadd.f32 0.0, %v204
    %206 = vdwg.mxu0
    %207 = vmatprep.subr.mxu0 %v103
    %208 = vmatpush1.msra.mxu0 %v102
    %209 = vmatprep.subr.mxu0 %v107
    %210 = vmatpush1.msra.mxu0 %v106
    %211 = vmatprep.subr.mxu0 %v111
    %212 = vmatpush1.msra.mxu0 %v110
    %213 = vmatprep.subr.mxu0 %v115
    %214 = vmatpush1.msra.mxu0 %v114
    %215 = vmatprep.subr.mxu0 %v119
    %216 = vmatpush1.msra.mxu0 %v118
    %217 = vmatprep.subr.mxu0 %v123
    %218 = vmatpush1.msra.mxu0 %v122
    %219 = vmatprep.subr.mxu0 %v127
    %220 = vmatpush1.msra.mxu0 %v126
    %221 = vmatprep.subr.mxu0 %v131
    %222 = vmatpush1.msra.mxu0 %v130
    %223 = vmatprep.subr.mxu0 0.0
    %224 = vmatpush1.msra.mxu0 0.0
    %225 = vmatprep.subr.mxu0 0.0
    %226 = vmatpush1.msra.mxu0 0.0
    %227 = vmatprep.subr.mxu0 0.0
    %228 = vmatpush1.msra.mxu0 0.0
    %229 = vmatprep.subr.mxu0 0.0
    %230 = vmatpush1.msra.mxu0 0.0
    %231 = vmatprep.subr.mxu0 0.0
    %232 = vmatpush1.msra.mxu0 0.0
    %233 = vmatprep.subr.mxu0 0.0
    %234 = vmatpush1.msra.mxu0 0.0
    %235 = vmatprep.subr.mxu0 0.0
    %236 = vmatpush1.msra.mxu0 0.0
    %237 = vmatprep.subr.mxu0 0.0
    %238 = vmatpush1.msra.mxu0 0.0
    %239 = vmatprep.subr.mxu0 0.0
    %240 = vmatpush1.msra.mxu0 0.0
    %241 = vmatprep.subr.mxu0 0.0
    %242 = vmatpush1.msra.mxu0 0.0
    %243 = vmatprep.subr.mxu0 0.0
    %244 = vmatpush1.msra.mxu0 0.0
    %245 = vmatprep.subr.mxu0 0.0
    %246 = vmatpush1.msra.mxu0 0.0
    %247 = vmatprep.subr.mxu0 0.0
    %248 = vmatpush1.msra.mxu0 0.0
    %249 = vmatprep.subr.mxu0 0.0
    %250 = vmatpush1.msra.mxu0 0.0
    %251 = vmatprep.subr.mxu0 0.0
    %252 = vmatpush1.msra.mxu0 0.0
    %253 = vmatprep.subr.mxu0 0.0
    %254 = vmatpush1.msra.mxu0 0.0
    %255 = vmatprep.subr.mxu0 0.0
    %256 = vmatpush1.msra.mxu0 0.0
    %257 = vmatprep.subr.mxu0 0.0
    %258 = vmatpush1.msra.mxu0 0.0
    %259 = vmatprep.subr.mxu0 0.0
    %260 = vmatpush1.msra.mxu0 0.0
    %261 = vmatprep.subr.mxu0 0.0
    %262 = vmatpush1.msra.mxu0 0.0
    %263 = vmatprep.subr.mxu0 0.0
    %264 = vmatpush1.msra.mxu0 0.0
    %265 = vmatprep.subr.mxu0 0.0
    %266 = vmatpush1.msra.mxu0 0.0
    %267 = vmatprep.subr.mxu0 0.0
    %268 = vmatpush1.msra.mxu0 0.0
    %269 = vmatprep.subr.mxu0 0.0
    %270 = vmatpush1.msra.mxu0 0.0
    %271 = vmatprep.mubr.f32.mxu0 0.0
    %272 = vmatmul.mubr.f32.gmra.mrb[0].mxu0 %v134
    %v273 = vpop.f32.mrb[0].mxu0
    %v274 = vadd.f32 0.0, %v273
    %v275 = vpop.f32.mrb[0].mxu0
    %v276 = vadd.f32 0.0, %v275
    %277 = vdwg.mxu0
    %v278 = vadd.f32 %v96, %v203
    %v279 = vadd.f32 %v97, %v205
    %v280 = vadd.f32 %v98, %v274
    %v281 = vadd.f32 %v99, %v276
    %v282 = vld [vmem:[%s4] sm:$0xf]
    %v284 = vlaneseq
    %v285 = vshrl.u32 %v284, 7
    %v286 = vsub.s32 0, %v285
    %v287 = vrot.slane %v282, %v286
    %v288 = vlaneseq
    %v289 = vshrl.u32 %v288, 7
    %v290 = vsub.s32 1, %v289
    %v291 = vrot.slane %v282, %v290
    %v292 = vlaneseq
    %v293 = vshrl.u32 %v292, 7
    %v294 = vsub.s32 2, %v293
    %v295 = vrot.slane %v282, %v294
    %v296 = vlaneseq
    %v297 = vshrl.u32 %v296, 7
    %v298 = vsub.s32 3, %v297
    %v299 = vrot.slane %v282, %v298
    %v304 = vadd.f32 %v278, %v287
    %v305 = vadd.f32 %v279, %v291
    %v306 = vadd.f32 %v280, %v295
    %v307 = vadd.f32 %v281, %v299
    %v308 = vmul.f32 %v304, 0.5
    %v309 = vtanh.pop %v308
    %v310 = vmul.f32 %v309, 0.5
    %v311 = vadd.f32 %v310, 0.5
    %v312 = vmul.f32 %v305, 0.5
    %v313 = vtanh.pop %v312
    %v314 = vmul.f32 %v313, 0.5
    %v315 = vadd.f32 %v314, 0.5
    %v316 = vtanh.pop %v306
    %v317 = vmul.f32 %v307, 0.5
    %v318 = vtanh.pop %v317
    %v319 = vmul.f32 %v318, 0.5
    %v320 = vadd.f32 %v319, 0.5
    %v321 = vmul.f32 %v315, 0.0
    %v322 = vmul.f32 %v311, %v316
    %v323 = vadd.f32 %v321, %v322
    %v324 = vtanh.pop %v323
    %v325 = vmul.f32 %v320, %v324
    %v326 = vld [vmem:[#allocation7] sm:$0xff]
    %v327 = vld [vmem:[#allocation7 + $0x8] sm:$0xff]
    %v328 = vld [vmem:[#allocation7 + $0x10] sm:$0xff]
    %v329 = vld [vmem:[#allocation7 + $0x18] sm:$0xff]
    %v330 = vld [vmem:[#allocation7 + $0x20] sm:$0xff]
    %v331 = vld [vmem:[#allocation7 + $0x28] sm:$0xff]
    %v332 = vld [vmem:[#allocation7 + $0x30] sm:$0xff]
    %v333 = vld [vmem:[#allocation7 + $0x38] sm:$0xff]
    %v334 = vld [vmem:[#allocation7 + $0x40] sm:$0xff]
    %v335 = vld [vmem:[#allocation7 + $0x48] sm:$0xff]
    %v336 = vld [vmem:[#allocation7 + $0x50] sm:$0xff]
    %v337 = vld [vmem:[#allocation7 + $0x58] sm:$0xff]
    %v338 = vld [vmem:[#allocation7 + $0x60] sm:$0xff]
    %v339 = vld [vmem:[#allocation7 + $0x68] sm:$0xff]
    %v340 = vld [vmem:[#allocation7 + $0x70] sm:$0xff]
    %v341 = vld [vmem:[#allocation7 + $0x78] sm:$0xff]
    %v342 = vld [vmem:[#allocation7 + $0x80] sm:$0xff]
    %v343 = vld [vmem:[#allocation7 + $0x88] sm:$0xff]
    %v344 = vld [vmem:[#allocation7 + $0x90] sm:$0xff]
    %v345 = vld [vmem:[#allocation7 + $0x98] sm:$0xff]
    %v346 = vld [vmem:[#allocation7 + $0xa0] sm:$0xff]
    %v347 = vld [vmem:[#allocation7 + $0xa8] sm:$0xff]
    %v348 = vld [vmem:[#allocation7 + $0xb0] sm:$0xff]
    %v349 = vld [vmem:[#allocation7 + $0xb8] sm:$0xff]
    %v350 = vld [vmem:[#allocation7 + $0xc0] sm:$0xff]
    %v351 = vld [vmem:[#allocation7 + $0xc8] sm:$0xff]
    %v352 = vld [vmem:[#allocation7 + $0xd0] sm:$0xff]
    %v353 = vld [vmem:[#allocation7 + $0xd8] sm:$0xff]
    %v354 = vld [vmem:[#allocation7 + $0xe0] sm:$0xff]
    %v355 = vld [vmem:[#allocation7 + $0xe8] sm:$0xff]
    %v356 = vld [vmem:[#allocation7 + $0xf0] sm:$0xff]
    %v357 = vld [vmem:[#allocation7 + $0xf8] sm:$0xff]
    %v358 = vld [vmem:[%s6] sm:$0xf]
    %v360 = vlaneseq
    %v361 = vshrl.u32 %v360, 7
    %v362 = vsub.s32 0, %v361
    %v363 = vrot.slane %v358, %v362
    %v364 = vlaneseq
    %v365 = vshrl.u32 %v364, 7
    %v366 = vsub.s32 1, %v365
    %v367 = vrot.slane %v358, %v366
    %v368 = vlaneseq
    %v369 = vshrl.u32 %v368, 7
    %v370 = vsub.s32 2, %v369
    %v371 = vrot.slane %v358, %v370
    %v372 = vlaneseq
    %v373 = vshrl.u32 %v372, 7
    %v374 = vsub.s32 3, %v373
    %v375 = vrot.slane %v358, %v374
    %v380 = vmul.f32 %v363, 0.0
    %v381 = vmul.f32 %v367, 0.0
    %v382 = vmul.f32 %v371, 0.0
    %v383 = vmul.f32 %v375, 0.0
    %v385 = vsel %vm132, %v325, 0
    %387 = vmatprep.subr.mxu0 %v327
    %388 = vmatpush1.msra.mxu0 %v326
    %389 = vmatprep.subr.mxu0 %v331
    %390 = vmatpush1.msra.mxu0 %v330
    %391 = vmatprep.subr.mxu0 %v335
    %392 = vmatpush1.msra.mxu0 %v334
    %393 = vmatprep.subr.mxu0 %v339
    %394 = vmatpush1.msra.mxu0 %v338
    %395 = vmatprep.subr.mxu0 %v343
    %396 = vmatpush1.msra.mxu0 %v342
    %397 = vmatprep.subr.mxu0 %v347
    %398 = vmatpush1.msra.mxu0 %v346
    %399 = vmatprep.subr.mxu0 %v351
    %400 = vmatpush1.msra.mxu0 %v350
    %401 = vmatprep.subr.mxu0 %v355
    %402 = vmatpush1.msra.mxu0 %v354
    %403 = vmatprep.subr.mxu0 0.0
    %404 = vmatpush1.msra.mxu0 0.0
    %405 = vmatprep.subr.mxu0 0.0
    %406 = vmatpush1.msra.mxu0 0.0
    %407 = vmatprep.subr.mxu0 0.0
    %408 = vmatpush1.msra.mxu0 0.0
    %409 = vmatprep.subr.mxu0 0.0
    %410 = vmatpush1.msra.mxu0 0.0
    %411 = vmatprep.subr.mxu0 0.0
    %412 = vmatpush1.msra.mxu0 0.0
    %413 = vmatprep.subr.mxu0 0.0
    %414 = vmatpush1.msra.mxu0 0.0
    %415 = vmatprep.subr.mxu0 0.0
    %416 = vmatpush1.msra.mxu0 0.0
    %417 = vmatprep.subr.mxu0 0.0
    %418 = vmatpush1.msra.mxu0 0.0
    %419 = vmatprep.subr.mxu0 0.0
    %420 = vmatpush1.msra.mxu0 0.0
    %421 = vmatprep.subr.mxu0 0.0
    %422 = vmatpush1.msra.mxu0 0.0
    %423 = vmatprep.subr.mxu0 0.0
    %424 = vmatpush1.msra.mxu0 0.0
    %425 = vmatprep.subr.mxu0 0.0
    %426 = vmatpush1.msra.mxu0 0.0
    %427 = vmatprep.subr.mxu0 0.0
    %428 = vmatpush1.msra.mxu0 0.0
    %429 = vmatprep.subr.mxu0 0.0
    %430 = vmatpush1.msra.mxu0 0.0
    %431 = vmatprep.subr.mxu0 0.0
    %432 = vmatpush1.msra.mxu0 0.0
    %433 = vmatprep.subr.mxu0 0.0
    %434 = vmatpush1.msra.mxu0 0.0
    %435 = vmatprep.subr.mxu0 0.0
    %436 = vmatpush1.msra.mxu0 0.0
    %437 = vmatprep.subr.mxu0 0.0
    %438 = vmatpush1.msra.mxu0 0.0
    %439 = vmatprep.subr.mxu0 0.0
    %440 = vmatpush1.msra.mxu0 0.0
    %441 = vmatprep.subr.mxu0 0.0
    %442 = vmatpush1.msra.mxu0 0.0
    %443 = vmatprep.subr.mxu0 0.0
    %444 = vmatpush1.msra.mxu0 0.0
    %445 = vmatprep.subr.mxu0 0.0
    %446 = vmatpush1.msra.mxu0 0.0
    %447 = vmatprep.subr.mxu0 0.0
    %448 = vmatpush1.msra.mxu0 0.0
    %449 = vmatprep.subr.mxu0 0.0
    %450 = vmatpush1.msra.mxu0 0.0
    %451 = vmatprep.mubr.f32.mxu0 0.0
    %452 = vmatmul.mubr.f32.gmra.mrb[0].mxu0 %v385
    %v453 = vpop.f32.mrb[0].mxu0
    %v454 = vadd.f32 %v380, %v453
    %v455 = vpop.f32.mrb[0].mxu0
    %v456 = vadd.f32 %v381, %v455
    %457 = vdwg.mxu0
    %458 = vmatprep.subr.mxu0 %v329
    %459 = vmatpush1.msra.mxu0 %v328
    %460 = vmatprep.subr.mxu0 %v333
    %461 = vmatpush1.msra.mxu0 %v332
    %462 = vmatprep.subr.mxu0 %v337
    %463 = vmatpush1.msra.mxu0 %v336
    %464 = vmatprep.subr.mxu0 %v341
    %465 = vmatpush1.msra.mxu0 %v340
    %466 = vmatprep.subr.mxu0 %v345
    %467 = vmatpush1.msra.mxu0 %v344
    %468 = vmatprep.subr.mxu0 %v349
    %469 = vmatpush1.msra.mxu0 %v348
    %470 = vmatprep.subr.mxu0 %v353
    %471 = vmatpush1.msra.mxu0 %v352
    %472 = vmatprep.subr.mxu0 %v357
    %473 = vmatpush1.msra.mxu0 %v356
    %474 = vmatprep.subr.mxu0 0.0
    %475 = vmatpush1.msra.mxu0 0.0
    %476 = vmatprep.subr.mxu0 0.0
    %477 = vmatpush1.msra.mxu0 0.0
    %478 = vmatprep.subr.mxu0 0.0
    %479 = vmatpush1.msra.mxu0 0.0
    %480 = vmatprep.subr.mxu0 0.0
    %481 = vmatpush1.msra.mxu0 0.0
    %482 = vmatprep.subr.mxu0 0.0
    %483 = vmatpush1.msra.mxu0 0.0
    %484 = vmatprep.subr.mxu0 0.0
    %485 = vmatpush1.msra.mxu0 0.0
    %486 = vmatprep.subr.mxu0 0.0
    %487 = vmatpush1.msra.mxu0 0.0
    %488 = vmatprep.subr.mxu0 0.0
    %489 = vmatpush1.msra.mxu0 0.0
    %490 = vmatprep.subr.mxu0 0.0
    %491 = vmatpush1.msra.mxu0 0.0
    %492 = vmatprep.subr.mxu0 0.0
    %493 = vmatpush1.msra.mxu0 0.0
    %494 = vmatprep.subr.mxu0 0.0
    %495 = vmatpush1.msra.mxu0 0.0
    %496 = vmatprep.subr.mxu0 0.0
    %497 = vmatpush1.msra.mxu0 0.0
    %498 = vmatprep.subr.mxu0 0.0
    %499 = vmatpush1.msra.mxu0 0.0
    %500 = vmatprep.subr.mxu0 0.0
    %501 = vmatpush1.msra.mxu0 0.0
    %502 = vmatprep.subr.mxu0 0.0
    %503 = vmatpush1.msra.mxu0 0.0
    %504 = vmatprep.subr.mxu0 0.0
    %505 = vmatpush1.msra.mxu0 0.0
    %506 = vmatprep.subr.mxu0 0.0
    %507 = vmatpush1.msra.mxu0 0.0
    %508 = vmatprep.subr.mxu0 0.0
    %509 = vmatpush1.msra.mxu0 0.0
    %510 = vmatprep.subr.mxu0 0.0
    %511 = vmatpush1.msra.mxu0 0.0
    %512 = vmatprep.subr.mxu0 0.0
    %513 = vmatpush1.msra.mxu0 0.0
    %514 = vmatprep.subr.mxu0 0.0
    %515 = vmatpush1.msra.mxu0 0.0
    %516 = vmatprep.subr.mxu0 0.0
    %517 = vmatpush1.msra.mxu0 0.0
    %518 = vmatprep.subr.mxu0 0.0
    %519 = vmatpush1.msra.mxu0 0.0
    %520 = vmatprep.subr.mxu0 0.0
    %521 = vmatpush1.msra.mxu0 0.0
    %522 = vmatprep.mubr.f32.mxu0 0.0
    %523 = vmatmul.mubr.f32.gmra.mrb[0].mxu0 %v385
    %v524 = vpop.f32.mrb[0].mxu0
    %v525 = vadd.f32 %v382, %v524
    %v526 = vpop.f32.mrb[0].mxu0
    %v527 = vadd.f32 %v383, %v526
    %528 = vdwg.mxu0
    %v529 = vld [vmem:[%s7] sm:$0xf]
    %v531 = vlaneseq
    %v532 = vshrl.u32 %v531, 7
    %v533 = vsub.s32 0, %v532
    %v534 = vrot.slane %v529, %v533
    %v535 = vlaneseq
    %v536 = vshrl.u32 %v535, 7
    %v537 = vsub.s32 1, %v536
    %v538 = vrot.slane %v529, %v537
    %v539 = vlaneseq
    %v540 = vshrl.u32 %v539, 7
    %v541 = vsub.s32 2, %v540
    %v542 = vrot.slane %v529, %v541
    %v543 = vlaneseq
    %v544 = vshrl.u32 %v543, 7
    %v545 = vsub.s32 3, %v544
    %v546 = vrot.slane %v529, %v545
    %v551 = vadd.f32 %v454, %v534
    %v552 = vadd.f32 %v456, %v538
    %v553 = vadd.f32 %v525, %v542
    %v554 = vadd.f32 %v527, %v546
    %v555 = vmul.f32 %v551, 0.5
    %v556 = vtanh.pop %v555
    %v557 = vmul.f32 %v556, 0.5
    %v558 = vadd.f32 %v557, 0.5
    %v559 = vmul.f32 %v552, 0.5
    %v560 = vtanh.pop %v559
    %v561 = vmul.f32 %v560, 0.5
    %v562 = vadd.f32 %v561, 0.5
    %v563 = vtanh.pop %v553
    %v564 = vmul.f32 %v554, 0.5
    %v565 = vtanh.pop %v564
    %v566 = vmul.f32 %v565, 0.5
    %v567 = vadd.f32 %v566, 0.5
    %v568 = vmul.f32 %v562, 0.0
    %v569 = vmul.f32 %v558, %v563
    %v570 = vadd.f32 %v568, %v569
    %v571 = vtanh.pop %v570
    %v572 = vmul.f32 %v567, %v571
    %vm573 = vcmask 1024
    %574 = vst.msk [vmem:[%s8] sm:$0x3] %vm573, %v572
    %s575 = scalar_lea.vmem %s1, 2
    %v576 = vld [vmem:[%s575] sm:$0x3]
    %s577 = sld [smem:[#allocation3 + $0x1]]
    %p578 = scmp.ne.s32.totalorder %s577, 0
    %s579 = scalar_select %p578, 1, 0
    %v580 = vstv %s579
    %vm581 = vcmp.eq.s32.totalorder %v580, 1
    %v582 = vsel %vm581, %v576, %v572
    %v583 = vld [vmem:[%s2] sm:$0xf]
    %585 = vset.pattern.permute.xlu0 0
    %586 = vperm.xlu0 %585, %v582
    %v587 = vpop.permute.xlu0 %586
    %v590 = vlaneseq
    %v591 = vshrl.u32 %v590, 7
    %v592 = vsub.s32 0, %v591
    %v593 = vrot.slane %v583, %v592
    %v594 = vlaneseq
    %v595 = vshrl.u32 %v594, 7
    %v596 = vsub.s32 1, %v595
    %v597 = vrot.slane %v583, %v596
    %v598 = vlaneseq
    %v599 = vshrl.u32 %v598, 7
    %v600 = vsub.s32 2, %v599
    %v601 = vrot.slane %v583, %v600
    %v602 = vlaneseq
    %v603 = vshrl.u32 %v602, 7
    %v604 = vsub.s32 3, %v603
    %v605 = vrot.slane %v583, %v604
    %v610 = vmul.f32 %v587, %v593
    %v611 = vmul.f32 %v587, %v597
    %v612 = vmul.f32 %v587, %v601
    %v613 = vmul.f32 %v587, %v605
    %v614 = vld [vmem:[#allocation4] sm:$0xff]
    %v615 = vld [vmem:[#allocation4 + $0x8] sm:$0xff]
    %v616 = vld [vmem:[#allocation4 + $0x10] sm:$0xff]
    %v617 = vld [vmem:[#allocation4 + $0x18] sm:$0xff]
    %v618 = vld [vmem:[#allocation4 + $0x20] sm:$0xff]
    %v619 = vld [vmem:[#allocation4 + $0x28] sm:$0xff]
    %v620 = vld [vmem:[#allocation4 + $0x30] sm:$0xff]
    %v621 = vld [vmem:[#allocation4 + $0x38] sm:$0xff]
    %v622 = vld [vmem:[#allocation4 + $0x40] sm:$0xff]
    %v623 = vld [vmem:[#allocation4 + $0x48] sm:$0xff]
    %v624 = vld [vmem:[#allocation4 + $0x50] sm:$0xff]
    %v625 = vld [vmem:[#allocation4 + $0x58] sm:$0xff]
    %v626 = vld [vmem:[#allocation4 + $0x60] sm:$0xff]
    %v627 = vld [vmem:[#allocation4 + $0x68] sm:$0xff]
    %v628 = vld [vmem:[#allocation4 + $0x70] sm:$0xff]
    %v629 = vld [vmem:[#allocation4 + $0x78] sm:$0xff]
    %v630 = vld [vmem:[#allocation4 + $0x80] sm:$0xff]
    %v631 = vld [vmem:[#allocation4 + $0x88] sm:$0xff]
    %v632 = vld [vmem:[#allocation4 + $0x90] sm:$0xff]
    %v633 = vld [vmem:[#allocation4 + $0x98] sm:$0xff]
    %v634 = vld [vmem:[#allocation4 + $0xa0] sm:$0xff]
    %v635 = vld [vmem:[#allocation4 + $0xa8] sm:$0xff]
    %v636 = vld [vmem:[#allocation4 + $0xb0] sm:$0xff]
    %v637 = vld [vmem:[#allocation4 + $0xb8] sm:$0xff]
    %v638 = vld [vmem:[#allocation4 + $0xc0] sm:$0xff]
    %v639 = vld [vmem:[#allocation4 + $0xc8] sm:$0xff]
    %v640 = vld [vmem:[#allocation4 + $0xd0] sm:$0xff]
    %v641 = vld [vmem:[#allocation4 + $0xd8] sm:$0xff]
    %v642 = vld [vmem:[#allocation4 + $0xe0] sm:$0xff]
    %v643 = vld [vmem:[#allocation4 + $0xe8] sm:$0xff]
    %v644 = vld [vmem:[#allocation4 + $0xf0] sm:$0xff]
    %v645 = vld [vmem:[#allocation4 + $0xf8] sm:$0xff]
    %646 = vmatprep.subr.mxu0 %v615
    %647 = vmatpush1.msra.mxu0 %v614
    %648 = vmatprep.subr.mxu0 %v619
    %649 = vmatpush1.msra.mxu0 %v618
    %650 = vmatprep.subr.mxu0 %v623
    %651 = vmatpush1.msra.mxu0 %v622
    %652 = vmatprep.subr.mxu0 %v627
    %653 = vmatpush1.msra.mxu0 %v626
    %654 = vmatprep.subr.mxu0 %v631
    %655 = vmatpush1.msra.mxu0 %v630
    %656 = vmatprep.subr.mxu0 %v635
    %657 = vmatpush1.msra.mxu0 %v634
    %658 = vmatprep.subr.mxu0 %v639
    %659 = vmatpush1.msra.mxu0 %v638
    %660 = vmatprep.subr.mxu0 %v643
    %661 = vmatpush1.msra.mxu0 %v642
    %662 = vmatprep.subr.mxu0 0.0
    %663 = vmatpush1.msra.mxu0 0.0
    %664 = vmatprep.subr.mxu0 0.0
    %665 = vmatpush1.msra.mxu0 0.0
    %666 = vmatprep.subr.mxu0 0.0
    %667 = vmatpush1.msra.mxu0 0.0
    %668 = vmatprep.subr.mxu0 0.0
    %669 = vmatpush1.msra.mxu0 0.0
    %670 = vmatprep.subr.mxu0 0.0
    %671 = vmatpush1.msra.mxu0 0.0
    %672 = vmatprep.subr.mxu0 0.0
    %673 = vmatpush1.msra.mxu0 0.0
    %674 = vmatprep.subr.mxu0 0.0
    %675 = vmatpush1.msra.mxu0 0.0
    %676 = vmatprep.subr.mxu0 0.0
    %677 = vmatpush1.msra.mxu0 0.0
    %678 = vmatprep.subr.mxu0 0.0
    %679 = vmatpush1.msra.mxu0 0.0
    %680 = vmatprep.subr.mxu0 0.0
    %681 = vmatpush1.msra.mxu0 0.0
    %682 = vmatprep.subr.mxu0 0.0
    %683 = vmatpush1.msra.mxu0 0.0
    %684 = vmatprep.subr.mxu0 0.0
    %685 = vmatpush1.msra.mxu0 0.0
    %686 = vmatprep.subr.mxu0 0.0
    %687 = vmatpush1.msra.mxu0 0.0
    %688 = vmatprep.subr.mxu0 0.0
    %689 = vmatpush1.msra.mxu0 0.0
    %690 = vmatprep.subr.mxu0 0.0
    %691 = vmatpush1.msra.mxu0 0.0
    %692 = vmatprep.subr.mxu0 0.0
    %693 = vmatpush1.msra.mxu0 0.0
    %694 = vmatprep.subr.mxu0 0.0
    %695 = vmatpush1.msra.mxu0 0.0
    %696 = vmatprep.subr.mxu0 0.0
    %697 = vmatpush1.msra.mxu0 0.0
    %698 = vmatprep.subr.mxu0 0.0
    %699 = vmatpush1.msra.mxu0 0.0
    %700 = vmatprep.subr.mxu0 0.0
    %701 = vmatpush1.msra.mxu0 0.0
    %702 = vmatprep.subr.mxu0 0.0
    %703 = vmatpush1.msra.mxu0 0.0
    %704 = vmatprep.subr.mxu0 0.0
    %705 = vmatpush1.msra.mxu0 0.0
    %706 = vmatprep.subr.mxu0 0.0
    %707 = vmatpush1.msra.mxu0 0.0
    %708 = vmatprep.subr.mxu0 0.0
    %709 = vmatpush1.msra.mxu0 0.0
    %710 = vmatprep.mubr.f32.mxu0 0.0
    %711 = vmatmul.mubr.f32.gmra.mrb[0].mxu0 %v385
    %v712 = vpop.f32.mrb[0].mxu0
    %v713 = vadd.f32 0.0, %v712
    %v714 = vpop.f32.mrb[0].mxu0
    %v715 = vadd.f32 0.0, %v714
    %716 = vdwg.mxu0
    %717 = vmatprep.subr.mxu0 %v617
    %718 = vmatpush1.msra.mxu0 %v616
    %719 = vmatprep.subr.mxu0 %v621
    %720 = vmatpush1.msra.mxu0 %v620
    %721 = vmatprep.subr.mxu0 %v625
    %722 = vmatpush1.msra.mxu0 %v624
    %723 = vmatprep.subr.mxu0 %v629
    %724 = vmatpush1.msra.mxu0 %v628
    %725 = vmatprep.subr.mxu0 %v633
    %726 = vmatpush1.msra.mxu0 %v632
    %727 = vmatprep.subr.mxu0 %v637
    %728 = vmatpush1.msra.mxu0 %v636
    %729 = vmatprep.subr.mxu0 %v641
    %730 = vmatpush1.msra.mxu0 %v640
    %731 = vmatprep.subr.mxu0 %v645
    %732 = vmatpush1.msra.mxu0 %v644
    %733 = vmatprep.subr.mxu0 0.0
    %734 = vmatpush1.msra.mxu0 0.0
    %735 = vmatprep.subr.mxu0 0.0
    %736 = vmatpush1.msra.mxu0 0.0
    %737 = vmatprep.subr.mxu0 0.0
    %738 = vmatpush1.msra.mxu0 0.0
    %739 = vmatprep.subr.mxu0 0.0
    %740 = vmatpush1.msra.mxu0 0.0
    %741 = vmatprep.subr.mxu0 0.0
    %742 = vmatpush1.msra.mxu0 0.0
    %743 = vmatprep.subr.mxu0 0.0
    %744 = vmatpush1.msra.mxu0 0.0
    %745 = vmatprep.subr.mxu0 0.0
    %746 = vmatpush1.msra.mxu0 0.0
    %747 = vmatprep.subr.mxu0 0.0
    %748 = vmatpush1.msra.mxu0 0.0
    %749 = vmatprep.subr.mxu0 0.0
    %750 = vmatpush1.msra.mxu0 0.0
    %751 = vmatprep.subr.mxu0 0.0
    %752 = vmatpush1.msra.mxu0 0.0
    %753 = vmatprep.subr.mxu0 0.0
    %754 = vmatpush1.msra.mxu0 0.0
    %755 = vmatprep.subr.mxu0 0.0
    %756 = vmatpush1.msra.mxu0 0.0
    %757 = vmatprep.subr.mxu0 0.0
    %758 = vmatpush1.msra.mxu0 0.0
    %759 = vmatprep.subr.mxu0 0.0
    %760 = vmatpush1.msra.mxu0 0.0
    %761 = vmatprep.subr.mxu0 0.0
    %762 = vmatpush1.msra.mxu0 0.0
    %763 = vmatprep.subr.mxu0 0.0
    %764 = vmatpush1.msra.mxu0 0.0
    %765 = vmatprep.subr.mxu0 0.0
    %766 = vmatpush1.msra.mxu0 0.0
    %767 = vmatprep.subr.mxu0 0.0
    %768 = vmatpush1.msra.mxu0 0.0
    %769 = vmatprep.subr.mxu0 0.0
    %770 = vmatpush1.msra.mxu0 0.0
    %771 = vmatprep.subr.mxu0 0.0
    %772 = vmatpush1.msra.mxu0 0.0
    %773 = vmatprep.subr.mxu0 0.0
    %774 = vmatpush1.msra.mxu0 0.0
    %775 = vmatprep.subr.mxu0 0.0
    %776 = vmatpush1.msra.mxu0 0.0
    %777 = vmatprep.subr.mxu0 0.0
    %778 = vmatpush1.msra.mxu0 0.0
    %779 = vmatprep.subr.mxu0 0.0
    %780 = vmatpush1.msra.mxu0 0.0
    %781 = vmatprep.mubr.f32.mxu0 0.0
    %782 = vmatmul.mubr.f32.gmra.mrb[0].mxu0 %v385
    %v783 = vpop.f32.mrb[0].mxu0
    %v784 = vadd.f32 0.0, %v783
    %v785 = vpop.f32.mrb[0].mxu0
    %v786 = vadd.f32 0.0, %v785
    %787 = vdwg.mxu0
    %v788 = vadd.f32 %v610, %v713
    %v789 = vadd.f32 %v611, %v715
    %v790 = vadd.f32 %v612, %v784
    %v791 = vadd.f32 %v613, %v786
    %v792 = vld [vmem:[%s4] sm:$0xf]
    %v794 = vlaneseq
    %v795 = vshrl.u32 %v794, 7
    %v796 = vsub.s32 0, %v795
    %v797 = vrot.slane %v792, %v796
    %v798 = vlaneseq
    %v799 = vshrl.u32 %v798, 7
    %v800 = vsub.s32 1, %v799
    %v801 = vrot.slane %v792, %v800
    %v802 = vlaneseq
    %v803 = vshrl.u32 %v802, 7
    %v804 = vsub.s32 2, %v803
    %v805 = vrot.slane %v792, %v804
    %v806 = vlaneseq
    %v807 = vshrl.u32 %v806, 7
    %v808 = vsub.s32 3, %v807
    %v809 = vrot.slane %v792, %v808
    %v814 = vadd.f32 %v788, %v797
    %v815 = vadd.f32 %v789, %v801
    %v816 = vadd.f32 %v790, %v805
    %v817 = vadd.f32 %v791, %v809
    %v818 = vmul.f32 %v814, 0.5
    %v819 = vtanh.pop %v818
    %v820 = vmul.f32 %v819, 0.5
    %v821 = vadd.f32 %v820, 0.5
    %v822 = vmul.f32 %v815, 0.5
    %v823 = vtanh.pop %v822
    %v824 = vmul.f32 %v823, 0.5
    %v825 = vadd.f32 %v824, 0.5
    %v826 = vtanh.pop %v816
    %v827 = vmul.f32 %v817, 0.5
    %v828 = vtanh.pop %v827
    %v829 = vmul.f32 %v828, 0.5
    %v830 = vadd.f32 %v829, 0.5
    %v831 = vmul.f32 %v825, %v323
    %v832 = vmul.f32 %v821, %v826
    %v833 = vadd.f32 %v831, %v832
    %v834 = vtanh.pop %v833
    %v835 = vmul.f32 %v830, %v834
    %v836 = vld [vmem:[#allocation7] sm:$0xff]
    %v837 = vld [vmem:[#allocation7 + $0x8] sm:$0xff]
    %v838 = vld [vmem:[#allocation7 + $0x10] sm:$0xff]
    %v839 = vld [vmem:[#allocation7 + $0x18] sm:$0xff]
    %v840 = vld [vmem:[#allocation7 + $0x20] sm:$0xff]
    %v841 = vld [vmem:[#allocation7 + $0x28] sm:$0xff]
    %v842 = vld [vmem:[#allocation7 + $0x30] sm:$0xff]
    %v843 = vld [vmem:[#allocation7 + $0x38] sm:$0xff]
    %v844 = vld [vmem:[#allocation7 + $0x40] sm:$0xff]
    %v845 = vld [vmem:[#allocation7 + $0x48] sm:$0xff]
    %v846 = vld [vmem:[#allocation7 + $0x50] sm:$0xff]
    %v847 = vld [vmem:[#allocation7 + $0x58] sm:$0xff]
    %v848 = vld [vmem:[#allocation7 + $0x60] sm:$0xff]
    %v849 = vld [vmem:[#allocation7 + $0x68] sm:$0xff]
    %v850 = vld [vmem:[#allocation7 + $0x70] sm:$0xff]
    %v851 = vld [vmem:[#allocation7 + $0x78] sm:$0xff]
    %v852 = vld [vmem:[#allocation7 + $0x80] sm:$0xff]
    %v853 = vld [vmem:[#allocation7 + $0x88] sm:$0xff]
    %v854 = vld [vmem:[#allocation7 + $0x90] sm:$0xff]
    %v855 = vld [vmem:[#allocation7 + $0x98] sm:$0xff]
    %v856 = vld [vmem:[#allocation7 + $0xa0] sm:$0xff]
    %v857 = vld [vmem:[#allocation7 + $0xa8] sm:$0xff]
    %v858 = vld [vmem:[#allocation7 + $0xb0] sm:$0xff]
    %v859 = vld [vmem:[#allocation7 + $0xb8] sm:$0xff]
    %v860 = vld [vmem:[#allocation7 + $0xc0] sm:$0xff]
    %v861 = vld [vmem:[#allocation7 + $0xc8] sm:$0xff]
    %v862 = vld [vmem:[#allocation7 + $0xd0] sm:$0xff]
    %v863 = vld [vmem:[#allocation7 + $0xd8] sm:$0xff]
    %v864 = vld [vmem:[#allocation7 + $0xe0] sm:$0xff]
    %v865 = vld [vmem:[#allocation7 + $0xe8] sm:$0xff]
    %v866 = vld [vmem:[#allocation7 + $0xf0] sm:$0xff]
    %v867 = vld [vmem:[#allocation7 + $0xf8] sm:$0xff]
    %v868 = vld [vmem:[%s6] sm:$0xf]
    %870 = vset.pattern.permute.xlu0 0
    %871 = vperm.xlu0 %870, %v572
    %v872 = vpop.permute.xlu0 %871
    %v875 = vlaneseq
    %v876 = vshrl.u32 %v875, 7
    %v877 = vsub.s32 0, %v876
    %v878 = vrot.slane %v868, %v877
    %v879 = vlaneseq
    %v880 = vshrl.u32 %v879, 7
    %v881 = vsub.s32 1, %v880
    %v882 = vrot.slane %v868, %v881
    %v883 = vlaneseq
    %v884 = vshrl.u32 %v883, 7
    %v885 = vsub.s32 2, %v884
    %v886 = vrot.slane %v868, %v885
    %v887 = vlaneseq
    %v888 = vshrl.u32 %v887, 7
    %v889 = vsub.s32 3, %v888
    %v890 = vrot.slane %v868, %v889
    %v895 = vmul.f32 %v872, %v878
    %v896 = vmul.f32 %v872, %v882
    %v897 = vmul.f32 %v872, %v886
    %v898 = vmul.f32 %v872, %v890
    %v900 = vsel %vm132, %v835, 0
    %902 = vmatprep.subr.mxu0 %v837
    %903 = vmatpush1.msra.mxu0 %v836
    %904 = vmatprep.subr.mxu0 %v841
    %905 = vmatpush1.msra.mxu0 %v840
    %906 = vmatprep.subr.mxu0 %v845
    %907 = vmatpush1.msra.mxu0 %v844
    %908 = vmatprep.subr.mxu0 %v849
    %909 = vmatpush1.msra.mxu0 %v848
    %910 = vmatprep.subr.mxu0 %v853
    %911 = vmatpush1.msra.mxu0 %v852
    %912 = vmatprep.subr.mxu0 %v857
    %913 = vmatpush1.msra.mxu0 %v856
    %914 = vmatprep.subr.mxu0 %v861
    %915 = vmatpush1.msra.mxu0 %v860
    %916 = vmatprep.subr.mxu0 %v865
    %917 = vmatpush1.msra.mxu0 %v864
    %918 = vmatprep.subr.mxu0 0.0
    %919 = vmatpush1.msra.mxu0 0.0
    %920 = vmatprep.subr.mxu0 0.0
    %921 = vmatpush1.msra.mxu0 0.0
    %922 = vmatprep.subr.mxu0 0.0
    %923 = vmatpush1.msra.mxu0 0.0
    %924 = vmatprep.subr.mxu0 0.0
    %925 = vmatpush1.msra.mxu0 0.0
    %926 = vmatprep.subr.mxu0 0.0
    %927 = vmatpush1.msra.mxu0 0.0
    %928 = vmatprep.subr.mxu0 0.0
    %929 = vmatpush1.msra.mxu0 0.0
    %930 = vmatprep.subr.mxu0 0.0
    %931 = vmatpush1.msra.mxu0 0.0
    %932 = vmatprep.subr.mxu0 0.0
    %933 = vmatpush1.msra.mxu0 0.0
    %934 = vmatprep.subr.mxu0 0.0
    %935 = vmatpush1.msra.mxu0 0.0
    %936 = vmatprep.subr.mxu0 0.0
    %937 = vmatpush1.msra.mxu0 0.0
    %938 = vmatprep.subr.mxu0 0.0
    %939 = vmatpush1.msra.mxu0 0.0
    %940 = vmatprep.subr.mxu0 0.0
    %941 = vmatpush1.msra.mxu0 0.0
    %942 = vmatprep.subr.mxu0 0.0
    %943 = vmatpush1.msra.mxu0 0.0
    %944 = vmatprep.subr.mxu0 0.0
    %945 = vmatpush1.msra.mxu0 0.0
    %946 = vmatprep.subr.mxu0 0.0
    %947 = vmatpush1.msra.mxu0 0.0
    %948 = vmatprep.subr.mxu0 0.0
    %949 = vmatpush1.msra.mxu0 0.0
    %950 = vmatprep.subr.mxu0 0.0
    %951 = vmatpush1.msra.mxu0 0.0
    %952 = vmatprep.subr.mxu0 0.0
    %953 = vmatpush1.msra.mxu0 0.0
    %954 = vmatprep.subr.mxu0 0.0
    %955 = vmatpush1.msra.mxu0 0.0
    %956 = vmatprep.subr.mxu0 0.0
    %957 = vmatpush1.msra.mxu0 0.0
    %958 = vmatprep.subr.mxu0 0.0
    %959 = vmatpush1.msra.mxu0 0.0
    %960 = vmatprep.subr.mxu0 0.0
    %961 = vmatpush1.msra.mxu0 0.0
    %962 = vmatprep.subr.mxu0 0.0
    %963 = vmatpush1.msra.mxu0 0.0
    %964 = vmatprep.subr.mxu0 0.0
    %965 = vmatpush1.msra.mxu0 0.0
    %966 = vmatprep.mubr.f32.mxu0 0.0
    %967 = vmatmul.mubr.f32.gmra.mrb[0].mxu0 %v900
    %v968 = vpop.f32.mrb[0].mxu0
    %v969 = vadd.f32 %v895, %v968
    %v970 = vpop.f32.mrb[0].mxu0
    %v971 = vadd.f32 %v896, %v970
    %972 = vdwg.mxu0
    %973 = vmatprep.subr.mxu0 %v839
    %974 = vmatpush1.msra.mxu0 %v838
    %975 = vmatprep.subr.mxu0 %v843
    %976 = vmatpush1.msra.mxu0 %v842
    %977 = vmatprep.subr.mxu0 %v847
    %978 = vmatpush1.msra.mxu0 %v846
    %979 = vmatprep.subr.mxu0 %v851
    %980 = vmatpush1.msra.mxu0 %v850
    %981 = vmatprep.subr.mxu0 %v855
    %982 = vmatpush1.msra.mxu0 %v854
    %983 = vmatprep.subr.mxu0 %v859
    %984 = vmatpush1.msra.mxu0 %v858
    %985 = vmatprep.subr.mxu0 %v863
    %986 = vmatpush1.msra.mxu0 %v862
    %987 = vmatprep.subr.mxu0 %v867
    %988 = vmatpush1.msra.mxu0 %v866
    %989 = vmatprep.subr.mxu0 0.0
    %990 = vmatpush1.msra.mxu0 0.0
    %991 = vmatprep.subr.mxu0 0.0
    %992 = vmatpush1.msra.mxu0 0.0
    %993 = vmatprep.subr.mxu0 0.0
    %994 = vmatpush1.msra.mxu0 0.0
    %995 = vmatprep.subr.mxu0 0.0
    %996 = vmatpush1.msra.mxu0 0.0
    %997 = vmatprep.subr.mxu0 0.0
    %998 = vmatpush1.msra.mxu0 0.0
    %999 = vmatprep.subr.mxu0 0.0
    %1000 = vmatpush1.msra.mxu0 0.0
    %1001 = vmatprep.subr.mxu0 0.0
    %1002 = vmatpush1.msra.mxu0 0.0
    %1003 = vmatprep.subr.mxu0 0.0
    %1004 = vmatpush1.msra.mxu0 0.0
    %1005 = vmatprep.subr.mxu0 0.0
    %1006 = vmatpush1.msra.mxu0 0.0
    %1007 = vmatprep.subr.mxu0 0.0
    %1008 = vmatpush1.msra.mxu0 0.0
    %1009 = vmatprep.subr.mxu0 0.0
    %1010 = vmatpush1.msra.mxu0 0.0
    %1011 = vmatprep.subr.mxu0 0.0
    %1012 = vmatpush1.msra.mxu0 0.0
    %1013 = vmatprep.subr.mxu0 0.0
    %1014 = vmatpush1.msra.mxu0 0.0
    %1015 = vmatprep.subr.mxu0 0.0
    %1016 = vmatpush1.msra.mxu0 0.0
    %1017 = vmatprep.subr.mxu0 0.0
    %1018 = vmatpush1.msra.mxu0 0.0
    %1019 = vmatprep.subr.mxu0 0.0
    %1020 = vmatpush1.msra.mxu0 0.0
    %1021 = vmatprep.subr.mxu0 0.0
    %1022 = vmatpush1.msra.mxu0 0.0
    %1023 = vmatprep.subr.mxu0 0.0
    %1024 = vmatpush1.msra.mxu0 0.0
    %1025 = vmatprep.subr.mxu0 0.0
    %1026 = vmatpush1.msra.mxu0 0.0
    %1027 = vmatprep.subr.mxu0 0.0
    %1028 = vmatpush1.msra.mxu0 0.0
    %1029 = vmatprep.subr.mxu0 0.0
    %1030 = vmatpush1.msra.mxu0 0.0
    %1031 = vmatprep.subr.mxu0 0.0
    %1032 = vmatpush1.msra.mxu0 0.0
    %1033 = vmatprep.subr.mxu0 0.0
    %1034 = vmatpush1.msra.mxu0 0.0
    %1035 = vmatprep.subr.mxu0 0.0
    %1036 = vmatpush1.msra.mxu0 0.0
    %1037 = vmatprep.mubr.f32.mxu0 0.0
    %1038 = vmatmul.mubr.f32.gmra.mrb[0].mxu0 %v900
    %v1039 = vpop.f32.mrb[0].mxu0
    %v1040 = vadd.f32 %v897, %v1039
    %v1041 = vpop.f32.mrb[0].mxu0
    %v1042 = vadd.f32 %v898, %v1041
    %1043 = vdwg.mxu0
    %v1044 = vld [vmem:[%s7] sm:$0xf]
    %v1046 = vlaneseq
    %v1047 = vshrl.u32 %v1046, 7
    %v1048 = vsub.s32 0, %v1047
    %v1049 = vrot.slane %v1044, %v1048
    %v1050 = vlaneseq
    %v1051 = vshrl.u32 %v1050, 7
    %v1052 = vsub.s32 1, %v1051
    %v1053 = vrot.slane %v1044, %v1052
    %v1054 = vlaneseq
    %v1055 = vshrl.u32 %v1054, 7
    %v1056 = vsub.s32 2, %v1055
    %v1057 = vrot.slane %v1044, %v1056
    %v1058 = vlaneseq
    %v1059 = vshrl.u32 %v1058, 7
    %v1060 = vsub.s32 3, %v1059
    %v1061 = vrot.slane %v1044, %v1060
    %v1066 = vadd.f32 %v969, %v1049
    %v1067 = vadd.f32 %v971, %v1053
    %v1068 = vadd.f32 %v1040, %v1057
    %v1069 = vadd.f32 %v1042, %v1061
    %v1070 = vmul.f32 %v1066, 0.5
    %v1071 = vtanh.pop %v1070
    %v1072 = vmul.f32 %v1071, 0.5
    %v1073 = vadd.f32 %v1072, 0.5
    %v1074 = vmul.f32 %v1067, 0.5
    %v1075 = vtanh.pop %v1074
    %v1076 = vmul.f32 %v1075, 0.5
    %v1077 = vadd.f32 %v1076, 0.5
    %v1078 = vtanh.pop %v1068
    %v1079 = vmul.f32 %v1069, 0.5
    %v1080 = vtanh.pop %v1079
    %v1081 = vmul.f32 %v1080, 0.5
    %v1082 = vadd.f32 %v1081, 0.5
    %v1083 = vmul.f32 %v1077, %v570
    %v1084 = vmul.f32 %v1073, %v1078
    %v1085 = vadd.f32 %v1083, %v1084
    %v1086 = vtanh.pop %v1085
    %v1087 = vmul.f32 %v1082, %v1086
    %s1088 = scalar_lea.vmem %s8, 2
    %1089 = vst.msk [vmem:[%s1088] sm:$0x3] %vm573, %v1087
    %s1090 = scalar_lea.vmem %s1, 4
    %v1091 = vld [vmem:[%s1090] sm:$0x3]
    %s1092 = sld [smem:[#allocation3 + $0x2]]
    %p1093 = scmp.ne.s32.totalorder %s1092, 0
    %s1094 = scalar_select %p1093, 1, 0
    %v1095 = vstv %s1094
    %vm1096 = vcmp.eq.s32.totalorder %v1095, 1
    %v1097 = vsel %vm1096, %v1091, %v1087
    %v1098 = vld [vmem:[%s2] sm:$0xf]
    %1100 = vset.pattern.permute.xlu0 0
    %1101 = vperm.xlu0 %1100, %v1097
    %v1102 = vpop.permute.xlu0 %1101
    %v1105 = vlaneseq
    %v1106 = vshrl.u32 %v1105, 7
    %v1107 = vsub.s32 0, %v1106
    %v1108 = vrot.slane %v1098, %v1107
    %v1109 = vlaneseq
    %v1110 = vshrl.u32 %v1109, 7
    %v1111 = vsub.s32 1, %v1110
    %v1112 = vrot.slane %v1098, %v1111
    %v1113 = vlaneseq
    %v1114 = vshrl.u32 %v1113, 7
    %v1115 = vsub.s32 2, %v1114
    %v1116 = vrot.slane %v1098, %v1115
    %v1117 = vlaneseq
    %v1118 = vshrl.u32 %v1117, 7
    %v1119 = vsub.s32 3, %v1118
    %v1120 = vrot.slane %v1098, %v1119
    %v1125 = vmul.f32 %v1102, %v1108
    %v1126 = vmul.f32 %v1102, %v1112
    %v1127 = vmul.f32 %v1102, %v1116
    %v1128 = vmul.f32 %v1102, %v1120
    %v1129 = vld [vmem:[#allocation4] sm:$0xff]
    %v1130 = vld [vmem:[#allocation4 + $0x8] sm:$0xff]
    %v1131 = vld [vmem:[#allocation4 + $0x10] sm:$0xff]
    %v1132 = vld [vmem:[#allocation4 + $0x18] sm:$0xff]
    %v1133 = vld [vmem:[#allocation4 + $0x20] sm:$0xff]
    %v1134 = vld [vmem:[#allocation4 + $0x28] sm:$0xff]
    %v1135 = vld [vmem:[#allocation4 + $0x30] sm:$0xff]
    %v1136 = vld [vmem:[#allocation4 + $0x38] sm:$0xff]
    %v1137 = vld [vmem:[#allocation4 + $0x40] sm:$0xff]
    %v1138 = vld [vmem:[#allocation4 + $0x48] sm:$0xff]
    %v1139 = vld [vmem:[#allocation4 + $0x50] sm:$0xff]
    %v1140 = vld [vmem:[#allocation4 + $0x58] sm:$0xff]
    %v1141 = vld [vmem:[#allocation4 + $0x60] sm:$0xff]
    %v1142 = vld [vmem:[#allocation4 + $0x68] sm:$0xff]
    %v1143 = vld [vmem:[#allocation4 + $0x70] sm:$0xff]
    %v1144 = vld [vmem:[#allocation4 + $0x78] sm:$0xff]
    %v1145 = vld [vmem:[#allocation4 + $0x80] sm:$0xff]
    %v1146 = vld [vmem:[#allocation4 + $0x88] sm:$0xff]
    %v1147 = vld [vmem:[#allocation4 + $0x90] sm:$0xff]
    %v1148 = vld [vmem:[#allocation4 + $0x98] sm:$0xff]
    %v1149 = vld [vmem:[#allocation4 + $0xa0] sm:$0xff]
    %v1150 = vld [vmem:[#allocation4 + $0xa8] sm:$0xff]
    %v1151 = vld [vmem:[#allocation4 + $0xb0] sm:$0xff]
    %v1152 = vld [vmem:[#allocation4 + $0xb8] sm:$0xff]
    %v1153 = vld [vmem:[#allocation4 + $0xc0] sm:$0xff]
    %v1154 = vld [vmem:[#allocation4 + $0xc8] sm:$0xff]
    %v1155 = vld [vmem:[#allocation4 + $0xd0] sm:$0xff]
    %v1156 = vld [vmem:[#allocation4 + $0xd8] sm:$0xff]
    %v1157 = vld [vmem:[#allocation4 + $0xe0] sm:$0xff]
    %v1158 = vld [vmem:[#allocation4 + $0xe8] sm:$0xff]
    %v1159 = vld [vmem:[#allocation4 + $0xf0] sm:$0xff]
    %v1160 = vld [vmem:[#allocation4 + $0xf8] sm:$0xff]
    %1161 = vmatprep.subr.mxu0 %v1130
    %1162 = vmatpush1.msra.mxu0 %v1129
    %1163 = vmatprep.subr.mxu0 %v1134
    %1164 = vmatpush1.msra.mxu0 %v1133
    %1165 = vmatprep.subr.mxu0 %v1138
    %1166 = vmatpush1.msra.mxu0 %v1137
    %1167 = vmatprep.subr.mxu0 %v1142
    %1168 = vmatpush1.msra.mxu0 %v1141
    %1169 = vmatprep.subr.mxu0 %v1146
    %1170 = vmatpush1.msra.mxu0 %v1145
    %1171 = vmatprep.subr.mxu0 %v1150
    %1172 = vmatpush1.msra.mxu0 %v1149
    %1173 = vmatprep.subr.mxu0 %v1154
    %1174 = vmatpush1.msra.mxu0 %v1153
    %1175 = vmatprep.subr.mxu0 %v1158
    %1176 = vmatpush1.msra.mxu0 %v1157
    %1177 = vmatprep.subr.mxu0 0.0
    %1178 = vmatpush1.msra.mxu0 0.0
    %1179 = vmatprep.subr.mxu0 0.0
    %1180 = vmatpush1.msra.mxu0 0.0
    %1181 = vmatprep.subr.mxu0 0.0
    %1182 = vmatpush1.msra.mxu0 0.0
    %1183 = vmatprep.subr.mxu0 0.0
    %1184 = vmatpush1.msra.mxu0 0.0
    %1185 = vmatprep.subr.mxu0 0.0
    %1186 = vmatpush1.msra.mxu0 0.0
    %1187 = vmatprep.subr.mxu0 0.0
    %1188 = vmatpush1.msra.mxu0 0.0
    %1189 = vmatprep.subr.mxu0 0.0
    %1190 = vmatpush1.msra.mxu0 0.0
    %1191 = vmatprep.subr.mxu0 0.0
    %1192 = vmatpush1.msra.mxu0 0.0
    %1193 = vmatprep.subr.mxu0 0.0
    %1194 = vmatpush1.msra.mxu0 0.0
    %1195 = vmatprep.subr.mxu0 0.0
    %1196 = vmatpush1.msra.mxu0 0.0
    %1197 = vmatprep.subr.mxu0 0.0
    %1198 = vmatpush1.msra.mxu0 0.0
    %1199 = vmatprep.subr.mxu0 0.0
    %1200 = vmatpush1.msra.mxu0 0.0
    %1201 = vmatprep.subr.mxu0 0.0
    %1202 = vmatpush1.msra.mxu0 0.0
    %1203 = vmatprep.subr.mxu0 0.0
    %1204 = vmatpush1.msra.mxu0 0.0
    %1205 = vmatprep.subr.mxu0 0.0
    %1206 = vmatpush1.msra.mxu0 0.0
    %1207 = vmatprep.subr.mxu0 0.0
    %1208 = vmatpush1.msra.mxu0 0.0
    %1209 = vmatprep.subr.mxu0 0.0
    %1210 = vmatpush1.msra.mxu0 0.0
    %1211 = vmatprep.subr.mxu0 0.0
    %1212 = vmatpush1.msra.mxu0 0.0
    %1213 = vmatprep.subr.mxu0 0.0
    %1214 = vmatpush1.msra.mxu0 0.0
    %1215 = vmatprep.subr.mxu0 0.0
    %1216 = vmatpush1.msra.mxu0 0.0
    %1217 = vmatprep.subr.mxu0 0.0
    %1218 = vmatpush1.msra.mxu0 0.0
    %1219 = vmatprep.subr.mxu0 0.0
    %1220 = vmatpush1.msra.mxu0 0.0
    %1221 = vmatprep.subr.mxu0 0.0
    %1222 = vmatpush1.msra.mxu0 0.0
    %1223 = vmatprep.subr.mxu0 0.0
    %1224 = vmatpush1.msra.mxu0 0.0
    %1225 = vmatprep.mubr.f32.mxu0 0.0
    %1226 = vmatmul.mubr.f32.gmra.mrb[0].mxu0 %v900
    %v1227 = vpop.f32.mrb[0].mxu0
    %v1228 = vadd.f32 0.0, %v1227
    %v1229 = vpop.f32.mrb[0].mxu0
    %v1230 = vadd.f32 0.0, %v1229
    %1231 = vdwg.mxu0
    %1232 = vmatprep.subr.mxu0 %v1132
    %1233 = vmatpush1.msra.mxu0 %v1131
    %1234 = vmatprep.subr.mxu0 %v1136
    %1235 = vmatpush1.msra.mxu0 %v1135
    %1236 = vmatprep.subr.mxu0 %v1140
    %1237 = vmatpush1.msra.mxu0 %v1139
    %1238 = vmatprep.subr.mxu0 %v1144
    %1239 = vmatpush1.msra.mxu0 %v1143
    %1240 = vmatprep.subr.mxu0 %v1148
    %1241 = vmatpush1.msra.mxu0 %v1147
    %1242 = vmatprep.subr.mxu0 %v1152
    %1243 = vmatpush1.msra.mxu0 %v1151
    %1244 = vmatprep.subr.mxu0 %v1156
    %1245 = vmatpush1.msra.mxu0 %v1155
    %1246 = vmatprep.subr.mxu0 %v1160
    %1247 = vmatpush1.msra.mxu0 %v1159
    %1248 = vmatprep.subr.mxu0 0.0
    %1249 = vmatpush1.msra.mxu0 0.0
    %1250 = vmatprep.subr.mxu0 0.0
    %1251 = vmatpush1.msra.mxu0 0.0
    %1252 = vmatprep.subr.mxu0 0.0
    %1253 = vmatpush1.msra.mxu0 0.0
    %1254 = vmatprep.subr.mxu0 0.0
    %1255 = vmatpush1.msra.mxu0 0.0
    %1256 = vmatprep.subr.mxu0 0.0
    %1257 = vmatpush1.msra.mxu0 0.0
    %1258 = vmatprep.subr.mxu0 0.0
    %1259 = vmatpush1.msra.mxu0 0.0
    %1260 = vmatprep.subr.mxu0 0.0
    %1261 = vmatpush1.msra.mxu0 0.0
    %1262 = vmatprep.subr.mxu0 0.0
    %1263 = vmatpush1.msra.mxu0 0.0
    %1264 = vmatprep.subr.mxu0 0.0
    %1265 = vmatpush1.msra.mxu0 0.0
    %1266 = vmatprep.subr.mxu0 0.0
    %1267 = vmatpush1.msra.mxu0 0.0
    %1268 = vmatprep.subr.mxu0 0.0
    %1269 = vmatpush1.msra.mxu0 0.0
    %1270 = vmatprep.subr.mxu0 0.0
    %1271 = vmatpush1.msra.mxu0 0.0
    %1272 = vmatprep.subr.mxu0 0.0
    %1273 = vmatpush1.msra.mxu0 0.0
    %1274 = vmatprep.subr.mxu0 0.0
    %1275 = vmatpush1.msra.mxu0 0.0
    %1276 = vmatprep.subr.mxu0 0.0
    %1277 = vmatpush1.msra.mxu0 0.0
    %1278 = vmatprep.subr.mxu0 0.0
    %1279 = vmatpush1.msra.mxu0 0.0
    %1280 = vmatprep.subr.mxu0 0.0
    %1281 = vmatpush1.msra.mxu0 0.0
    %1282 = vmatprep.subr.mxu0 0.0
    %1283 = vmatpush1.msra.mxu0 0.0
    %1284 = vmatprep.subr.mxu0 0.0
    %1285 = vmatpush1.msra.mxu0 0.0
    %1286 = vmatprep.subr.mxu0 0.0
    %1287 = vmatpush1.msra.mxu0 0.0
    %1288 = vmatprep.subr.mxu0 0.0
    %1289 = vmatpush1.msra.mxu0 0.0
    %1290 = vmatprep.subr.mxu0 0.0
    %1291 = vmatpush1.msra.mxu0 0.0
    %1292 = vmatprep.subr.mxu0 0.0
    %1293 = vmatpush1.msra.mxu0 0.0
    %1294 = vmatprep.subr.mxu0 0.0
    %1295 = vmatpush1.msra.mxu0 0.0
    %1296 = vmatprep.mubr.f32.mxu0 0.0
    %1297 = vmatmul.mubr.f32.gmra.mrb[0].mxu0 %v900
    %v1298 = vpop.f32.mrb[0].mxu0
    %v1299 = vadd.f32 0.0, %v1298
    %v1300 = vpop.f32.mrb[0].mxu0
    %v1301 = vadd.f32 0.0, %v1300
    %1302 = vdwg.mxu0
    %v1303 = vadd.f32 %v1125, %v1228
    %v1304 = vadd.f32 %v1126, %v1230
    %v1305 = vadd.f32 %v1127, %v1299
    %v1306 = vadd.f32 %v1128, %v1301
    %v1307 = vld [vmem:[%s4] sm:$0xf]
    %v1309 = vlaneseq
    %v1310 = vshrl.u32 %v1309, 7
    %v1311 = vsub.s32 0, %v1310
    %v1312 = vrot.slane %v1307, %v1311
    %v1313 = vlaneseq
    %v1314 = vshrl.u32 %v1313, 7
    %v1315 = vsub.s32 1, %v1314
    %v1316 = vrot.slane %v1307, %v1315
    %v1317 = vlaneseq
    %v1318 = vshrl.u32 %v1317, 7
    %v1319 = vsub.s32 2, %v1318
    %v1320 = vrot.slane %v1307, %v1319
    %v1321 = vlaneseq
    %v1322 = vshrl.u32 %v1321, 7
    %v1323 = vsub.s32 3, %v1322
    %v1324 = vrot.slane %v1307, %v1323
    %v1329 = vadd.f32 %v1303, %v1312
    %v1330 = vadd.f32 %v1304, %v1316
    %v1331 = vadd.f32 %v1305, %v1320
    %v1332 = vadd.f32 %v1306, %v1324
    %v1333 = vmul.f32 %v1329, 0.5
    %v1334 = vtanh.pop %v1333
    %v1335 = vmul.f32 %v1334, 0.5
    %v1336 = vadd.f32 %v1335, 0.5
    %v1337 = vmul.f32 %v1330, 0.5
    %v1338 = vtanh.pop %v1337
    %v1339 = vmul.f32 %v1338, 0.5
    %v1340 = vadd.f32 %v1339, 0.5
    %v1341 = vtanh.pop %v1331
    %v1342 = vmul.f32 %v1332, 0.5
    %v1343 = vtanh.pop %v1342
    %v1344 = vmul.f32 %v1343, 0.5
    %v1345 = vadd.f32 %v1344, 0.5
    %v1346 = vmul.f32 %v1340, %v833
    %v1347 = vmul.f32 %v1336, %v1341
    %v1348 = vadd.f32 %v1346, %v1347
    %v1349 = vtanh.pop %v1348
    %v1350 = vmul.f32 %v1345, %v1349
    %v1351 = vld [vmem:[#allocation7] sm:$0xff]
    %v1352 = vld [vmem:[#allocation7 + $0x8] sm:$0xff]
    %v1353 = vld [vmem:[#allocation7 + $0x10] sm:$0xff]
    %v1354 = vld [vmem:[#allocation7 + $0x18] sm:$0xff]
    %v1355 = vld [vmem:[#allocation7 + $0x20] sm:$0xff]
    %v1356 = vld [vmem:[#allocation7 + $0x28] sm:$0xff]
    %v1357 = vld [vmem:[#allocation7 + $0x30] sm:$0xff]
    %v1358 = vld [vmem:[#allocation7 + $0x38] sm:$0xff]
    %v1359 = vld [vmem:[#allocation7 + $0x40] sm:$0xff]
    %v1360 = vld [vmem:[#allocation7 + $0x48] sm:$0xff]
    %v1361 = vld [vmem:[#allocation7 + $0x50] sm:$0xff]
    %v1362 = vld [vmem:[#allocation7 + $0x58] sm:$0xff]
    %v1363 = vld [vmem:[#allocation7 + $0x60] sm:$0xff]
    %v1364 = vld [vmem:[#allocation7 + $0x68] sm:$0xff]
    %v1365 = vld [vmem:[#allocation7 + $0x70] sm:$0xff]
    %v1366 = vld [vmem:[#allocation7 + $0x78] sm:$0xff]
    %v1367 = vld [vmem:[#allocation7 + $0x80] sm:$0xff]
    %v1368 = vld [vmem:[#allocation7 + $0x88] sm:$0xff]
    %v1369 = vld [vmem:[#allocation7 + $0x90] sm:$0xff]
    %v1370 = vld [vmem:[#allocation7 + $0x98] sm:$0xff]
    %v1371 = vld [vmem:[#allocation7 + $0xa0] sm:$0xff]
    %v1372 = vld [vmem:[#allocation7 + $0xa8] sm:$0xff]
    %v1373 = vld [vmem:[#allocation7 + $0xb0] sm:$0xff]
    %v1374 = vld [vmem:[#allocation7 + $0xb8] sm:$0xff]
    %v1375 = vld [vmem:[#allocation7 + $0xc0] sm:$0xff]
    %v1376 = vld [vmem:[#allocation7 + $0xc8] sm:$0xff]
    %v1377 = vld [vmem:[#allocation7 + $0xd0] sm:$0xff]
    %v1378 = vld [vmem:[#allocation7 + $0xd8] sm:$0xff]
    %v1379 = vld [vmem:[#allocation7 + $0xe0] sm:$0xff]
    %v1380 = vld [vmem:[#allocation7 + $0xe8] sm:$0xff]
    %v1381 = vld [vmem:[#allocation7 + $0xf0] sm:$0xff]
    %v1382 = vld [vmem:[#allocation7 + $0xf8] sm:$0xff]
    %v1383 = vld [vmem:[%s6] sm:$0xf]
    %1385 = vset.pattern.permute.xlu0 0
    %1386 = vperm.xlu0 %1385, %v1087
    %v1387 = vpop.permute.xlu0 %1386
    %v1390 = vlaneseq
    %v1391 = vshrl.u32 %v1390, 7
    %v1392 = vsub.s32 0, %v1391
    %v1393 = vrot.slane %v1383, %v1392
    %v1394 = vlaneseq
    %v1395 = vshrl.u32 %v1394, 7
    %v1396 = vsub.s32 1, %v1395
    %v1397 = vrot.slane %v1383, %v1396
    %v1398 = vlaneseq
    %v1399 = vshrl.u32 %v1398, 7
    %v1400 = vsub.s32 2, %v1399
    %v1401 = vrot.slane %v1383, %v1400
    %v1402 = vlaneseq
    %v1403 = vshrl.u32 %v1402, 7
    %v1404 = vsub.s32 3, %v1403
    %v1405 = vrot.slane %v1383, %v1404
    %v1410 = vmul.f32 %v1387, %v1393
    %v1411 = vmul.f32 %v1387, %v1397
    %v1412 = vmul.f32 %v1387, %v1401
    %v1413 = vmul.f32 %v1387, %v1405
    %v1415 = vsel %vm132, %v1350, 0
    %1417 = vmatprep.subr.mxu0 %v1352
    %1418 = vmatpush1.msra.mxu0 %v1351
    %1419 = vmatprep.subr.mxu0 %v1356
    %1420 = vmatpush1.msra.mxu0 %v1355
    %1421 = vmatprep.subr.mxu0 %v1360
    %1422 = vmatpush1.msra.mxu0 %v1359
    %1423 = vmatprep.subr.mxu0 %v1364
    %1424 = vmatpush1.msra.mxu0 %v1363
    %1425 = vmatprep.subr.mxu0 %v1368
    %1426 = vmatpush1.msra.mxu0 %v1367
    %1427 = vmatprep.subr.mxu0 %v1372
    %1428 = vmatpush1.msra.mxu0 %v1371
    %1429 = vmatprep.subr.mxu0 %v1376
    %1430 = vmatpush1.msra.mxu0 %v1375
    %1431 = vmatprep.subr.mxu0 %v1380
    %1432 = vmatpush1.msra.mxu0 %v1379
    %1433 = vmatprep.subr.mxu0 0.0
    %1434 = vmatpush1.msra.mxu0 0.0
    %1435 = vmatprep.subr.mxu0 0.0
    %1436 = vmatpush1.msra.mxu0 0.0
    %1437 = vmatprep.subr.mxu0 0.0
    %1438 = vmatpush1.msra.mxu0 0.0
    %1439 = vmatprep.subr.mxu0 0.0
    %1440 = vmatpush1.msra.mxu0 0.0
    %1441 = vmatprep.subr.mxu0 0.0
    %1442 = vmatpush1.msra.mxu0 0.0
    %1443 = vmatprep.subr.mxu0 0.0
    %1444 = vmatpush1.msra.mxu0 0.0
    %1445 = vmatprep.subr.mxu0 0.0
    %1446 = vmatpush1.msra.mxu0 0.0
    %1447 = vmatprep.subr.mxu0 0.0
    %1448 = vmatpush1.msra.mxu0 0.0
    %1449 = vmatprep.subr.mxu0 0.0
    %1450 = vmatpush1.msra.mxu0 0.0
    %1451 = vmatprep.subr.mxu0 0.0
    %1452 = vmatpush1.msra.mxu0 0.0
    %1453 = vmatprep.subr.mxu0 0.0
    %1454 = vmatpush1.msra.mxu0 0.0
    %1455 = vmatprep.subr.mxu0 0.0
    %1456 = vmatpush1.msra.mxu0 0.0
    %1457 = vmatprep.subr.mxu0 0.0
    %1458 = vmatpush1.msra.mxu0 0.0
    %1459 = vmatprep.subr.mxu0 0.0
    %1460 = vmatpush1.msra.mxu0 0.0
    %1461 = vmatprep.subr.mxu0 0.0
    %1462 = vmatpush1.msra.mxu0 0.0
    %1463 = vmatprep.subr.mxu0 0.0
    %1464 = vmatpush1.msra.mxu0 0.0
    %1465 = vmatprep.subr.mxu0 0.0
    %1466 = vmatpush1.msra.mxu0 0.0
    %1467 = vmatprep.subr.mxu0 0.0
    %1468 = vmatpush1.msra.mxu0 0.0
    %1469 = vmatprep.subr.mxu0 0.0
    %1470 = vmatpush1.msra.mxu0 0.0
    %1471 = vmatprep.subr.mxu0 0.0
    %1472 = vmatpush1.msra.mxu0 0.0
    %1473 = vmatprep.subr.mxu0 0.0
    %1474 = vmatpush1.msra.mxu0 0.0
    %1475 = vmatprep.subr.mxu0 0.0
    %1476 = vmatpush1.msra.mxu0 0.0
    %1477 = vmatprep.subr.mxu0 0.0
    %1478 = vmatpush1.msra.mxu0 0.0
    %1479 = vmatprep.subr.mxu0 0.0
    %1480 = vmatpush1.msra.mxu0 0.0
    %1481 = vmatprep.mubr.f32.mxu0 0.0
    %1482 = vmatmul.mubr.f32.gmra.mrb[0].mxu0 %v1415
    %v1483 = vpop.f32.mrb[0].mxu0
    %v1484 = vadd.f32 %v1410, %v1483
    %v1485 = vpop.f32.mrb[0].mxu0
    %v1486 = vadd.f32 %v1411, %v1485
    %1487 = vdwg.mxu0
    %1488 = vmatprep.subr.mxu0 %v1354
    %1489 = vmatpush1.msra.mxu0 %v1353
    %1490 = vmatprep.subr.mxu0 %v1358
    %1491 = vmatpush1.msra.mxu0 %v1357
    %1492 = vmatprep.subr.mxu0 %v1362
    %1493 = vmatpush1.msra.mxu0 %v1361
    %1494 = vmatprep.subr.mxu0 %v1366
    %1495 = vmatpush1.msra.mxu0 %v1365
    %1496 = vmatprep.subr.mxu0 %v1370
    %1497 = vmatpush1.msra.mxu0 %v1369
    %1498 = vmatprep.subr.mxu0 %v1374
    %1499 = vmatpush1.msra.mxu0 %v1373
    %1500 = vmatprep.subr.mxu0 %v1378
    %1501 = vmatpush1.msra.mxu0 %v1377
    %1502 = vmatprep.subr.mxu0 %v1382
    %1503 = vmatpush1.msra.mxu0 %v1381
    %1504 = vmatprep.subr.mxu0 0.0
    %1505 = vmatpush1.msra.mxu0 0.0
    %1506 = vmatprep.subr.mxu0 0.0
    %1507 = vmatpush1.msra.mxu0 0.0
    %1508 = vmatprep.subr.mxu0 0.0
    %1509 = vmatpush1.msra.mxu0 0.0
    %1510 = vmatprep.subr.mxu0 0.0
    %1511 = vmatpush1.msra.mxu0 0.0
    %1512 = vmatprep.subr.mxu0 0.0
    %1513 = vmatpush1.msra.mxu0 0.0
    %1514 = vmatprep.subr.mxu0 0.0
    %1515 = vmatpush1.msra.mxu0 0.0
    %1516 = vmatprep.subr.mxu0 0.0
    %1517 = vmatpush1.msra.mxu0 0.0
    %1518 = vmatprep.subr.mxu0 0.0
    %1519 = vmatpush1.msra.mxu0 0.0
    %1520 = vmatprep.subr.mxu0 0.0
    %1521 = vmatpush1.msra.mxu0 0.0
    %1522 = vmatprep.subr.mxu0 0.0
    %1523 = vmatpush1.msra.mxu0 0.0
    %1524 = vmatprep.subr.mxu0 0.0
    %1525 = vmatpush1.msra.mxu0 0.0
    %1526 = vmatprep.subr.mxu0 0.0
    %1527 = vmatpush1.msra.mxu0 0.0
    %1528 = vmatprep.subr.mxu0 0.0
    %1529 = vmatpush1.msra.mxu0 0.0
    %1530 = vmatprep.subr.mxu0 0.0
    %1531 = vmatpush1.msra.mxu0 0.0
    %1532 = vmatprep.subr.mxu0 0.0
    %1533 = vmatpush1.msra.mxu0 0.0
    %1534 = vmatprep.subr.mxu0 0.0
    %1535 = vmatpush1.msra.mxu0 0.0
    %1536 = vmatprep.subr.mxu0 0.0
    %1537 = vmatpush1.msra.mxu0 0.0
    %1538 = vmatprep.subr.mxu0 0.0
    %1539 = vmatpush1.msra.mxu0 0.0
    %1540 = vmatprep.subr.mxu0 0.0
    %1541 = vmatpush1.msra.mxu0 0.0
    %1542 = vmatprep.subr.mxu0 0.0
    %1543 = vmatpush1.msra.mxu0 0.0
    %1544 = vmatprep.subr.mxu0 0.0
    %1545 = vmatpush1.msra.mxu0 0.0
    %1546 = vmatprep.subr.mxu0 0.0
    %1547 = vmatpush1.msra.mxu0 0.0
    %1548 = vmatprep.subr.mxu0 0.0
    %1549 = vmatpush1.msra.mxu0 0.0
    %1550 = vmatprep.subr.mxu0 0.0
    %1551 = vmatpush1.msra.mxu0 0.0
    %1552 = vmatprep.mubr.f32.mxu0 0.0
    %1553 = vmatmul.mubr.f32.gmra.mrb[0].mxu0 %v1415
    %v1554 = vpop.f32.mrb[0].mxu0
    %v1555 = vadd.f32 %v1412, %v1554
    %v1556 = vpop.f32.mrb[0].mxu0
    %v1557 = vadd.f32 %v1413, %v1556
    %1558 = vdwg.mxu0
    %v1559 = vld [vmem:[%s7] sm:$0xf]
    %v1561 = vlaneseq
    %v1562 = vshrl.u32 %v1561, 7
    %v1563 = vsub.s32 0, %v1562
    %v1564 = vrot.slane %v1559, %v1563
    %v1565 = vlaneseq
    %v1566 = vshrl.u32 %v1565, 7
    %v1567 = vsub.s32 1, %v1566
    %v1568 = vrot.slane %v1559, %v1567
    %v1569 = vlaneseq
    %v1570 = vshrl.u32 %v1569, 7
    %v1571 = vsub.s32 2, %v1570
    %v1572 = vrot.slane %v1559, %v1571
    %v1573 = vlaneseq
    %v1574 = vshrl.u32 %v1573, 7
    %v1575 = vsub.s32 3, %v1574
    %v1576 = vrot.slane %v1559, %v1575
    %v1581 = vadd.f32 %v1484, %v1564
    %v1582 = vadd.f32 %v1486, %v1568
    %v1583 = vadd.f32 %v1555, %v1572
    %v1584 = vadd.f32 %v1557, %v1576
    %v1585 = vmul.f32 %v1581, 0.5
    %v1586 = vtanh.pop %v1585
    %v1587 = vmul.f32 %v1586, 0.5
    %v1588 = vadd.f32 %v1587, 0.5
    %v1589 = vmul.f32 %v1582, 0.5
    %v1590 = vtanh.pop %v1589
    %v1591 = vmul.f32 %v1590, 0.5
    %v1592 = vadd.f32 %v1591, 0.5
    %v1593 = vtanh.pop %v1583
    %v1594 = vmul.f32 %v1584, 0.5
    %v1595 = vtanh.pop %v1594
    %v1596 = vmul.f32 %v1595, 0.5
    %v1597 = vadd.f32 %v1596, 0.5
    %v1598 = vmul.f32 %v1592, %v1085
    %v1599 = vmul.f32 %v1588, %v1593
    %v1600 = vadd.f32 %v1598, %v1599
    %v1601 = vtanh.pop %v1600
    %v1602 = vmul.f32 %v1597, %v1601
    %s1603 = scalar_lea.vmem %s8, 4
    %1604 = vst.msk [vmem:[%s1603] sm:$0x3] %vm573, %v1602
    %s1605 = scalar_lea.vmem %s1, 6
    %v1606 = vld [vmem:[%s1605] sm:$0x3]
    %s1607 = sld [smem:[#allocation3 + $0x3]]
    %p1608 = scmp.ne.s32.totalorder %s1607, 0
    %s1609 = scalar_select %p1608, 1, 0
    %v1610 = vstv %s1609
    %vm1611 = vcmp.eq.s32.totalorder %v1610, 1
    %v1612 = vsel %vm1611, %v1606, %v1602
    %v1613 = vld [vmem:[%s2] sm:$0xf]
    %1615 = vset.pattern.permute.xlu0 0
    %1616 = vperm.xlu0 %1615, %v1612
    %v1617 = vpop.permute.xlu0 %1616
    %v1620 = vlaneseq
    %v1621 = vshrl.u32 %v1620, 7
    %v1622 = vsub.s32 0, %v1621
    %v1623 = vrot.slane %v1613, %v1622
    %v1624 = vlaneseq
    %v1625 = vshrl.u32 %v1624, 7
    %v1626 = vsub.s32 1, %v1625
    %v1627 = vrot.slane %v1613, %v1626
    %v1628 = vlaneseq
    %v1629 = vshrl.u32 %v1628, 7
    %v1630 = vsub.s32 2, %v1629
    %v1631 = vrot.slane %v1613, %v1630
    %v1632 = vlaneseq
    %v1633 = vshrl.u32 %v1632, 7
    %v1634 = vsub.s32 3, %v1633
    %v1635 = vrot.slane %v1613, %v1634
    %v1640 = vmul.f32 %v1617, %v1623
    %v1641 = vmul.f32 %v1617, %v1627
    %v1642 = vmul.f32 %v1617, %v1631
    %v1643 = vmul.f32 %v1617, %v1635
    %v1644 = vld [vmem:[#allocation4] sm:$0xff]
    %v1645 = vld [vmem:[#allocation4 + $0x8] sm:$0xff]
    %v1646 = vld [vmem:[#allocation4 + $0x10] sm:$0xff]
    %v1647 = vld [vmem:[#allocation4 + $0x18] sm:$0xff]
    %v1648 = vld [vmem:[#allocation4 + $0x20] sm:$0xff]
    %v1649 = vld [vmem:[#allocation4 + $0x28] sm:$0xff]
    %v1650 = vld [vmem:[#allocation4 + $0x30] sm:$0xff]
    %v1651 = vld [vmem:[#allocation4 + $0x38] sm:$0xff]
    %v1652 = vld [vmem:[#allocation4 + $0x40] sm:$0xff]
    %v1653 = vld [vmem:[#allocation4 + $0x48] sm:$0xff]
    %v1654 = vld [vmem:[#allocation4 + $0x50] sm:$0xff]
    %v1655 = vld [vmem:[#allocation4 + $0x58] sm:$0xff]
    %v1656 = vld [vmem:[#allocation4 + $0x60] sm:$0xff]
    %v1657 = vld [vmem:[#allocation4 + $0x68] sm:$0xff]
    %v1658 = vld [vmem:[#allocation4 + $0x70] sm:$0xff]
    %v1659 = vld [vmem:[#allocation4 + $0x78] sm:$0xff]
    %v1660 = vld [vmem:[#allocation4 + $0x80] sm:$0xff]
    %v1661 = vld [vmem:[#allocation4 + $0x88] sm:$0xff]
    %v1662 = vld [vmem:[#allocation4 + $0x90] sm:$0xff]
    %v1663 = vld [vmem:[#allocation4 + $0x98] sm:$0xff]
    %v1664 = vld [vmem:[#allocation4 + $0xa0] sm:$0xff]
    %v1665 = vld [vmem:[#allocation4 + $0xa8] sm:$0xff]
    %v1666 = vld [vmem:[#allocation4 + $0xb0] sm:$0xff]
    %v1667 = vld [vmem:[#allocation4 + $0xb8] sm:$0xff]
    %v1668 = vld [vmem:[#allocation4 + $0xc0] sm:$0xff]
    %v1669 = vld [vmem:[#allocation4 + $0xc8] sm:$0xff]
    %v1670 = vld [vmem:[#allocation4 + $0xd0] sm:$0xff]
    %v1671 = vld [vmem:[#allocation4 + $0xd8] sm:$0xff]
    %v1672 = vld [vmem:[#allocation4 + $0xe0] sm:$0xff]
    %v1673 = vld [vmem:[#allocation4 + $0xe8] sm:$0xff]
    %v1674 = vld [vmem:[#allocation4 + $0xf0] sm:$0xff]
    %v1675 = vld [vmem:[#allocation4 + $0xf8] sm:$0xff]
    %1676 = vmatprep.subr.mxu0 %v1645
    %1677 = vmatpush1.msra.mxu0 %v1644
    %1678 = vmatprep.subr.mxu0 %v1649
    %1679 = vmatpush1.msra.mxu0 %v1648
    %1680 = vmatprep.subr.mxu0 %v1653
    %1681 = vmatpush1.msra.mxu0 %v1652
    %1682 = vmatprep.subr.mxu0 %v1657
    %1683 = vmatpush1.msra.mxu0 %v1656
    %1684 = vmatprep.subr.mxu0 %v1661
    %1685 = vmatpush1.msra.mxu0 %v1660
    %1686 = vmatprep.subr.mxu0 %v1665
    %1687 = vmatpush1.msra.mxu0 %v1664
    %1688 = vmatprep.subr.mxu0 %v1669
    %1689 = vmatpush1.msra.mxu0 %v1668
    %1690 = vmatprep.subr.mxu0 %v1673
    %1691 = vmatpush1.msra.mxu0 %v1672
    %1692 = vmatprep.subr.mxu0 0.0
    %1693 = vmatpush1.msra.mxu0 0.0
    %1694 = vmatprep.subr.mxu0 0.0
    %1695 = vmatpush1.msra.mxu0 0.0
    %1696 = vmatprep.subr.mxu0 0.0
    %1697 = vmatpush1.msra.mxu0 0.0
    %1698 = vmatprep.subr.mxu0 0.0
    %1699 = vmatpush1.msra.mxu0 0.0
    %1700 = vmatprep.subr.mxu0 0.0
    %1701 = vmatpush1.msra.mxu0 0.0
    %1702 = vmatprep.subr.mxu0 0.0
    %1703 = vmatpush1.msra.mxu0 0.0
    %1704 = vmatprep.subr.mxu0 0.0
    %1705 = vmatpush1.msra.mxu0 0.0
    %1706 = vmatprep.subr.mxu0 0.0
    %1707 = vmatpush1.msra.mxu0 0.0
    %1708 = vmatprep.subr.mxu0 0.0
    %1709 = vmatpush1.msra.mxu0 0.0
    %1710 = vmatprep.subr.mxu0 0.0
    %1711 = vmatpush1.msra.mxu0 0.0
    %1712 = vmatprep.subr.mxu0 0.0
    %1713 = vmatpush1.msra.mxu0 0.0
    %1714 = vmatprep.subr.mxu0 0.0
    %1715 = vmatpush1.msra.mxu0 0.0
    %1716 = vmatprep.subr.mxu0 0.0
    %1717 = vmatpush1.msra.mxu0 0.0
    %1718 = vmatprep.subr.mxu0 0.0
    %1719 = vmatpush1.msra.mxu0 0.0
    %1720 = vmatprep.subr.mxu0 0.0
    %1721 = vmatpush1.msra.mxu0 0.0
    %1722 = vmatprep.subr.mxu0 0.0
    %1723 = vmatpush1.msra.mxu0 0.0
    %1724 = vmatprep.subr.mxu0 0.0
    %1725 = vmatpush1.msra.mxu0 0.0
    %1726 = vmatprep.subr.mxu0 0.0
    %1727 = vmatpush1.msra.mxu0 0.0
    %1728 = vmatprep.subr.mxu0 0.0
    %1729 = vmatpush1.msra.mxu0 0.0
    %1730 = vmatprep.subr.mxu0 0.0
    %1731 = vmatpush1.msra.mxu0 0.0
    %1732 = vmatprep.subr.mxu0 0.0
    %1733 = vmatpush1.msra.mxu0 0.0
    %1734 = vmatprep.subr.mxu0 0.0
    %1735 = vmatpush1.msra.mxu0 0.0
    %1736 = vmatprep.subr.mxu0 0.0
    %1737 = vmatpush1.msra.mxu0 0.0
    %1738 = vmatprep.subr.mxu0 0.0
    %1739 = vmatpush1.msra.mxu0 0.0
    %1740 = vmatprep.mubr.f32.mxu0 0.0
    %1741 = vmatmul.mubr.f32.gmra.mrb[0].mxu0 %v1415
    %v1742 = vpop.f32.mrb[0].mxu0
    %v1743 = vadd.f32 0.0, %v1742
    %v1744 = vpop.f32.mrb[0].mxu0
    %v1745 = vadd.f32 0.0, %v1744
    %1746 = vdwg.mxu0
    %1747 = vmatprep.subr.mxu0 %v1647
    %1748 = vmatpush1.msra.mxu0 %v1646
    %1749 = vmatprep.subr.mxu0 %v1651
    %1750 = vmatpush1.msra.mxu0 %v1650
    %1751 = vmatprep.subr.mxu0 %v1655
    %1752 = vmatpush1.msra.mxu0 %v1654
    %1753 = vmatprep.subr.mxu0 %v1659
    %1754 = vmatpush1.msra.mxu0 %v1658
    %1755 = vmatprep.subr.mxu0 %v1663
    %1756 = vmatpush1.msra.mxu0 %v1662
    %1757 = vmatprep.subr.mxu0 %v1667
    %1758 = vmatpush1.msra.mxu0 %v1666
    %1759 = vmatprep.subr.mxu0 %v1671
    %1760 = vmatpush1.msra.mxu0 %v1670
    %1761 = vmatprep.subr.mxu0 %v1675
    %1762 = vmatpush1.msra.mxu0 %v1674
    %1763 = vmatprep.subr.mxu0 0.0
    %1764 = vmatpush1.msra.mxu0 0.0
    %1765 = vmatprep.subr.mxu0 0.0
    %1766 = vmatpush1.msra.mxu0 0.0
    %1767 = vmatprep.subr.mxu0 0.0
    %1768 = vmatpush1.msra.mxu0 0.0
    %1769 = vmatprep.subr.mxu0 0.0
    %1770 = vmatpush1.msra.mxu0 0.0
    %1771 = vmatprep.subr.mxu0 0.0
    %1772 = vmatpush1.msra.mxu0 0.0
    %1773 = vmatprep.subr.mxu0 0.0
    %1774 = vmatpush1.msra.mxu0 0.0
    %1775 = vmatprep.subr.mxu0 0.0
    %1776 = vmatpush1.msra.mxu0 0.0
    %1777 = vmatprep.subr.mxu0 0.0
    %1778 = vmatpush1.msra.mxu0 0.0
    %1779 = vmatprep.subr.mxu0 0.0
    %1780 = vmatpush1.msra.mxu0 0.0
    %1781 = vmatprep.subr.mxu0 0.0
    %1782 = vmatpush1.msra.mxu0 0.0
    %1783 = vmatprep.subr.mxu0 0.0
    %1784 = vmatpush1.msra.mxu0 0.0
    %1785 = vmatprep.subr.mxu0 0.0
    %1786 = vmatpush1.msra.mxu0 0.0
    %1787 = vmatprep.subr.mxu0 0.0
    %1788 = vmatpush1.msra.mxu0 0.0
    %1789 = vmatprep.subr.mxu0 0.0
    %1790 = vmatpush1.msra.mxu0 0.0
    %1791 = vmatprep.subr.mxu0 0.0
    %1792 = vmatpush1.msra.mxu0 0.0
    %1793 = vmatprep.subr.mxu0 0.0
    %1794 = vmatpush1.msra.mxu0 0.0
    %1795 = vmatprep.subr.mxu0 0.0
    %1796 = vmatpush1.msra.mxu0 0.0
    %1797 = vmatprep.subr.mxu0 0.0
    %1798 = vmatpush1.msra.mxu0 0.0
    %1799 = vmatprep.subr.mxu0 0.0
    %1800 = vmatpush1.msra.mxu0 0.0
    %1801 = vmatprep.subr.mxu0 0.0
    %1802 = vmatpush1.msra.mxu0 0.0
    %1803 = vmatprep.subr.mxu0 0.0
    %1804 = vmatpush1.msra.mxu0 0.0
    %1805 = vmatprep.subr.mxu0 0.0
    %1806 = vmatpush1.msra.mxu0 0.0
    %1807 = vmatprep.subr.mxu0 0.0
    %1808 = vmatpush1.msra.mxu0 0.0
    %1809 = vmatprep.subr.mxu0 0.0
    %1810 = vmatpush1.msra.mxu0 0.0
    %1811 = vmatprep.mubr.f32.mxu0 0.0
    %1812 = vmatmul.mubr.f32.gmra.mrb[0].mxu0 %v1415
    %v1813 = vpop.f32.mrb[0].mxu0
    %v1814 = vadd.f32 0.0, %v1813
    %v1815 = vpop.f32.mrb[0].mxu0
    %v1816 = vadd.f32 0.0, %v1815
    %1817 = vdwg.mxu0
    %v1818 = vadd.f32 %v1640, %v1743
    %v1819 = vadd.f32 %v1641, %v1745
    %v1820 = vadd.f32 %v1642, %v1814
    %v1821 = vadd.f32 %v1643, %v1816
    %v1822 = vld [vmem:[%s4] sm:$0xf]
    %v1824 = vlaneseq
    %v1825 = vshrl.u32 %v1824, 7
    %v1826 = vsub.s32 0, %v1825
    %v1827 = vrot.slane %v1822, %v1826
    %v1828 = vlaneseq
    %v1829 = vshrl.u32 %v1828, 7
    %v1830 = vsub.s32 1, %v1829
    %v1831 = vrot.slane %v1822, %v1830
    %v1832 = vlaneseq
    %v1833 = vshrl.u32 %v1832, 7
    %v1834 = vsub.s32 2, %v1833
    %v1835 = vrot.slane %v1822, %v1834
    %v1836 = vlaneseq
    %v1837 = vshrl.u32 %v1836, 7
    %v1838 = vsub.s32 3, %v1837
    %v1839 = vrot.slane %v1822, %v1838
    %v1844 = vadd.f32 %v1818, %v1827
    %v1845 = vadd.f32 %v1819, %v1831
    %v1846 = vadd.f32 %v1820, %v1835
    %v1847 = vadd.f32 %v1821, %v1839
    %v1848 = vmul.f32 %v1844, 0.5
    %v1849 = vtanh.pop %v1848
    %v1850 = vmul.f32 %v1849, 0.5
    %v1851 = vadd.f32 %v1850, 0.5
    %v1852 = vmul.f32 %v1845, 0.5
    %v1853 = vtanh.pop %v1852
    %v1854 = vmul.f32 %v1853, 0.5
    %v1855 = vadd.f32 %v1854, 0.5
    %v1856 = vtanh.pop %v1846
    %v1857 = vmul.f32 %v1847, 0.5
    %v1858 = vtanh.pop %v1857
    %v1859 = vmul.f32 %v1858, 0.5
    %v1860 = vadd.f32 %v1859, 0.5
    %v1861 = vmul.f32 %v1855, %v1348
    %v1862 = vmul.f32 %v1851, %v1856
    %v1863 = vadd.f32 %v1861, %v1862
    %v1864 = vtanh.pop %v1863
    %v1865 = vmul.f32 %v1860, %v1864
    %v1866 = vld [vmem:[#allocation7] sm:$0xff]
    %v1867 = vld [vmem:[#allocation7 + $0x8] sm:$0xff]
    %v1868 = vld [vmem:[#allocation7 + $0x10] sm:$0xff]
    %v1869 = vld [vmem:[#allocation7 + $0x18] sm:$0xff]
    %v1870 = vld [vmem:[#allocation7 + $0x20] sm:$0xff]
    %v1871 = vld [vmem:[#allocation7 + $0x28] sm:$0xff]
    %v1872 = vld [vmem:[#allocation7 + $0x30] sm:$0xff]
    %v1873 = vld [vmem:[#allocation7 + $0x38] sm:$0xff]
    %v1874 = vld [vmem:[#allocation7 + $0x40] sm:$0xff]
    %v1875 = vld [vmem:[#allocation7 + $0x48] sm:$0xff]
    %v1876 = vld [vmem:[#allocation7 + $0x50] sm:$0xff]
    %v1877 = vld [vmem:[#allocation7 + $0x58] sm:$0xff]
    %v1878 = vld [vmem:[#allocation7 + $0x60] sm:$0xff]
    %v1879 = vld [vmem:[#allocation7 + $0x68] sm:$0xff]
    %v1880 = vld [vmem:[#allocation7 + $0x70] sm:$0xff]
    %v1881 = vld [vmem:[#allocation7 + $0x78] sm:$0xff]
    %v1882 = vld [vmem:[#allocation7 + $0x80] sm:$0xff]
    %v1883 = vld [vmem:[#allocation7 + $0x88] sm:$0xff]
    %v1884 = vld [vmem:[#allocation7 + $0x90] sm:$0xff]
    %v1885 = vld [vmem:[#allocation7 + $0x98] sm:$0xff]
    %v1886 = vld [vmem:[#allocation7 + $0xa0] sm:$0xff]
    %v1887 = vld [vmem:[#allocation7 + $0xa8] sm:$0xff]
    %v1888 = vld [vmem:[#allocation7 + $0xb0] sm:$0xff]
    %v1889 = vld [vmem:[#allocation7 + $0xb8] sm:$0xff]
    %v1890 = vld [vmem:[#allocation7 + $0xc0] sm:$0xff]
    %v1891 = vld [vmem:[#allocation7 + $0xc8] sm:$0xff]
    %v1892 = vld [vmem:[#allocation7 + $0xd0] sm:$0xff]
    %v1893 = vld [vmem:[#allocation7 + $0xd8] sm:$0xff]
    %v1894 = vld [vmem:[#allocation7 + $0xe0] sm:$0xff]
    %v1895 = vld [vmem:[#allocation7 + $0xe8] sm:$0xff]
    %v1896 = vld [vmem:[#allocation7 + $0xf0] sm:$0xff]
    %v1897 = vld [vmem:[#allocation7 + $0xf8] sm:$0xff]
    %v1898 = vld [vmem:[%s6] sm:$0xf]
    %1900 = vset.pattern.permute.xlu0 0
    %1901 = vperm.xlu0 %1900, %v1602
    %v1902 = vpop.permute.xlu0 %1901
    %v1905 = vlaneseq
    %v1906 = vshrl.u32 %v1905, 7
    %v1907 = vsub.s32 0, %v1906
    %v1908 = vrot.slane %v1898, %v1907
    %v1909 = vlaneseq
    %v1910 = vshrl.u32 %v1909, 7
    %v1911 = vsub.s32 1, %v1910
    %v1912 = vrot.slane %v1898, %v1911
    %v1913 = vlaneseq
    %v1914 = vshrl.u32 %v1913, 7
    %v1915 = vsub.s32 2, %v1914
    %v1916 = vrot.slane %v1898, %v1915
    %v1917 = vlaneseq
    %v1918 = vshrl.u32 %v1917, 7
    %v1919 = vsub.s32 3, %v1918
    %v1920 = vrot.slane %v1898, %v1919
    %v1925 = vmul.f32 %v1902, %v1908
    %v1926 = vmul.f32 %v1902, %v1912
    %v1927 = vmul.f32 %v1902, %v1916
    %v1928 = vmul.f32 %v1902, %v1920
    %v1930 = vsel %vm132, %v1865, 0
    %1932 = vmatprep.subr.mxu0 %v1867
    %1933 = vmatpush1.msra.mxu0 %v1866
    %1934 = vmatprep.subr.mxu0 %v1871
    %1935 = vmatpush1.msra.mxu0 %v1870
    %1936 = vmatprep.subr.mxu0 %v1875
    %1937 = vmatpush1.msra.mxu0 %v1874
    %1938 = vmatprep.subr.mxu0 %v1879
    %1939 = vmatpush1.msra.mxu0 %v1878
    %1940 = vmatprep.subr.mxu0 %v1883
    %1941 = vmatpush1.msra.mxu0 %v1882
    %1942 = vmatprep.subr.mxu0 %v1887
    %1943 = vmatpush1.msra.mxu0 %v1886
    %1944 = vmatprep.subr.mxu0 %v1891
    %1945 = vmatpush1.msra.mxu0 %v1890
    %1946 = vmatprep.subr.mxu0 %v1895
    %1947 = vmatpush1.msra.mxu0 %v1894
    %1948 = vmatprep.subr.mxu0 0.0
    %1949 = vmatpush1.msra.mxu0 0.0
    %1950 = vmatprep.subr.mxu0 0.0
    %1951 = vmatpush1.msra.mxu0 0.0
    %1952 = vmatprep.subr.mxu0 0.0
    %1953 = vmatpush1.msra.mxu0 0.0
    %1954 = vmatprep.subr.mxu0 0.0
    %1955 = vmatpush1.msra.mxu0 0.0
    %1956 = vmatprep.subr.mxu0 0.0
    %1957 = vmatpush1.msra.mxu0 0.0
    %1958 = vmatprep.subr.mxu0 0.0
    %1959 = vmatpush1.msra.mxu0 0.0
    %1960 = vmatprep.subr.mxu0 0.0
    %1961 = vmatpush1.msra.mxu0 0.0
    %1962 = vmatprep.subr.mxu0 0.0
    %1963 = vmatpush1.msra.mxu0 0.0
    %1964 = vmatprep.subr.mxu0 0.0
    %1965 = vmatpush1.msra.mxu0 0.0
    %1966 = vmatprep.subr.mxu0 0.0
    %1967 = vmatpush1.msra.mxu0 0.0
    %1968 = vmatprep.subr.mxu0 0.0
    %1969 = vmatpush1.msra.mxu0 0.0
    %1970 = vmatprep.subr.mxu0 0.0
    %1971 = vmatpush1.msra.mxu0 0.0
    %1972 = vmatprep.subr.mxu0 0.0
    %1973 = vmatpush1.msra.mxu0 0.0
    %1974 = vmatprep.subr.mxu0 0.0
    %1975 = vmatpush1.msra.mxu0 0.0
    %1976 = vmatprep.subr.mxu0 0.0
    %1977 = vmatpush1.msra.mxu0 0.0
    %1978 = vmatprep.subr.mxu0 0.0
    %1979 = vmatpush1.msra.mxu0 0.0
    %1980 = vmatprep.subr.mxu0 0.0
    %1981 = vmatpush1.msra.mxu0 0.0
    %1982 = vmatprep.subr.mxu0 0.0
    %1983 = vmatpush1.msra.mxu0 0.0
    %1984 = vmatprep.subr.mxu0 0.0
    %1985 = vmatpush1.msra.mxu0 0.0
    %1986 = vmatprep.subr.mxu0 0.0
    %1987 = vmatpush1.msra.mxu0 0.0
    %1988 = vmatprep.subr.mxu0 0.0
    %1989 = vmatpush1.msra.mxu0 0.0
    %1990 = vmatprep.subr.mxu0 0.0
    %1991 = vmatpush1.msra.mxu0 0.0
    %1992 = vmatprep.subr.mxu0 0.0
    %1993 = vmatpush1.msra.mxu0 0.0
    %1994 = vmatprep.subr.mxu0 0.0
    %1995 = vmatpush1.msra.mxu0 0.0
    %1996 = vmatprep.mubr.f32.mxu0 0.0
    %1997 = vmatmul.mubr.f32.gmra.mrb[0].mxu0 %v1930
    %v1998 = vpop.f32.mrb[0].mxu0
    %v1999 = vadd.f32 %v1925, %v1998
    %v2000 = vpop.f32.mrb[0].mxu0
    %v2001 = vadd.f32 %v1926, %v2000
    %2002 = vdwg.mxu0
    %2003 = vmatprep.subr.mxu0 %v1869
    %2004 = vmatpush1.msra.mxu0 %v1868
    %2005 = vmatprep.subr.mxu0 %v1873
    %2006 = vmatpush1.msra.mxu0 %v1872
    %2007 = vmatprep.subr.mxu0 %v1877
    %2008 = vmatpush1.msra.mxu0 %v1876
    %2009 = vmatprep.subr.mxu0 %v1881
    %2010 = vmatpush1.msra.mxu0 %v1880
    %2011 = vmatprep.subr.mxu0 %v1885
    %2012 = vmatpush1.msra.mxu0 %v1884
    %2013 = vmatprep.subr.mxu0 %v1889
    %2014 = vmatpush1.msra.mxu0 %v1888
    %2015 = vmatprep.subr.mxu0 %v1893
    %2016 = vmatpush1.msra.mxu0 %v1892
    %2017 = vmatprep.subr.mxu0 %v1897
    %2018 = vmatpush1.msra.mxu0 %v1896
    %2019 = vmatprep.subr.mxu0 0.0
    %2020 = vmatpush1.msra.mxu0 0.0
    %2021 = vmatprep.subr.mxu0 0.0
    %2022 = vmatpush1.msra.mxu0 0.0
    %2023 = vmatprep.subr.mxu0 0.0
    %2024 = vmatpush1.msra.mxu0 0.0
    %2025 = vmatprep.subr.mxu0 0.0
    %2026 = vmatpush1.msra.mxu0 0.0
    %2027 = vmatprep.subr.mxu0 0.0
    %2028 = vmatpush1.msra.mxu0 0.0
    %2029 = vmatprep.subr.mxu0 0.0
    %2030 = vmatpush1.msra.mxu0 0.0
    %2031 = vmatprep.subr.mxu0 0.0
    %2032 = vmatpush1.msra.mxu0 0.0
    %2033 = vmatprep.subr.mxu0 0.0
    %2034 = vmatpush1.msra.mxu0 0.0
    %2035 = vmatprep.subr.mxu0 0.0
    %2036 = vmatpush1.msra.mxu0 0.0
    %2037 = vmatprep.subr.mxu0 0.0
    %2038 = vmatpush1.msra.mxu0 0.0
    %2039 = vmatprep.subr.mxu0 0.0
    %2040 = vmatpush1.msra.mxu0 0.0
    %2041 = vmatprep.subr.mxu0 0.0
    %2042 = vmatpush1.msra.mxu0 0.0
    %2043 = vmatprep.subr.mxu0 0.0
    %2044 = vmatpush1.msra.mxu0 0.0
    %2045 = vmatprep.subr.mxu0 0.0
    %2046 = vmatpush1.msra.mxu0 0.0
    %2047 = vmatprep.subr.mxu0 0.0
    %2048 = vmatpush1.msra.mxu0 0.0
    %2049 = vmatprep.subr.mxu0 0.0
    %2050 = vmatpush1.msra.mxu0 0.0
    %2051 = vmatprep.subr.mxu0 0.0
    %2052 = vmatpush1.msra.mxu0 0.0
    %2053 = vmatprep.subr.mxu0 0.0
    %2054 = vmatpush1.msra.mxu0 0.0
    %2055 = vmatprep.subr.mxu0 0.0
    %2056 = vmatpush1.msra.mxu0 0.0
    %2057 = vmatprep.subr.mxu0 0.0
    %2058 = vmatpush1.msra.mxu0 0.0
    %2059 = vmatprep.subr.mxu0 0.0
    %2060 = vmatpush1.msra.mxu0 0.0
    %2061 = vmatprep.subr.mxu0 0.0
    %2062 = vmatpush1.msra.mxu0 0.0
    %2063 = vmatprep.subr.mxu0 0.0
    %2064 = vmatpush1.msra.mxu0 0.0
    %2065 = vmatprep.subr.mxu0 0.0
    %2066 = vmatpush1.msra.mxu0 0.0
    %2067 = vmatprep.mubr.f32.mxu0 0.0
    %2068 = vmatmul.mubr.f32.gmra.mrb[0].mxu0 %v1930
    %v2069 = vpop.f32.mrb[0].mxu0
    %v2070 = vadd.f32 %v1927, %v2069
    %v2071 = vpop.f32.mrb[0].mxu0
    %v2072 = vadd.f32 %v1928, %v2071
    %2073 = vdwg.mxu0
    %v2074 = vld [vmem:[%s7] sm:$0xf]
    %v2076 = vlaneseq
    %v2077 = vshrl.u32 %v2076, 7
    %v2078 = vsub.s32 0, %v2077
    %v2079 = vrot.slane %v2074, %v2078
    %v2080 = vlaneseq
    %v2081 = vshrl.u32 %v2080, 7
    %v2082 = vsub.s32 1, %v2081
    %v2083 = vrot.slane %v2074, %v2082
    %v2084 = vlaneseq
    %v2085 = vshrl.u32 %v2084, 7
    %v2086 = vsub.s32 2, %v2085
    %v2087 = vrot.slane %v2074, %v2086
    %v2088 = vlaneseq
    %v2089 = vshrl.u32 %v2088, 7
    %v2090 = vsub.s32 3, %v2089
    %v2091 = vrot.slane %v2074, %v2090
    %v2096 = vadd.f32 %v1999, %v2079
    %v2097 = vadd.f32 %v2001, %v2083
    %v2098 = vadd.f32 %v2070, %v2087
    %v2099 = vadd.f32 %v2072, %v2091
    %v2100 = vmul.f32 %v2096, 0.5
    %v2101 = vtanh.pop %v2100
    %v2102 = vmul.f32 %v2101, 0.5
    %v2103 = vadd.f32 %v2102, 0.5
    %v2104 = vmul.f32 %v2097, 0.5
    %v2105 = vtanh.pop %v2104
    %v2106 = vmul.f32 %v2105, 0.5
    %v2107 = vadd.f32 %v2106, 0.5
    %v2108 = vtanh.pop %v2098
    %v2109 = vmul.f32 %v2099, 0.5
    %v2110 = vtanh.pop %v2109
    %v2111 = vmul.f32 %v2110, 0.5
    %v2112 = vadd.f32 %v2111, 0.5
    %v2113 = vmul.f32 %v2107, %v1600
    %v2114 = vmul.f32 %v2103, %v2108
    %v2115 = vadd.f32 %v2113, %v2114
    %v2116 = vtanh.pop %v2115
    %v2117 = vmul.f32 %v2112, %v2116
    %s2118 = scalar_lea.vmem %s8, 6
    %2119 = vst.msk [vmem:[%s2118] sm:$0x3] %vm573, %v2117
    %s2120 = scalar_lea.vmem %s1, 8
    %v2121 = vld [vmem:[%s2120] sm:$0x3]
    %s2122 = sld [smem:[#allocation3 + $0x4]]
    %p2123 = scmp.ne.s32.totalorder %s2122, 0
    %s2124 = scalar_select %p2123, 1, 0
    %v2125 = vstv %s2124
    %vm2126 = vcmp.eq.s32.totalorder %v2125, 1
    %v2127 = vsel %vm2126, %v2121, %v2117
    %v2128 = vld [vmem:[%s2] sm:$0xf]
    %2130 = vset.pattern.permute.xlu0 0
    %2131 = vperm.xlu0 %2130, %v2127
    %v2132 = vpop.permute.xlu0 %2131
    %v2135 = vlaneseq
    %v2136 = vshrl.u32 %v2135, 7
    %v2137 = vsub.s32 0, %v2136
    %v2138 = vrot.slane %v2128, %v2137
    %v2139 = vlaneseq
    %v2140 = vshrl.u32 %v2139, 7
    %v2141 = vsub.s32 1, %v2140
    %v2142 = vrot.slane %v2128, %v2141
    %v2143 = vlaneseq
    %v2144 = vshrl.u32 %v2143, 7
    %v2145 = vsub.s32 2, %v2144
    %v2146 = vrot.slane %v2128, %v2145
    %v2147 = vlaneseq
    %v2148 = vshrl.u32 %v2147, 7
    %v2149 = vsub.s32 3, %v2148
    %v2150 = vrot.slane %v2128, %v2149
    %v2155 = vmul.f32 %v2132, %v2138
    %v2156 = vmul.f32 %v2132, %v2142
    %v2157 = vmul.f32 %v2132, %v2146
    %v2158 = vmul.f32 %v2132, %v2150
    %v2159 = vld [vmem:[#allocation4] sm:$0xff]
    %v2160 = vld [vmem:[#allocation4 + $0x8] sm:$0xff]
    %v2161 = vld [vmem:[#allocation4 + $0x10] sm:$0xff]
    %v2162 = vld [vmem:[#allocation4 + $0x18] sm:$0xff]
    %v2163 = vld [vmem:[#allocation4 + $0x20] sm:$0xff]
    %v2164 = vld [vmem:[#allocation4 + $0x28] sm:$0xff]
    %v2165 = vld [vmem:[#allocation4 + $0x30] sm:$0xff]
    %v2166 = vld [vmem:[#allocation4 + $0x38] sm:$0xff]
    %v2167 = vld [vmem:[#allocation4 + $0x40] sm:$0xff]
    %v2168 = vld [vmem:[#allocation4 + $0x48] sm:$0xff]
    %v2169 = vld [vmem:[#allocation4 + $0x50] sm:$0xff]
    %v2170 = vld [vmem:[#allocation4 + $0x58] sm:$0xff]
    %v2171 = vld [vmem:[#allocation4 + $0x60] sm:$0xff]
    %v2172 = vld [vmem:[#allocation4 + $0x68] sm:$0xff]
    %v2173 = vld [vmem:[#allocation4 + $0x70] sm:$0xff]
    %v2174 = vld [vmem:[#allocation4 + $0x78] sm:$0xff]
    %v2175 = vld [vmem:[#allocation4 + $0x80] sm:$0xff]
    %v2176 = vld [vmem:[#allocation4 + $0x88] sm:$0xff]
    %v2177 = vld [vmem:[#allocation4 + $0x90] sm:$0xff]
    %v2178 = vld [vmem:[#allocation4 + $0x98] sm:$0xff]
    %v2179 = vld [vmem:[#allocation4 + $0xa0] sm:$0xff]
    %v2180 = vld [vmem:[#allocation4 + $0xa8] sm:$0xff]
    %v2181 = vld [vmem:[#allocation4 + $0xb0] sm:$0xff]
    %v2182 = vld [vmem:[#allocation4 + $0xb8] sm:$0xff]
    %v2183 = vld [vmem:[#allocation4 + $0xc0] sm:$0xff]
    %v2184 = vld [vmem:[#allocation4 + $0xc8] sm:$0xff]
    %v2185 = vld [vmem:[#allocation4 + $0xd0] sm:$0xff]
    %v2186 = vld [vmem:[#allocation4 + $0xd8] sm:$0xff]
    %v2187 = vld [vmem:[#allocation4 + $0xe0] sm:$0xff]
    %v2188 = vld [vmem:[#allocation4 + $0xe8] sm:$0xff]
    %v2189 = vld [vmem:[#allocation4 + $0xf0] sm:$0xff]
    %v2190 = vld [vmem:[#allocation4 + $0xf8] sm:$0xff]
    %2191 = vmatprep.subr.mxu0 %v2160
    %2192 = vmatpush1.msra.mxu0 %v2159
    %2193 = vmatprep.subr.mxu0 %v2164
    %2194 = vmatpush1.msra.mxu0 %v2163
    %2195 = vmatprep.subr.mxu0 %v2168
    %2196 = vmatpush1.msra.mxu0 %v2167
    %2197 = vmatprep.subr.mxu0 %v2172
    %2198 = vmatpush1.msra.mxu0 %v2171
    %2199 = vmatprep.subr.mxu0 %v2176
    %2200 = vmatpush1.msra.mxu0 %v2175
    %2201 = vmatprep.subr.mxu0 %v2180
    %2202 = vmatpush1.msra.mxu0 %v2179
    %2203 = vmatprep.subr.mxu0 %v2184
    %2204 = vmatpush1.msra.mxu0 %v2183
    %2205 = vmatprep.subr.mxu0 %v2188
    %2206 = vmatpush1.msra.mxu0 %v2187
    %2207 = vmatprep.subr.mxu0 0.0
    %2208 = vmatpush1.msra.mxu0 0.0
    %2209 = vmatprep.subr.mxu0 0.0
    %2210 = vmatpush1.msra.mxu0 0.0
    %2211 = vmatprep.subr.mxu0 0.0
    %2212 = vmatpush1.msra.mxu0 0.0
    %2213 = vmatprep.subr.mxu0 0.0
    %2214 = vmatpush1.msra.mxu0 0.0
    %2215 = vmatprep.subr.mxu0 0.0
    %2216 = vmatpush1.msra.mxu0 0.0
    %2217 = vmatprep.subr.mxu0 0.0
    %2218 = vmatpush1.msra.mxu0 0.0
    %2219 = vmatprep.subr.mxu0 0.0
    %2220 = vmatpush1.msra.mxu0 0.0
    %2221 = vmatprep.subr.mxu0 0.0
    %2222 = vmatpush1.msra.mxu0 0.0
    %2223 = vmatprep.subr.mxu0 0.0
    %2224 = vmatpush1.msra.mxu0 0.0
    %2225 = vmatprep.subr.mxu0 0.0
    %2226 = vmatpush1.msra.mxu0 0.0
    %2227 = vmatprep.subr.mxu0 0.0
    %2228 = vmatpush1.msra.mxu0 0.0
    %2229 = vmatprep.subr.mxu0 0.0
    %2230 = vmatpush1.msra.mxu0 0.0
    %2231 = vmatprep.subr.mxu0 0.0
    %2232 = vmatpush1.msra.mxu0 0.0
    %2233 = vmatprep.subr.mxu0 0.0
    %2234 = vmatpush1.msra.mxu0 0.0
    %2235 = vmatprep.subr.mxu0 0.0
    %2236 = vmatpush1.msra.mxu0 0.0
    %2237 = vmatprep.subr.mxu0 0.0
    %2238 = vmatpush1.msra.mxu0 0.0
    %2239 = vmatprep.subr.mxu0 0.0
    %2240 = vmatpush1.msra.mxu0 0.0
    %2241 = vmatprep.subr.mxu0 0.0
    %2242 = vmatpush1.msra.mxu0 0.0
    %2243 = vmatprep.subr.mxu0 0.0
    %2244 = vmatpush1.msra.mxu0 0.0
    %2245 = vmatprep.subr.mxu0 0.0
    %2246 = vmatpush1.msra.mxu0 0.0
    %2247 = vmatprep.subr.mxu0 0.0
    %2248 = vmatpush1.msra.mxu0 0.0
    %2249 = vmatprep.subr.mxu0 0.0
    %2250 = vmatpush1.msra.mxu0 0.0
    %2251 = vmatprep.subr.mxu0 0.0
    %2252 = vmatpush1.msra.mxu0 0.0
    %2253 = vmatprep.subr.mxu0 0.0
    %2254 = vmatpush1.msra.mxu0 0.0
    %2255 = vmatprep.mubr.f32.mxu0 0.0
    %2256 = vmatmul.mubr.f32.gmra.mrb[0].mxu0 %v1930
    %v2257 = vpop.f32.mrb[0].mxu0
    %v2258 = vadd.f32 0.0, %v2257
    %v2259 = vpop.f32.mrb[0].mxu0
    %v2260 = vadd.f32 0.0, %v2259
    %2261 = vdwg.mxu0
    %2262 = vmatprep.subr.mxu0 %v2162
    %2263 = vmatpush1.msra.mxu0 %v2161
    %2264 = vmatprep.subr.mxu0 %v2166
    %2265 = vmatpush1.msra.mxu0 %v2165
    %2266 = vmatprep.subr.mxu0 %v2170
    %2267 = vmatpush1.msra.mxu0 %v2169
    %2268 = vmatprep.subr.mxu0 %v2174
    %2269 = vmatpush1.msra.mxu0 %v2173
    %2270 = vmatprep.subr.mxu0 %v2178
    %2271 = vmatpush1.msra.mxu0 %v2177
    %2272 = vmatprep.subr.mxu0 %v2182
    %2273 = vmatpush1.msra.mxu0 %v2181
    %2274 = vmatprep.subr.mxu0 %v2186
    %2275 = vmatpush1.msra.mxu0 %v2185
    %2276 = vmatprep.subr.mxu0 %v2190
    %2277 = vmatpush1.msra.mxu0 %v2189
    %2278 = vmatprep.subr.mxu0 0.0
    %2279 = vmatpush1.msra.mxu0 0.0
    %2280 = vmatprep.subr.mxu0 0.0
    %2281 = vmatpush1.msra.mxu0 0.0
    %2282 = vmatprep.subr.mxu0 0.0
    %2283 = vmatpush1.msra.mxu0 0.0
    %2284 = vmatprep.subr.mxu0 0.0
    %2285 = vmatpush1.msra.mxu0 0.0
    %2286 = vmatprep.subr.mxu0 0.0
    %2287 = vmatpush1.msra.mxu0 0.0
    %2288 = vmatprep.subr.mxu0 0.0
    %2289 = vmatpush1.msra.mxu0 0.0
    %2290 = vmatprep.subr.mxu0 0.0
    %2291 = vmatpush1.msra.mxu0 0.0
    %2292 = vmatprep.subr.mxu0 0.0
    %2293 = vmatpush1.msra.mxu0 0.0
    %2294 = vmatprep.subr.mxu0 0.0
    %2295 = vmatpush1.msra.mxu0 0.0
    %2296 = vmatprep.subr.mxu0 0.0
    %2297 = vmatpush1.msra.mxu0 0.0
    %2298 = vmatprep.subr.mxu0 0.0
    %2299 = vmatpush1.msra.mxu0 0.0
    %2300 = vmatprep.subr.mxu0 0.0
    %2301 = vmatpush1.msra.mxu0 0.0
    %2302 = vmatprep.subr.mxu0 0.0
    %2303 = vmatpush1.msra.mxu0 0.0
    %2304 = vmatprep.subr.mxu0 0.0
    %2305 = vmatpush1.msra.mxu0 0.0
    %2306 = vmatprep.subr.mxu0 0.0
    %2307 = vmatpush1.msra.mxu0 0.0
    %2308 = vmatprep.subr.mxu0 0.0
    %2309 = vmatpush1.msra.mxu0 0.0
    %2310 = vmatprep.subr.mxu0 0.0
    %2311 = vmatpush1.msra.mxu0 0.0
    %2312 = vmatprep.subr.mxu0 0.0
    %2313 = vmatpush1.msra.mxu0 0.0
    %2314 = vmatprep.subr.mxu0 0.0
    %2315 = vmatpush1.msra.mxu0 0.0
    %2316 = vmatprep.subr.mxu0 0.0
    %2317 = vmatpush1.msra.mxu0 0.0
    %2318 = vmatprep.subr.mxu0 0.0
    %2319 = vmatpush1.msra.mxu0 0.0
    %2320 = vmatprep.subr.mxu0 0.0
    %2321 = vmatpush1.msra.mxu0 0.0
    %2322 = vmatprep.subr.mxu0 0.0
    %2323 = vmatpush1.msra.mxu0 0.0
    %2324 = vmatprep.subr.mxu0 0.0
    %2325 = vmatpush1.msra.mxu0 0.0
    %2326 = vmatprep.mubr.f32.mxu0 0.0
    %2327 = vmatmul.mubr.f32.gmra.mrb[0].mxu0 %v1930
    %v2328 = vpop.f32.mrb[0].mxu0
    %v2329 = vadd.f32 0.0, %v2328
    %v2330 = vpop.f32.mrb[0].mxu0
    %v2331 = vadd.f32 0.0, %v2330
    %2332 = vdwg.mxu0
    %v2333 = vadd.f32 %v2155, %v2258
    %v2334 = vadd.f32 %v2156, %v2260
    %v2335 = vadd.f32 %v2157, %v2329
    %v2336 = vadd.f32 %v2158, %v2331
    %v2337 = vld [vmem:[%s4] sm:$0xf]
    %v2339 = vlaneseq
    %v2340 = vshrl.u32 %v2339, 7
    %v2341 = vsub.s32 0, %v2340
    %v2342 = vrot.slane %v2337, %v2341
    %v2343 = vlaneseq
    %v2344 = vshrl.u32 %v2343, 7
    %v2345 = vsub.s32 1, %v2344
    %v2346 = vrot.slane %v2337, %v2345
    %v2347 = vlaneseq
    %v2348 = vshrl.u32 %v2347, 7
    %v2349 = vsub.s32 2, %v2348
    %v2350 = vrot.slane %v2337, %v2349
    %v2351 = vlaneseq
    %v2352 = vshrl.u32 %v2351, 7
    %v2353 = vsub.s32 3, %v2352
    %v2354 = vrot.slane %v2337, %v2353
    %v2359 = vadd.f32 %v2333, %v2342
    %v2360 = vadd.f32 %v2334, %v2346
    %v2361 = vadd.f32 %v2335, %v2350
    %v2362 = vadd.f32 %v2336, %v2354
    %v2363 = vmul.f32 %v2359, 0.5
    %v2364 = vtanh.pop %v2363
    %v2365 = vmul.f32 %v2364, 0.5
    %v2366 = vadd.f32 %v2365, 0.5
    %v2367 = vmul.f32 %v2360, 0.5
    %v2368 = vtanh.pop %v2367
    %v2369 = vmul.f32 %v2368, 0.5
    %v2370 = vadd.f32 %v2369, 0.5
    %v2371 = vtanh.pop %v2361
    %v2372 = vmul.f32 %v2362, 0.5
    %v2373 = vtanh.pop %v2372
    %v2374 = vmul.f32 %v2373, 0.5
    %v2375 = vadd.f32 %v2374, 0.5
    %v2376 = vmul.f32 %v2370, %v1863
    %v2377 = vmul.f32 %v2366, %v2371
    %v2378 = vadd.f32 %v2376, %v2377
    %v2379 = vtanh.pop %v2378
    %v2380 = vmul.f32 %v2375, %v2379
    %v2381 = vld [vmem:[#allocation7] sm:$0xff]
    %v2382 = vld [vmem:[#allocation7 + $0x8] sm:$0xff]
    %v2383 = vld [vmem:[#allocation7 + $0x10] sm:$0xff]
    %v2384 = vld [vmem:[#allocation7 + $0x18] sm:$0xff]
    %v2385 = vld [vmem:[#allocation7 + $0x20] sm:$0xff]
    %v2386 = vld [vmem:[#allocation7 + $0x28] sm:$0xff]
    %v2387 = vld [vmem:[#allocation7 + $0x30] sm:$0xff]
    %v2388 = vld [vmem:[#allocation7 + $0x38] sm:$0xff]
    %v2389 = vld [vmem:[#allocation7 + $0x40] sm:$0xff]
    %v2390 = vld [vmem:[#allocation7 + $0x48] sm:$0xff]
    %v2391 = vld [vmem:[#allocation7 + $0x50] sm:$0xff]
    %v2392 = vld [vmem:[#allocation7 + $0x58] sm:$0xff]
    %v2393 = vld [vmem:[#allocation7 + $0x60] sm:$0xff]
    %v2394 = vld [vmem:[#allocation7 + $0x68] sm:$0xff]
    %v2395 = vld [vmem:[#allocation7 + $0x70] sm:$0xff]
    %v2396 = vld [vmem:[#allocation7 + $0x78] sm:$0xff]
    %v2397 = vld [vmem:[#allocation7 + $0x80] sm:$0xff]
    %v2398 = vld [vmem:[#allocation7 + $0x88] sm:$0xff]
    %v2399 = vld [vmem:[#allocation7 + $0x90] sm:$0xff]
    %v2400 = vld [vmem:[#allocation7 + $0x98] sm:$0xff]
    %v2401 = vld [vmem:[#allocation7 + $0xa0] sm:$0xff]
    %v2402 = vld [vmem:[#allocation7 + $0xa8] sm:$0xff]
    %v2403 = vld [vmem:[#allocation7 + $0xb0] sm:$0xff]
    %v2404 = vld [vmem:[#allocation7 + $0xb8] sm:$0xff]
    %v2405 = vld [vmem:[#allocation7 + $0xc0] sm:$0xff]
    %v2406 = vld [vmem:[#allocation7 + $0xc8] sm:$0xff]
    %v2407 = vld [vmem:[#allocation7 + $0xd0] sm:$0xff]
    %v2408 = vld [vmem:[#allocation7 + $0xd8] sm:$0xff]
    %v2409 = vld [vmem:[#allocation7 + $0xe0] sm:$0xff]
    %v2410 = vld [vmem:[#allocation7 + $0xe8] sm:$0xff]
    %v2411 = vld [vmem:[#allocation7 + $0xf0] sm:$0xff]
    %v2412 = vld [vmem:[#allocation7 + $0xf8] sm:$0xff]
    %v2413 = vld [vmem:[%s6] sm:$0xf]
    %2415 = vset.pattern.permute.xlu0 0
    %2416 = vperm.xlu0 %2415, %v2117
    %v2417 = vpop.permute.xlu0 %2416
    %v2420 = vlaneseq
    %v2421 = vshrl.u32 %v2420, 7
    %v2422 = vsub.s32 0, %v2421
    %v2423 = vrot.slane %v2413, %v2422
    %v2424 = vlaneseq
    %v2425 = vshrl.u32 %v2424, 7
    %v2426 = vsub.s32 1, %v2425
    %v2427 = vrot.slane %v2413, %v2426
    %v2428 = vlaneseq
    %v2429 = vshrl.u32 %v2428, 7
    %v2430 = vsub.s32 2, %v2429
    %v2431 = vrot.slane %v2413, %v2430
    %v2432 = vlaneseq
    %v2433 = vshrl.u32 %v2432, 7
    %v2434 = vsub.s32 3, %v2433
    %v2435 = vrot.slane %v2413, %v2434
    %v2440 = vmul.f32 %v2417, %v2423
    %v2441 = vmul.f32 %v2417, %v2427
    %v2442 = vmul.f32 %v2417, %v2431
    %v2443 = vmul.f32 %v2417, %v2435
    %v2445 = vsel %vm132, %v2380, 0
    %2447 = vmatprep.subr.mxu0 %v2382
    %2448 = vmatpush1.msra.mxu0 %v2381
    %2449 = vmatprep.subr.mxu0 %v2386
    %2450 = vmatpush1.msra.mxu0 %v2385
    %2451 = vmatprep.subr.mxu0 %v2390
    %2452 = vmatpush1.msra.mxu0 %v2389
    %2453 = vmatprep.subr.mxu0 %v2394
    %2454 = vmatpush1.msra.mxu0 %v2393
    %2455 = vmatprep.subr.mxu0 %v2398
    %2456 = vmatpush1.msra.mxu0 %v2397
    %2457 = vmatprep.subr.mxu0 %v2402
    %2458 = vmatpush1.msra.mxu0 %v2401
    %2459 = vmatprep.subr.mxu0 %v2406
    %2460 = vmatpush1.msra.mxu0 %v2405
    %2461 = vmatprep.subr.mxu0 %v2410
    %2462 = vmatpush1.msra.mxu0 %v2409
    %2463 = vmatprep.subr.mxu0 0.0
    %2464 = vmatpush1.msra.mxu0 0.0
    %2465 = vmatprep.subr.mxu0 0.0
    %2466 = vmatpush1.msra.mxu0 0.0
    %2467 = vmatprep.subr.mxu0 0.0
    %2468 = vmatpush1.msra.mxu0 0.0
    %2469 = vmatprep.subr.mxu0 0.0
    %2470 = vmatpush1.msra.mxu0 0.0
    %2471 = vmatprep.subr.mxu0 0.0
    %2472 = vmatpush1.msra.mxu0 0.0
    %2473 = vmatprep.subr.mxu0 0.0
    %2474 = vmatpush1.msra.mxu0 0.0
    %2475 = vmatprep.subr.mxu0 0.0
    %2476 = vmatpush1.msra.mxu0 0.0
    %2477 = vmatprep.subr.mxu0 0.0
    %2478 = vmatpush1.msra.mxu0 0.0
    %2479 = vmatprep.subr.mxu0 0.0
    %2480 = vmatpush1.msra.mxu0 0.0
    %2481 = vmatprep.subr.mxu0 0.0
    %2482 = vmatpush1.msra.mxu0 0.0
    %2483 = vmatprep.subr.mxu0 0.0
    %2484 = vmatpush1.msra.mxu0 0.0
    %2485 = vmatprep.subr.mxu0 0.0
    %2486 = vmatpush1.msra.mxu0 0.0
    %2487 = vmatprep.subr.mxu0 0.0
    %2488 = vmatpush1.msra.mxu0 0.0
    %2489 = vmatprep.subr.mxu0 0.0
    %2490 = vmatpush1.msra.mxu0 0.0
    %2491 = vmatprep.subr.mxu0 0.0
    %2492 = vmatpush1.msra.mxu0 0.0
    %2493 = vmatprep.subr.mxu0 0.0
    %2494 = vmatpush1.msra.mxu0 0.0
    %2495 = vmatprep.subr.mxu0 0.0
    %2496 = vmatpush1.msra.mxu0 0.0
    %2497 = vmatprep.subr.mxu0 0.0
    %2498 = vmatpush1.msra.mxu0 0.0
    %2499 = vmatprep.subr.mxu0 0.0
    %2500 = vmatpush1.msra.mxu0 0.0
    %2501 = vmatprep.subr.mxu0 0.0
    %2502 = vmatpush1.msra.mxu0 0.0
    %2503 = vmatprep.subr.mxu0 0.0
    %2504 = vmatpush1.msra.mxu0 0.0
    %2505 = vmatprep.subr.mxu0 0.0
    %2506 = vmatpush1.msra.mxu0 0.0
    %2507 = vmatprep.subr.mxu0 0.0
    %2508 = vmatpush1.msra.mxu0 0.0
    %2509 = vmatprep.subr.mxu0 0.0
    %2510 = vmatpush1.msra.mxu0 0.0
    %2511 = vmatprep.mubr.f32.mxu0 0.0
    %2512 = vmatmul.mubr.f32.gmra.mrb[0].mxu0 %v2445
    %v2513 = vpop.f32.mrb[0].mxu0
    %v2514 = vadd.f32 %v2440, %v2513
    %v2515 = vpop.f32.mrb[0].mxu0
    %v2516 = vadd.f32 %v2441, %v2515
    %2517 = vdwg.mxu0
    %2518 = vmatprep.subr.mxu0 %v2384
    %2519 = vmatpush1.msra.mxu0 %v2383
    %2520 = vmatprep.subr.mxu0 %v2388
    %2521 = vmatpush1.msra.mxu0 %v2387
    %2522 = vmatprep.subr.mxu0 %v2392
    %2523 = vmatpush1.msra.mxu0 %v2391
    %2524 = vmatprep.subr.mxu0 %v2396
    %2525 = vmatpush1.msra.mxu0 %v2395
    %2526 = vmatprep.subr.mxu0 %v2400
    %2527 = vmatpush1.msra.mxu0 %v2399
    %2528 = vmatprep.subr.mxu0 %v2404
    %2529 = vmatpush1.msra.mxu0 %v2403
    %2530 = vmatprep.subr.mxu0 %v2408
    %2531 = vmatpush1.msra.mxu0 %v2407
    %2532 = vmatprep.subr.mxu0 %v2412
    %2533 = vmatpush1.msra.mxu0 %v2411
    %2534 = vmatprep.subr.mxu0 0.0
    %2535 = vmatpush1.msra.mxu0 0.0
    %2536 = vmatprep.subr.mxu0 0.0
    %2537 = vmatpush1.msra.mxu0 0.0
    %2538 = vmatprep.subr.mxu0 0.0
    %2539 = vmatpush1.msra.mxu0 0.0
    %2540 = vmatprep.subr.mxu0 0.0
    %2541 = vmatpush1.msra.mxu0 0.0
    %2542 = vmatprep.subr.mxu0 0.0
    %2543 = vmatpush1.msra.mxu0 0.0
    %2544 = vmatprep.subr.mxu0 0.0
    %2545 = vmatpush1.msra.mxu0 0.0
    %2546 = vmatprep.subr.mxu0 0.0
    %2547 = vmatpush1.msra.mxu0 0.0
    %2548 = vmatprep.subr.mxu0 0.0
    %2549 = vmatpush1.msra.mxu0 0.0
    %2550 = vmatprep.subr.mxu0 0.0
    %2551 = vmatpush1.msra.mxu0 0.0
    %2552 = vmatprep.subr.mxu0 0.0
    %2553 = vmatpush1.msra.mxu0 0.0
    %2554 = vmatprep.subr.mxu0 0.0
    %2555 = vmatpush1.msra.mxu0 0.0
    %2556 = vmatprep.subr.mxu0 0.0
    %2557 = vmatpush1.msra.mxu0 0.0
    %2558 = vmatprep.subr.mxu0 0.0
    %2559 = vmatpush1.msra.mxu0 0.0
    %2560 = vmatprep.subr.mxu0 0.0
    %2561 = vmatpush1.msra.mxu0 0.0
    %2562 = vmatprep.subr.mxu0 0.0
    %2563 = vmatpush1.msra.mxu0 0.0
    %2564 = vmatprep.subr.mxu0 0.0
    %2565 = vmatpush1.msra.mxu0 0.0
    %2566 = vmatprep.subr.mxu0 0.0
    %2567 = vmatpush1.msra.mxu0 0.0
    %2568 = vmatprep.subr.mxu0 0.0
    %2569 = vmatpush1.msra.mxu0 0.0
    %2570 = vmatprep.subr.mxu0 0.0
    %2571 = vmatpush1.msra.mxu0 0.0
    %2572 = vmatprep.subr.mxu0 0.0
    %2573 = vmatpush1.msra.mxu0 0.0
    %2574 = vmatprep.subr.mxu0 0.0
    %2575 = vmatpush1.msra.mxu0 0.0
    %2576 = vmatprep.subr.mxu0 0.0
    %2577 = vmatpush1.msra.mxu0 0.0
    %2578 = vmatprep.subr.mxu0 0.0
    %2579 = vmatpush1.msra.mxu0 0.0
    %2580 = vmatprep.subr.mxu0 0.0
    %2581 = vmatpush1.msra.mxu0 0.0
    %2582 = vmatprep.mubr.f32.mxu0 0.0
    %2583 = vmatmul.mubr.f32.gmra.mrb[0].mxu0 %v2445
    %v2584 = vpop.f32.mrb[0].mxu0
    %v2585 = vadd.f32 %v2442, %v2584
    %v2586 = vpop.f32.mrb[0].mxu0
    %v2587 = vadd.f32 %v2443, %v2586
    %2588 = vdwg.mxu0
    %v2589 = vld [vmem:[%s7] sm:$0xf]
    %v2591 = vlaneseq
    %v2592 = vshrl.u32 %v2591, 7
    %v2593 = vsub.s32 0, %v2592
    %v2594 = vrot.slane %v2589, %v2593
    %v2595 = vlaneseq
    %v2596 = vshrl.u32 %v2595, 7
    %v2597 = vsub.s32 1, %v2596
    %v2598 = vrot.slane %v2589, %v2597
    %v2599 = vlaneseq
    %v2600 = vshrl.u32 %v2599, 7
    %v2601 = vsub.s32 2, %v2600
    %v2602 = vrot.slane %v2589, %v2601
    %v2603 = vlaneseq
    %v2604 = vshrl.u32 %v2603, 7
    %v2605 = vsub.s32 3, %v2604
    %v2606 = vrot.slane %v2589, %v2605
    %v2611 = vadd.f32 %v2514, %v2594
    %v2612 = vadd.f32 %v2516, %v2598
    %v2613 = vadd.f32 %v2585, %v2602
    %v2614 = vadd.f32 %v2587, %v2606
    %v2615 = vmul.f32 %v2611, 0.5
    %v2616 = vtanh.pop %v2615
    %v2617 = vmul.f32 %v2616, 0.5
    %v2618 = vadd.f32 %v2617, 0.5
    %v2619 = vmul.f32 %v2612, 0.5
    %v2620 = vtanh.pop %v2619
    %v2621 = vmul.f32 %v2620, 0.5
    %v2622 = vadd.f32 %v2621, 0.5
    %v2623 = vtanh.pop %v2613
    %v2624 = vmul.f32 %v2614, 0.5
    %v2625 = vtanh.pop %v2624
    %v2626 = vmul.f32 %v2625, 0.5
    %v2627 = vadd.f32 %v2626, 0.5
    %v2628 = vmul.f32 %v2622, %v2115
    %v2629 = vmul.f32 %v2618, %v2623
    %v2630 = vadd.f32 %v2628, %v2629
    %v2631 = vtanh.pop %v2630
    %v2632 = vmul.f32 %v2627, %v2631
    %s2633 = scalar_lea.vmem %s8, 8
    %2634 = vst.msk [vmem:[%s2633] sm:$0x3] %vm573, %v2632
    %s2635 = scalar_lea.vmem %s1, 10
    %v2636 = vld [vmem:[%s2635] sm:$0x3]
    %s2637 = sld [smem:[#allocation3 + $0x5]]
    %p2638 = scmp.ne.s32.totalorder %s2637, 0
    %s2639 = scalar_select %p2638, 1, 0
    %v2640 = vstv %s2639
    %vm2641 = vcmp.eq.s32.totalorder %v2640, 1
    %v2642 = vsel %vm2641, %v2636, %v2632
    %v2643 = vld [vmem:[%s2] sm:$0xf]
    %2645 = vset.pattern.permute.xlu0 0
    %2646 = vperm.xlu0 %2645, %v2642
    %v2647 = vpop.permute.xlu0 %2646
    %v2650 = vlaneseq
    %v2651 = vshrl.u32 %v2650, 7
    %v2652 = vsub.s32 0, %v2651
    %v2653 = vrot.slane %v2643, %v2652
    %v2654 = vlaneseq
    %v2655 = vshrl.u32 %v2654, 7
    %v2656 = vsub.s32 1, %v2655
    %v2657 = vrot.slane %v2643, %v2656
    %v2658 = vlaneseq
    %v2659 = vshrl.u32 %v2658, 7
    %v2660 = vsub.s32 2, %v2659
    %v2661 = vrot.slane %v2643, %v2660
    %v2662 = vlaneseq
    %v2663 = vshrl.u32 %v2662, 7
    %v2664 = vsub.s32 3, %v2663
    %v2665 = vrot.slane %v2643, %v2664
    %v2670 = vmul.f32 %v2647, %v2653
    %v2671 = vmul.f32 %v2647, %v2657
    %v2672 = vmul.f32 %v2647, %v2661
    %v2673 = vmul.f32 %v2647, %v2665
    %v2674 = vld [vmem:[#allocation4] sm:$0xff]
    %v2675 = vld [vmem:[#allocation4 + $0x8] sm:$0xff]
    %v2676 = vld [vmem:[#allocation4 + $0x10] sm:$0xff]
    %v2677 = vld [vmem:[#allocation4 + $0x18] sm:$0xff]
    %v2678 = vld [vmem:[#allocation4 + $0x20] sm:$0xff]
    %v2679 = vld [vmem:[#allocation4 + $0x28] sm:$0xff]
    %v2680 = vld [vmem:[#allocation4 + $0x30] sm:$0xff]
    %v2681 = vld [vmem:[#allocation4 + $0x38] sm:$0xff]
    %v2682 = vld [vmem:[#allocation4 + $0x40] sm:$0xff]
    %v2683 = vld [vmem:[#allocation4 + $0x48] sm:$0xff]
    %v2684 = vld [vmem:[#allocation4 + $0x50] sm:$0xff]
    %v2685 = vld [vmem:[#allocation4 + $0x58] sm:$0xff]
    %v2686 = vld [vmem:[#allocation4 + $0x60] sm:$0xff]
    %v2687 = vld [vmem:[#allocation4 + $0x68] sm:$0xff]
    %v2688 = vld [vmem:[#allocation4 + $0x70] sm:$0xff]
    %v2689 = vld [vmem:[#allocation4 + $0x78] sm:$0xff]
    %v2690 = vld [vmem:[#allocation4 + $0x80] sm:$0xff]
    %v2691 = vld [vmem:[#allocation4 + $0x88] sm:$0xff]
    %v2692 = vld [vmem:[#allocation4 + $0x90] sm:$0xff]
    %v2693 = vld [vmem:[#allocation4 + $0x98] sm:$0xff]
    %v2694 = vld [vmem:[#allocation4 + $0xa0] sm:$0xff]
    %v2695 = vld [vmem:[#allocation4 + $0xa8] sm:$0xff]
    %v2696 = vld [vmem:[#allocation4 + $0xb0] sm:$0xff]
    %v2697 = vld [vmem:[#allocation4 + $0xb8] sm:$0xff]
    %v2698 = vld [vmem:[#allocation4 + $0xc0] sm:$0xff]
    %v2699 = vld [vmem:[#allocation4 + $0xc8] sm:$0xff]
    %v2700 = vld [vmem:[#allocation4 + $0xd0] sm:$0xff]
    %v2701 = vld [vmem:[#allocation4 + $0xd8] sm:$0xff]
    %v2702 = vld [vmem:[#allocation4 + $0xe0] sm:$0xff]
    %v2703 = vld [vmem:[#allocation4 + $0xe8] sm:$0xff]
    %v2704 = vld [vmem:[#allocation4 + $0xf0] sm:$0xff]
    %v2705 = vld [vmem:[#allocation4 + $0xf8] sm:$0xff]
    %2706 = vmatprep.subr.mxu0 %v2675
    %2707 = vmatpush1.msra.mxu0 %v2674
    %2708 = vmatprep.subr.mxu0 %v2679
    %2709 = vmatpush1.msra.mxu0 %v2678
    %2710 = vmatprep.subr.mxu0 %v2683
    %2711 = vmatpush1.msra.mxu0 %v2682
    %2712 = vmatprep.subr.mxu0 %v2687
    %2713 = vmatpush1.msra.mxu0 %v2686
    %2714 = vmatprep.subr.mxu0 %v2691
    %2715 = vmatpush1.msra.mxu0 %v2690
    %2716 = vmatprep.subr.mxu0 %v2695
    %2717 = vmatpush1.msra.mxu0 %v2694
    %2718 = vmatprep.subr.mxu0 %v2699
    %2719 = vmatpush1.msra.mxu0 %v2698
    %2720 = vmatprep.subr.mxu0 %v2703
    %2721 = vmatpush1.msra.mxu0 %v2702
    %2722 = vmatprep.subr.mxu0 0.0
    %2723 = vmatpush1.msra.mxu0 0.0
    %2724 = vmatprep.subr.mxu0 0.0
    %2725 = vmatpush1.msra.mxu0 0.0
    %2726 = vmatprep.subr.mxu0 0.0
    %2727 = vmatpush1.msra.mxu0 0.0
    %2728 = vmatprep.subr.mxu0 0.0
    %2729 = vmatpush1.msra.mxu0 0.0
    %2730 = vmatprep.subr.mxu0 0.0
    %2731 = vmatpush1.msra.mxu0 0.0
    %2732 = vmatprep.subr.mxu0 0.0
    %2733 = vmatpush1.msra.mxu0 0.0
    %2734 = vmatprep.subr.mxu0 0.0
    %2735 = vmatpush1.msra.mxu0 0.0
    %2736 = vmatprep.subr.mxu0 0.0
    %2737 = vmatpush1.msra.mxu0 0.0
    %2738 = vmatprep.subr.mxu0 0.0
    %2739 = vmatpush1.msra.mxu0 0.0
    %2740 = vmatprep.subr.mxu0 0.0
    %2741 = vmatpush1.msra.mxu0 0.0
    %2742 = vmatprep.subr.mxu0 0.0
    %2743 = vmatpush1.msra.mxu0 0.0
    %2744 = vmatprep.subr.mxu0 0.0
    %2745 = vmatpush1.msra.mxu0 0.0
    %2746 = vmatprep.subr.mxu0 0.0
    %2747 = vmatpush1.msra.mxu0 0.0
    %2748 = vmatprep.subr.mxu0 0.0
    %2749 = vmatpush1.msra.mxu0 0.0
    %2750 = vmatprep.subr.mxu0 0.0
    %2751 = vmatpush1.msra.mxu0 0.0
    %2752 = vmatprep.subr.mxu0 0.0
    %2753 = vmatpush1.msra.mxu0 0.0
    %2754 = vmatprep.subr.mxu0 0.0
    %2755 = vmatpush1.msra.mxu0 0.0
    %2756 = vmatprep.subr.mxu0 0.0
    %2757 = vmatpush1.msra.mxu0 0.0
    %2758 = vmatprep.subr.mxu0 0.0
    %2759 = vmatpush1.msra.mxu0 0.0
    %2760 = vmatprep.subr.mxu0 0.0
    %2761 = vmatpush1.msra.mxu0 0.0
    %2762 = vmatprep.subr.mxu0 0.0
    %2763 = vmatpush1.msra.mxu0 0.0
    %2764 = vmatprep.subr.mxu0 0.0
    %2765 = vmatpush1.msra.mxu0 0.0
    %2766 = vmatprep.subr.mxu0 0.0
    %2767 = vmatpush1.msra.mxu0 0.0
    %2768 = vmatprep.subr.mxu0 0.0
    %2769 = vmatpush1.msra.mxu0 0.0
    %2770 = vmatprep.mubr.f32.mxu0 0.0
    %2771 = vmatmul.mubr.f32.gmra.mrb[0].mxu0 %v2445
    %v2772 = vpop.f32.mrb[0].mxu0
    %v2773 = vadd.f32 0.0, %v2772
    %v2774 = vpop.f32.mrb[0].mxu0
    %v2775 = vadd.f32 0.0, %v2774
    %2776 = vdwg.mxu0
    %2777 = vmatprep.subr.mxu0 %v2677
    %2778 = vmatpush1.msra.mxu0 %v2676
    %2779 = vmatprep.subr.mxu0 %v2681
    %2780 = vmatpush1.msra.mxu0 %v2680
    %2781 = vmatprep.subr.mxu0 %v2685
    %2782 = vmatpush1.msra.mxu0 %v2684
    %2783 = vmatprep.subr.mxu0 %v2689
    %2784 = vmatpush1.msra.mxu0 %v2688
    %2785 = vmatprep.subr.mxu0 %v2693
    %2786 = vmatpush1.msra.mxu0 %v2692
    %2787 = vmatprep.subr.mxu0 %v2697
    %2788 = vmatpush1.msra.mxu0 %v2696
    %2789 = vmatprep.subr.mxu0 %v2701
    %2790 = vmatpush1.msra.mxu0 %v2700
    %2791 = vmatprep.subr.mxu0 %v2705
    %2792 = vmatpush1.msra.mxu0 %v2704
    %2793 = vmatprep.subr.mxu0 0.0
    %2794 = vmatpush1.msra.mxu0 0.0
    %2795 = vmatprep.subr.mxu0 0.0
    %2796 = vmatpush1.msra.mxu0 0.0
    %2797 = vmatprep.subr.mxu0 0.0
    %2798 = vmatpush1.msra.mxu0 0.0
    %2799 = vmatprep.subr.mxu0 0.0
    %2800 = vmatpush1.msra.mxu0 0.0
    %2801 = vmatprep.subr.mxu0 0.0
    %2802 = vmatpush1.msra.mxu0 0.0
    %2803 = vmatprep.subr.mxu0 0.0
    %2804 = vmatpush1.msra.mxu0 0.0
    %2805 = vmatprep.subr.mxu0 0.0
    %2806 = vmatpush1.msra.mxu0 0.0
    %2807 = vmatprep.subr.mxu0 0.0
    %2808 = vmatpush1.msra.mxu0 0.0
    %2809 = vmatprep.subr.mxu0 0.0
    %2810 = vmatpush1.msra.mxu0 0.0
    %2811 = vmatprep.subr.mxu0 0.0
    %2812 = vmatpush1.msra.mxu0 0.0
    %2813 = vmatprep.subr.mxu0 0.0
    %2814 = vmatpush1.msra.mxu0 0.0
    %2815 = vmatprep.subr.mxu0 0.0
    %2816 = vmatpush1.msra.mxu0 0.0
    %2817 = vmatprep.subr.mxu0 0.0
    %2818 = vmatpush1.msra.mxu0 0.0
    %2819 = vmatprep.subr.mxu0 0.0
    %2820 = vmatpush1.msra.mxu0 0.0
    %2821 = vmatprep.subr.mxu0 0.0
    %2822 = vmatpush1.msra.mxu0 0.0
    %2823 = vmatprep.subr.mxu0 0.0
    %2824 = vmatpush1.msra.mxu0 0.0
    %2825 = vmatprep.subr.mxu0 0.0
    %2826 = vmatpush1.msra.mxu0 0.0
    %2827 = vmatprep.subr.mxu0 0.0
    %2828 = vmatpush1.msra.mxu0 0.0
    %2829 = vmatprep.subr.mxu0 0.0
    %2830 = vmatpush1.msra.mxu0 0.0
    %2831 = vmatprep.subr.mxu0 0.0
    %2832 = vmatpush1.msra.mxu0 0.0
    %2833 = vmatprep.subr.mxu0 0.0
    %2834 = vmatpush1.msra.mxu0 0.0
    %2835 = vmatprep.subr.mxu0 0.0
    %2836 = vmatpush1.msra.mxu0 0.0
    %2837 = vmatprep.subr.mxu0 0.0
    %2838 = vmatpush1.msra.mxu0 0.0
    %2839 = vmatprep.subr.mxu0 0.0
    %2840 = vmatpush1.msra.mxu0 0.0
    %2841 = vmatprep.mubr.f32.mxu0 0.0
    %2842 = vmatmul.mubr.f32.gmra.mrb[0].mxu0 %v2445
    %v2843 = vpop.f32.mrb[0].mxu0
    %v2844 = vadd.f32 0.0, %v2843
    %v2845 = vpop.f32.mrb[0].mxu0
    %v2846 = vadd.f32 0.0, %v2845
    %2847 = vdwg.mxu0
    %v2848 = vadd.f32 %v2670, %v2773
    %v2849 = vadd.f32 %v2671, %v2775
    %v2850 = vadd.f32 %v2672, %v2844
    %v2851 = vadd.f32 %v2673, %v2846
    %v2852 = vld [vmem:[%s4] sm:$0xf]
    %v2854 = vlaneseq
    %v2855 = vshrl.u32 %v2854, 7
    %v2856 = vsub.s32 0, %v2855
    %v2857 = vrot.slane %v2852, %v2856
    %v2858 = vlaneseq
    %v2859 = vshrl.u32 %v2858, 7
    %v2860 = vsub.s32 1, %v2859
    %v2861 = vrot.slane %v2852, %v2860
    %v2862 = vlaneseq
    %v2863 = vshrl.u32 %v2862, 7
    %v2864 = vsub.s32 2, %v2863
    %v2865 = vrot.slane %v2852, %v2864
    %v2866 = vlaneseq
    %v2867 = vshrl.u32 %v2866, 7
    %v2868 = vsub.s32 3, %v2867
    %v2869 = vrot.slane %v2852, %v2868
    %v2874 = vadd.f32 %v2848, %v2857
    %v2875 = vadd.f32 %v2849, %v2861
    %v2876 = vadd.f32 %v2850, %v2865
    %v2877 = vadd.f32 %v2851, %v2869
    %v2878 = vmul.f32 %v2874, 0.5
    %v2879 = vtanh.pop %v2878
    %v2880 = vmul.f32 %v2879, 0.5
    %v2881 = vadd.f32 %v2880, 0.5
    %v2882 = vmul.f32 %v2875, 0.5
    %v2883 = vtanh.pop %v2882
    %v2884 = vmul.f32 %v2883, 0.5
    %v2885 = vadd.f32 %v2884, 0.5
    %v2886 = vtanh.pop %v2876
    %v2887 = vmul.f32 %v2877, 0.5
    %v2888 = vtanh.pop %v2887
    %v2889 = vmul.f32 %v2888, 0.5
    %v2890 = vadd.f32 %v2889, 0.5
    %v2891 = vmul.f32 %v2885, %v2378
    %v2892 = vmul.f32 %v2881, %v2886
    %v2893 = vadd.f32 %v2891, %v2892
    %v2894 = vtanh.pop %v2893
    %v2895 = vmul.f32 %v2890, %v2894
    %v2896 = vld [vmem:[#allocation7] sm:$0xff]
    %v2897 = vld [vmem:[#allocation7 + $0x8] sm:$0xff]
    %v2898 = vld [vmem:[#allocation7 + $0x10] sm:$0xff]
    %v2899 = vld [vmem:[#allocation7 + $0x18] sm:$0xff]
    %v2900 = vld [vmem:[#allocation7 + $0x20] sm:$0xff]
    %v2901 = vld [vmem:[#allocation7 + $0x28] sm:$0xff]
    %v2902 = vld [vmem:[#allocation7 + $0x30] sm:$0xff]
    %v2903 = vld [vmem:[#allocation7 + $0x38] sm:$0xff]
    %v2904 = vld [vmem:[#allocation7 + $0x40] sm:$0xff]
    %v2905 = vld [vmem:[#allocation7 + $0x48] sm:$0xff]
    %v2906 = vld [vmem:[#allocation7 + $0x50] sm:$0xff]
    %v2907 = vld [vmem:[#allocation7 + $0x58] sm:$0xff]
    %v2908 = vld [vmem:[#allocation7 + $0x60] sm:$0xff]
    %v2909 = vld [vmem:[#allocation7 + $0x68] sm:$0xff]
    %v2910 = vld [vmem:[#allocation7 + $0x70] sm:$0xff]
    %v2911 = vld [vmem:[#allocation7 + $0x78] sm:$0xff]
    %v2912 = vld [vmem:[#allocation7 + $0x80] sm:$0xff]
    %v2913 = vld [vmem:[#allocation7 + $0x88] sm:$0xff]
    %v2914 = vld [vmem:[#allocation7 + $0x90] sm:$0xff]
    %v2915 = vld [vmem:[#allocation7 + $0x98] sm:$0xff]
    %v2916 = vld [vmem:[#allocation7 + $0xa0] sm:$0xff]
    %v2917 = vld [vmem:[#allocation7 + $0xa8] sm:$0xff]
    %v2918 = vld [vmem:[#allocation7 + $0xb0] sm:$0xff]
    %v2919 = vld [vmem:[#allocation7 + $0xb8] sm:$0xff]
    %v2920 = vld [vmem:[#allocation7 + $0xc0] sm:$0xff]
    %v2921 = vld [vmem:[#allocation7 + $0xc8] sm:$0xff]
    %v2922 = vld [vmem:[#allocation7 + $0xd0] sm:$0xff]
    %v2923 = vld [vmem:[#allocation7 + $0xd8] sm:$0xff]
    %v2924 = vld [vmem:[#allocation7 + $0xe0] sm:$0xff]
    %v2925 = vld [vmem:[#allocation7 + $0xe8] sm:$0xff]
    %v2926 = vld [vmem:[#allocation7 + $0xf0] sm:$0xff]
    %v2927 = vld [vmem:[#allocation7 + $0xf8] sm:$0xff]
    %v2928 = vld [vmem:[%s6] sm:$0xf]
    %2930 = vset.pattern.permute.xlu0 0
    %2931 = vperm.xlu0 %2930, %v2632
    %v2932 = vpop.permute.xlu0 %2931
    %v2935 = vlaneseq
    %v2936 = vshrl.u32 %v2935, 7
    %v2937 = vsub.s32 0, %v2936
    %v2938 = vrot.slane %v2928, %v2937
    %v2939 = vlaneseq
    %v2940 = vshrl.u32 %v2939, 7
    %v2941 = vsub.s32 1, %v2940
    %v2942 = vrot.slane %v2928, %v2941
    %v2943 = vlaneseq
    %v2944 = vshrl.u32 %v2943, 7
    %v2945 = vsub.s32 2, %v2944
    %v2946 = vrot.slane %v2928, %v2945
    %v2947 = vlaneseq
    %v2948 = vshrl.u32 %v2947, 7
    %v2949 = vsub.s32 3, %v2948
    %v2950 = vrot.slane %v2928, %v2949
    %v2955 = vmul.f32 %v2932, %v2938
    %v2956 = vmul.f32 %v2932, %v2942
    %v2957 = vmul.f32 %v2932, %v2946
    %v2958 = vmul.f32 %v2932, %v2950
    %v2960 = vsel %vm132, %v2895, 0
    %2962 = vmatprep.subr.mxu0 %v2897
    %2963 = vmatpush1.msra.mxu0 %v2896
    %2964 = vmatprep.subr.mxu0 %v2901
    %2965 = vmatpush1.msra.mxu0 %v2900
    %2966 = vmatprep.subr.mxu0 %v2905
    %2967 = vmatpush1.msra.mxu0 %v2904
    %2968 = vmatprep.subr.mxu0 %v2909
    %2969 = vmatpush1.msra.mxu0 %v2908
    %2970 = vmatprep.subr.mxu0 %v2913
    %2971 = vmatpush1.msra.mxu0 %v2912
    %2972 = vmatprep.subr.mxu0 %v2917
    %2973 = vmatpush1.msra.mxu0 %v2916
    %2974 = vmatprep.subr.mxu0 %v2921
    %2975 = vmatpush1.msra.mxu0 %v2920
    %2976 = vmatprep.subr.mxu0 %v2925
    %2977 = vmatpush1.msra.mxu0 %v2924
    %2978 = vmatprep.subr.mxu0 0.0
    %2979 = vmatpush1.msra.mxu0 0.0
    %2980 = vmatprep.subr.mxu0 0.0
    %2981 = vmatpush1.msra.mxu0 0.0
    %2982 = vmatprep.subr.mxu0 0.0
    %2983 = vmatpush1.msra.mxu0 0.0
    %2984 = vmatprep.subr.mxu0 0.0
    %2985 = vmatpush1.msra.mxu0 0.0
    %2986 = vmatprep.subr.mxu0 0.0
    %2987 = vmatpush1.msra.mxu0 0.0
    %2988 = vmatprep.subr.mxu0 0.0
    %2989 = vmatpush1.msra.mxu0 0.0
    %2990 = vmatprep.subr.mxu0 0.0
    %2991 = vmatpush1.msra.mxu0 0.0
    %2992 = vmatprep.subr.mxu0 0.0
    %2993 = vmatpush1.msra.mxu0 0.0
    %2994 = vmatprep.subr.mxu0 0.0
    %2995 = vmatpush1.msra.mxu0 0.0
    %2996 = vmatprep.subr.mxu0 0.0
    %2997 = vmatpush1.msra.mxu0 0.0
    %2998 = vmatprep.subr.mxu0 0.0
    %2999 = vmatpush1.msra.mxu0 0.0
    %3000 = vmatprep.subr.mxu0 0.0
    %3001 = vmatpush1.msra.mxu0 0.0
    %3002 = vmatprep.subr.mxu0 0.0
    %3003 = vmatpush1.msra.mxu0 0.0
    %3004 = vmatprep.subr.mxu0 0.0
    %3005 = vmatpush1.msra.mxu0 0.0
    %3006 = vmatprep.subr.mxu0 0.0
    %3007 = vmatpush1.msra.mxu0 0.0
    %3008 = vmatprep.subr.mxu0 0.0
    %3009 = vmatpush1.msra.mxu0 0.0
    %3010 = vmatprep.subr.mxu0 0.0
    %3011 = vmatpush1.msra.mxu0 0.0
    %3012 = vmatprep.subr.mxu0 0.0
    %3013 = vmatpush1.msra.mxu0 0.0
    %3014 = vmatprep.subr.mxu0 0.0
    %3015 = vmatpush1.msra.mxu0 0.0
    %3016 = vmatprep.subr.mxu0 0.0
    %3017 = vmatpush1.msra.mxu0 0.0
    %3018 = vmatprep.subr.mxu0 0.0
    %3019 = vmatpush1.msra.mxu0 0.0
    %3020 = vmatprep.subr.mxu0 0.0
    %3021 = vmatpush1.msra.mxu0 0.0
    %3022 = vmatprep.subr.mxu0 0.0
    %3023 = vmatpush1.msra.mxu0 0.0
    %3024 = vmatprep.subr.mxu0 0.0
    %3025 = vmatpush1.msra.mxu0 0.0
    %3026 = vmatprep.mubr.f32.mxu0 0.0
    %3027 = vmatmul.mubr.f32.gmra.mrb[0].mxu0 %v2960
    %v3028 = vpop.f32.mrb[0].mxu0
    %v3029 = vadd.f32 %v2955, %v3028
    %v3030 = vpop.f32.mrb[0].mxu0
    %v3031 = vadd.f32 %v2956, %v3030
    %3032 = vdwg.mxu0
    %3033 = vmatprep.subr.mxu0 %v2899
    %3034 = vmatpush1.msra.mxu0 %v2898
    %3035 = vmatprep.subr.mxu0 %v2903
    %3036 = vmatpush1.msra.mxu0 %v2902
    %3037 = vmatprep.subr.mxu0 %v2907
    %3038 = vmatpush1.msra.mxu0 %v2906
    %3039 = vmatprep.subr.mxu0 %v2911
    %3040 = vmatpush1.msra.mxu0 %v2910
    %3041 = vmatprep.subr.mxu0 %v2915
    %3042 = vmatpush1.msra.mxu0 %v2914
    %3043 = vmatprep.subr.mxu0 %v2919
    %3044 = vmatpush1.msra.mxu0 %v2918
    %3045 = vmatprep.subr.mxu0 %v2923
    %3046 = vmatpush1.msra.mxu0 %v2922
    %3047 = vmatprep.subr.mxu0 %v2927
    %3048 = vmatpush1.msra.mxu0 %v2926
    %3049 = vmatprep.subr.mxu0 0.0
    %3050 = vmatpush1.msra.mxu0 0.0
    %3051 = vmatprep.subr.mxu0 0.0
    %3052 = vmatpush1.msra.mxu0 0.0
    %3053 = vmatprep.subr.mxu0 0.0
    %3054 = vmatpush1.msra.mxu0 0.0
    %3055 = vmatprep.subr.mxu0 0.0
    %3056 = vmatpush1.msra.mxu0 0.0
    %3057 = vmatprep.subr.mxu0 0.0
    %3058 = vmatpush1.msra.mxu0 0.0
    %3059 = vmatprep.subr.mxu0 0.0
    %3060 = vmatpush1.msra.mxu0 0.0
    %3061 = vmatprep.subr.mxu0 0.0
    %3062 = vmatpush1.msra.mxu0 0.0
    %3063 = vmatprep.subr.mxu0 0.0
    %3064 = vmatpush1.msra.mxu0 0.0
    %3065 = vmatprep.subr.mxu0 0.0
    %3066 = vmatpush1.msra.mxu0 0.0
    %3067 = vmatprep.subr.mxu0 0.0
    %3068 = vmatpush1.msra.mxu0 0.0
    %3069 = vmatprep.subr.mxu0 0.0
    %3070 = vmatpush1.msra.mxu0 0.0
    %3071 = vmatprep.subr.mxu0 0.0
    %3072 = vmatpush1.msra.mxu0 0.0
    %3073 = vmatprep.subr.mxu0 0.0
    %3074 = vmatpush1.msra.mxu0 0.0
    %3075 = vmatprep.subr.mxu0 0.0
    %3076 = vmatpush1.msra.mxu0 0.0
    %3077 = vmatprep.subr.mxu0 0.0
    %3078 = vmatpush1.msra.mxu0 0.0
    %3079 = vmatprep.subr.mxu0 0.0
    %3080 = vmatpush1.msra.mxu0 0.0
    %3081 = vmatprep.subr.mxu0 0.0
    %3082 = vmatpush1.msra.mxu0 0.0
    %3083 = vmatprep.subr.mxu0 0.0
    %3084 = vmatpush1.msra.mxu0 0.0
    %3085 = vmatprep.subr.mxu0 0.0
    %3086 = vmatpush1.msra.mxu0 0.0
    %3087 = vmatprep.subr.mxu0 0.0
    %3088 = vmatpush1.msra.mxu0 0.0
    %3089 = vmatprep.subr.mxu0 0.0
    %3090 = vmatpush1.msra.mxu0 0.0
    %3091 = vmatprep.subr.mxu0 0.0
    %3092 = vmatpush1.msra.mxu0 0.0
    %3093 = vmatprep.subr.mxu0 0.0
    %3094 = vmatpush1.msra.mxu0 0.0
    %3095 = vmatprep.subr.mxu0 0.0
    %3096 = vmatpush1.msra.mxu0 0.0
    %3097 = vmatprep.mubr.f32.mxu0 0.0
    %3098 = vmatmul.mubr.f32.gmra.mrb[0].mxu0 %v2960
    %v3099 = vpop.f32.mrb[0].mxu0
    %v3100 = vadd.f32 %v2957, %v3099
    %v3101 = vpop.f32.mrb[0].mxu0
    %v3102 = vadd.f32 %v2958, %v3101
    %3103 = vdwg.mxu0
    %v3104 = vld [vmem:[%s7] sm:$0xf]
    %v3106 = vlaneseq
    %v3107 = vshrl.u32 %v3106, 7
    %v3108 = vsub.s32 0, %v3107
    %v3109 = vrot.slane %v3104, %v3108
    %v3110 = vlaneseq
    %v3111 = vshrl.u32 %v3110, 7
    %v3112 = vsub.s32 1, %v3111
    %v3113 = vrot.slane %v3104, %v3112
    %v3114 = vlaneseq
    %v3115 = vshrl.u32 %v3114, 7
    %v3116 = vsub.s32 2, %v3115
    %v3117 = vrot.slane %v3104, %v3116
    %v3118 = vlaneseq
    %v3119 = vshrl.u32 %v3118, 7
    %v3120 = vsub.s32 3, %v3119
    %v3121 = vrot.slane %v3104, %v3120
    %v3126 = vadd.f32 %v3029, %v3109
    %v3127 = vadd.f32 %v3031, %v3113
    %v3128 = vadd.f32 %v3100, %v3117
    %v3129 = vadd.f32 %v3102, %v3121
    %v3130 = vmul.f32 %v3126, 0.5
    %v3131 = vtanh.pop %v3130
    %v3132 = vmul.f32 %v3131, 0.5
    %v3133 = vadd.f32 %v3132, 0.5
    %v3134 = vmul.f32 %v3127, 0.5
    %v3135 = vtanh.pop %v3134
    %v3136 = vmul.f32 %v3135, 0.5
    %v3137 = vadd.f32 %v3136, 0.5
    %v3138 = vtanh.pop %v3128
    %v3139 = vmul.f32 %v3129, 0.5
    %v3140 = vtanh.pop %v3139
    %v3141 = vmul.f32 %v3140, 0.5
    %v3142 = vadd.f32 %v3141, 0.5
    %v3143 = vmul.f32 %v3137, %v2630
    %v3144 = vmul.f32 %v3133, %v3138
    %v3145 = vadd.f32 %v3143, %v3144
    %v3146 = vtanh.pop %v3145
    %v3147 = vmul.f32 %v3142, %v3146
    %s3148 = scalar_lea.vmem %s8, 10
    %3149 = vst.msk [vmem:[%s3148] sm:$0x3] %vm573, %v3147
    %s3150 = scalar_lea.vmem %s1, 12
    %v3151 = vld [vmem:[%s3150] sm:$0x3]
    %s3152 = sld [smem:[#allocation3 + $0x6]]
    %p3153 = scmp.ne.s32.totalorder %s3152, 0
    %s3154 = scalar_select %p3153, 1, 0
    %v3155 = vstv %s3154
    %vm3156 = vcmp.eq.s32.totalorder %v3155, 1
    %v3157 = vsel %vm3156, %v3151, %v3147
    %v3158 = vld [vmem:[%s2] sm:$0xf]
    %3160 = vset.pattern.permute.xlu0 0
    %3161 = vperm.xlu0 %3160, %v3157
    %v3162 = vpop.permute.xlu0 %3161
    %v3165 = vlaneseq
    %v3166 = vshrl.u32 %v3165, 7
    %v3167 = vsub.s32 0, %v3166
    %v3168 = vrot.slane %v3158, %v3167
    %v3169 = vlaneseq
    %v3170 = vshrl.u32 %v3169, 7
    %v3171 = vsub.s32 1, %v3170
    %v3172 = vrot.slane %v3158, %v3171
    %v3173 = vlaneseq
    %v3174 = vshrl.u32 %v3173, 7
    %v3175 = vsub.s32 2, %v3174
    %v3176 = vrot.slane %v3158, %v3175
    %v3177 = vlaneseq
    %v3178 = vshrl.u32 %v3177, 7
    %v3179 = vsub.s32 3, %v3178
    %v3180 = vrot.slane %v3158, %v3179
    %v3185 = vmul.f32 %v3162, %v3168
    %v3186 = vmul.f32 %v3162, %v3172
    %v3187 = vmul.f32 %v3162, %v3176
    %v3188 = vmul.f32 %v3162, %v3180
    %v3189 = vld [vmem:[#allocation4] sm:$0xff]
    %v3190 = vld [vmem:[#allocation4 + $0x8] sm:$0xff]
    %v3191 = vld [vmem:[#allocation4 + $0x10] sm:$0xff]
    %v3192 = vld [vmem:[#allocation4 + $0x18] sm:$0xff]
    %v3193 = vld [vmem:[#allocation4 + $0x20] sm:$0xff]
    %v3194 = vld [vmem:[#allocation4 + $0x28] sm:$0xff]
    %v3195 = vld [vmem:[#allocation4 + $0x30] sm:$0xff]
    %v3196 = vld [vmem:[#allocation4 + $0x38] sm:$0xff]
    %v3197 = vld [vmem:[#allocation4 + $0x40] sm:$0xff]
    %v3198 = vld [vmem:[#allocation4 + $0x48] sm:$0xff]
    %v3199 = vld [vmem:[#allocation4 + $0x50] sm:$0xff]
    %v3200 = vld [vmem:[#allocation4 + $0x58] sm:$0xff]
    %v3201 = vld [vmem:[#allocation4 + $0x60] sm:$0xff]
    %v3202 = vld [vmem:[#allocation4 + $0x68] sm:$0xff]
    %v3203 = vld [vmem:[#allocation4 + $0x70] sm:$0xff]
    %v3204 = vld [vmem:[#allocation4 + $0x78] sm:$0xff]
    %v3205 = vld [vmem:[#allocation4 + $0x80] sm:$0xff]
    %v3206 = vld [vmem:[#allocation4 + $0x88] sm:$0xff]
    %v3207 = vld [vmem:[#allocation4 + $0x90] sm:$0xff]
    %v3208 = vld [vmem:[#allocation4 + $0x98] sm:$0xff]
    %v3209 = vld [vmem:[#allocation4 + $0xa0] sm:$0xff]
    %v3210 = vld [vmem:[#allocation4 + $0xa8] sm:$0xff]
    %v3211 = vld [vmem:[#allocation4 + $0xb0] sm:$0xff]
    %v3212 = vld [vmem:[#allocation4 + $0xb8] sm:$0xff]
    %v3213 = vld [vmem:[#allocation4 + $0xc0] sm:$0xff]
    %v3214 = vld [vmem:[#allocation4 + $0xc8] sm:$0xff]
    %v3215 = vld [vmem:[#allocation4 + $0xd0] sm:$0xff]
    %v3216 = vld [vmem:[#allocation4 + $0xd8] sm:$0xff]
    %v3217 = vld [vmem:[#allocation4 + $0xe0] sm:$0xff]
    %v3218 = vld [vmem:[#allocation4 + $0xe8] sm:$0xff]
    %v3219 = vld [vmem:[#allocation4 + $0xf0] sm:$0xff]
    %v3220 = vld [vmem:[#allocation4 + $0xf8] sm:$0xff]
    %3221 = vmatprep.subr.mxu0 %v3190
    %3222 = vmatpush1.msra.mxu0 %v3189
    %3223 = vmatprep.subr.mxu0 %v3194
    %3224 = vmatpush1.msra.mxu0 %v3193
    %3225 = vmatprep.subr.mxu0 %v3198
    %3226 = vmatpush1.msra.mxu0 %v3197
    %3227 = vmatprep.subr.mxu0 %v3202
    %3228 = vmatpush1.msra.mxu0 %v3201
    %3229 = vmatprep.subr.mxu0 %v3206
    %3230 = vmatpush1.msra.mxu0 %v3205
    %3231 = vmatprep.subr.mxu0 %v3210
    %3232 = vmatpush1.msra.mxu0 %v3209
    %3233 = vmatprep.subr.mxu0 %v3214
    %3234 = vmatpush1.msra.mxu0 %v3213
    %3235 = vmatprep.subr.mxu0 %v3218
    %3236 = vmatpush1.msra.mxu0 %v3217
    %3237 = vmatprep.subr.mxu0 0.0
    %3238 = vmatpush1.msra.mxu0 0.0
    %3239 = vmatprep.subr.mxu0 0.0
    %3240 = vmatpush1.msra.mxu0 0.0
    %3241 = vmatprep.subr.mxu0 0.0
    %3242 = vmatpush1.msra.mxu0 0.0
    %3243 = vmatprep.subr.mxu0 0.0
    %3244 = vmatpush1.msra.mxu0 0.0
    %3245 = vmatprep.subr.mxu0 0.0
    %3246 = vmatpush1.msra.mxu0 0.0
    %3247 = vmatprep.subr.mxu0 0.0
    %3248 = vmatpush1.msra.mxu0 0.0
    %3249 = vmatprep.subr.mxu0 0.0
    %3250 = vmatpush1.msra.mxu0 0.0
    %3251 = vmatprep.subr.mxu0 0.0
    %3252 = vmatpush1.msra.mxu0 0.0
    %3253 = vmatprep.subr.mxu0 0.0
    %3254 = vmatpush1.msra.mxu0 0.0
    %3255 = vmatprep.subr.mxu0 0.0
    %3256 = vmatpush1.msra.mxu0 0.0
    %3257 = vmatprep.subr.mxu0 0.0
    %3258 = vmatpush1.msra.mxu0 0.0
    %3259 = vmatprep.subr.mxu0 0.0
    %3260 = vmatpush1.msra.mxu0 0.0
    %3261 = vmatprep.subr.mxu0 0.0
    %3262 = vmatpush1.msra.mxu0 0.0
    %3263 = vmatprep.subr.mxu0 0.0
    %3264 = vmatpush1.msra.mxu0 0.0
    %3265 = vmatprep.subr.mxu0 0.0
    %3266 = vmatpush1.msra.mxu0 0.0
    %3267 = vmatprep.subr.mxu0 0.0
    %3268 = vmatpush1.msra.mxu0 0.0
    %3269 = vmatprep.subr.mxu0 0.0
    %3270 = vmatpush1.msra.mxu0 0.0
    %3271 = vmatprep.subr.mxu0 0.0
    %3272 = vmatpush1.msra.mxu0 0.0
    %3273 = vmatprep.subr.mxu0 0.0
    %3274 = vmatpush1.msra.mxu0 0.0
    %3275 = vmatprep.subr.mxu0 0.0
    %3276 = vmatpush1.msra.mxu0 0.0
    %3277 = vmatprep.subr.mxu0 0.0
    %3278 = vmatpush1.msra.mxu0 0.0
    %3279 = vmatprep.subr.mxu0 0.0
    %3280 = vmatpush1.msra.mxu0 0.0
    %3281 = vmatprep.subr.mxu0 0.0
    %3282 = vmatpush1.msra.mxu0 0.0
    %3283 = vmatprep.subr.mxu0 0.0
    %3284 = vmatpush1.msra.mxu0 0.0
    %3285 = vmatprep.mubr.f32.mxu0 0.0
    %3286 = vmatmul.mubr.f32.gmra.mrb[0].mxu0 %v2960
    %v3287 = vpop.f32.mrb[0].mxu0
    %v3288 = vadd.f32 0.0, %v3287
    %v3289 = vpop.f32.mrb[0].mxu0
    %v3290 = vadd.f32 0.0, %v3289
    %3291 = vdwg.mxu0
    %3292 = vmatprep.subr.mxu0 %v3192
    %3293 = vmatpush1.msra.mxu0 %v3191
    %3294 = vmatprep.subr.mxu0 %v3196
    %3295 = vmatpush1.msra.mxu0 %v3195
    %3296 = vmatprep.subr.mxu0 %v3200
    %3297 = vmatpush1.msra.mxu0 %v3199
    %3298 = vmatprep.subr.mxu0 %v3204
    %3299 = vmatpush1.msra.mxu0 %v3203
    %3300 = vmatprep.subr.mxu0 %v3208
    %3301 = vmatpush1.msra.mxu0 %v3207
    %3302 = vmatprep.subr.mxu0 %v3212
    %3303 = vmatpush1.msra.mxu0 %v3211
    %3304 = vmatprep.subr.mxu0 %v3216
    %3305 = vmatpush1.msra.mxu0 %v3215
    %3306 = vmatprep.subr.mxu0 %v3220
    %3307 = vmatpush1.msra.mxu0 %v3219
    %3308 = vmatprep.subr.mxu0 0.0
    %3309 = vmatpush1.msra.mxu0 0.0
    %3310 = vmatprep.subr.mxu0 0.0
    %3311 = vmatpush1.msra.mxu0 0.0
    %3312 = vmatprep.subr.mxu0 0.0
    %3313 = vmatpush1.msra.mxu0 0.0
    %3314 = vmatprep.subr.mxu0 0.0
    %3315 = vmatpush1.msra.mxu0 0.0
    %3316 = vmatprep.subr.mxu0 0.0
    %3317 = vmatpush1.msra.mxu0 0.0
    %3318 = vmatprep.subr.mxu0 0.0
    %3319 = vmatpush1.msra.mxu0 0.0
    %3320 = vmatprep.subr.mxu0 0.0
    %3321 = vmatpush1.msra.mxu0 0.0
    %3322 = vmatprep.subr.mxu0 0.0
    %3323 = vmatpush1.msra.mxu0 0.0
    %3324 = vmatprep.subr.mxu0 0.0
    %3325 = vmatpush1.msra.mxu0 0.0
    %3326 = vmatprep.subr.mxu0 0.0
    %3327 = vmatpush1.msra.mxu0 0.0
    %3328 = vmatprep.subr.mxu0 0.0
    %3329 = vmatpush1.msra.mxu0 0.0
    %3330 = vmatprep.subr.mxu0 0.0
    %3331 = vmatpush1.msra.mxu0 0.0
    %3332 = vmatprep.subr.mxu0 0.0
    %3333 = vmatpush1.msra.mxu0 0.0
    %3334 = vmatprep.subr.mxu0 0.0
    %3335 = vmatpush1.msra.mxu0 0.0
    %3336 = vmatprep.subr.mxu0 0.0
    %3337 = vmatpush1.msra.mxu0 0.0
    %3338 = vmatprep.subr.mxu0 0.0
    %3339 = vmatpush1.msra.mxu0 0.0
    %3340 = vmatprep.subr.mxu0 0.0
    %3341 = vmatpush1.msra.mxu0 0.0
    %3342 = vmatprep.subr.mxu0 0.0
    %3343 = vmatpush1.msra.mxu0 0.0
    %3344 = vmatprep.subr.mxu0 0.0
    %3345 = vmatpush1.msra.mxu0 0.0
    %3346 = vmatprep.subr.mxu0 0.0
    %3347 = vmatpush1.msra.mxu0 0.0
    %3348 = vmatprep.subr.mxu0 0.0
    %3349 = vmatpush1.msra.mxu0 0.0
    %3350 = vmatprep.subr.mxu0 0.0
    %3351 = vmatpush1.msra.mxu0 0.0
    %3352 = vmatprep.subr.mxu0 0.0
    %3353 = vmatpush1.msra.mxu0 0.0
    %3354 = vmatprep.subr.mxu0 0.0
    %3355 = vmatpush1.msra.mxu0 0.0
    %3356 = vmatprep.mubr.f32.mxu0 0.0
    %3357 = vmatmul.mubr.f32.gmra.mrb[0].mxu0 %v2960
    %v3358 = vpop.f32.mrb[0].mxu0
    %v3359 = vadd.f32 0.0, %v3358
    %v3360 = vpop.f32.mrb[0].mxu0
    %v3361 = vadd.f32 0.0, %v3360
    %3362 = vdwg.mxu0
    %v3363 = vadd.f32 %v3185, %v3288
    %v3364 = vadd.f32 %v3186, %v3290
    %v3365 = vadd.f32 %v3187, %v3359
    %v3366 = vadd.f32 %v3188, %v3361
    %v3367 = vld [vmem:[%s4] sm:$0xf]
    %v3369 = vlaneseq
    %v3370 = vshrl.u32 %v3369, 7
    %v3371 = vsub.s32 0, %v3370
    %v3372 = vrot.slane %v3367, %v3371
    %v3373 = vlaneseq
    %v3374 = vshrl.u32 %v3373, 7
    %v3375 = vsub.s32 1, %v3374
    %v3376 = vrot.slane %v3367, %v3375
    %v3377 = vlaneseq
    %v3378 = vshrl.u32 %v3377, 7
    %v3379 = vsub.s32 2, %v3378
    %v3380 = vrot.slane %v3367, %v3379
    %v3381 = vlaneseq
    %v3382 = vshrl.u32 %v3381, 7
    %v3383 = vsub.s32 3, %v3382
    %v3384 = vrot.slane %v3367, %v3383
    %v3389 = vadd.f32 %v3363, %v3372
    %v3390 = vadd.f32 %v3364, %v3376
    %v3391 = vadd.f32 %v3365, %v3380
    %v3392 = vadd.f32 %v3366, %v3384
    %v3393 = vmul.f32 %v3389, 0.5
    %v3394 = vtanh.pop %v3393
    %v3395 = vmul.f32 %v3394, 0.5
    %v3396 = vadd.f32 %v3395, 0.5
    %v3397 = vmul.f32 %v3390, 0.5
    %v3398 = vtanh.pop %v3397
    %v3399 = vmul.f32 %v3398, 0.5
    %v3400 = vadd.f32 %v3399, 0.5
    %v3401 = vtanh.pop %v3391
    %v3402 = vmul.f32 %v3392, 0.5
    %v3403 = vtanh.pop %v3402
    %v3404 = vmul.f32 %v3403, 0.5
    %v3405 = vadd.f32 %v3404, 0.5
    %v3406 = vmul.f32 %v3400, %v2893
    %v3407 = vmul.f32 %v3396, %v3401
    %v3408 = vadd.f32 %v3406, %v3407
    %v3409 = vtanh.pop %v3408
    %v3410 = vmul.f32 %v3405, %v3409
    %v3411 = vld [vmem:[#allocation7] sm:$0xff]
    %v3412 = vld [vmem:[#allocation7 + $0x8] sm:$0xff]
    %v3413 = vld [vmem:[#allocation7 + $0x10] sm:$0xff]
    %v3414 = vld [vmem:[#allocation7 + $0x18] sm:$0xff]
    %v3415 = vld [vmem:[#allocation7 + $0x20] sm:$0xff]
    %v3416 = vld [vmem:[#allocation7 + $0x28] sm:$0xff]
    %v3417 = vld [vmem:[#allocation7 + $0x30] sm:$0xff]
    %v3418 = vld [vmem:[#allocation7 + $0x38] sm:$0xff]
    %v3419 = vld [vmem:[#allocation7 + $0x40] sm:$0xff]
    %v3420 = vld [vmem:[#allocation7 + $0x48] sm:$0xff]
    %v3421 = vld [vmem:[#allocation7 + $0x50] sm:$0xff]
    %v3422 = vld [vmem:[#allocation7 + $0x58] sm:$0xff]
    %v3423 = vld [vmem:[#allocation7 + $0x60] sm:$0xff]
    %v3424 = vld [vmem:[#allocation7 + $0x68] sm:$0xff]
    %v3425 = vld [vmem:[#allocation7 + $0x70] sm:$0xff]
    %v3426 = vld [vmem:[#allocation7 + $0x78] sm:$0xff]
    %v3427 = vld [vmem:[#allocation7 + $0x80] sm:$0xff]
    %v3428 = vld [vmem:[#allocation7 + $0x88] sm:$0xff]
    %v3429 = vld [vmem:[#allocation7 + $0x90] sm:$0xff]
    %v3430 = vld [vmem:[#allocation7 + $0x98] sm:$0xff]
    %v3431 = vld [vmem:[#allocation7 + $0xa0] sm:$0xff]
    %v3432 = vld [vmem:[#allocation7 + $0xa8] sm:$0xff]
    %v3433 = vld [vmem:[#allocation7 + $0xb0] sm:$0xff]
    %v3434 = vld [vmem:[#allocation7 + $0xb8] sm:$0xff]
    %v3435 = vld [vmem:[#allocation7 + $0xc0] sm:$0xff]
    %v3436 = vld [vmem:[#allocation7 + $0xc8] sm:$0xff]
    %v3437 = vld [vmem:[#allocation7 + $0xd0] sm:$0xff]
    %v3438 = vld [vmem:[#allocation7 + $0xd8] sm:$0xff]
    %v3439 = vld [vmem:[#allocation7 + $0xe0] sm:$0xff]
    %v3440 = vld [vmem:[#allocation7 + $0xe8] sm:$0xff]
    %v3441 = vld [vmem:[#allocation7 + $0xf0] sm:$0xff]
    %v3442 = vld [vmem:[#allocation7 + $0xf8] sm:$0xff]
    %v3443 = vld [vmem:[%s6] sm:$0xf]
    %3445 = vset.pattern.permute.xlu0 0
    %3446 = vperm.xlu0 %3445, %v3147
    %v3447 = vpop.permute.xlu0 %3446
    %v3450 = vlaneseq
    %v3451 = vshrl.u32 %v3450, 7
    %v3452 = vsub.s32 0, %v3451
    %v3453 = vrot.slane %v3443, %v3452
    %v3454 = vlaneseq
    %v3455 = vshrl.u32 %v3454, 7
    %v3456 = vsub.s32 1, %v3455
    %v3457 = vrot.slane %v3443, %v3456
    %v3458 = vlaneseq
    %v3459 = vshrl.u32 %v3458, 7
    %v3460 = vsub.s32 2, %v3459
    %v3461 = vrot.slane %v3443, %v3460
    %v3462 = vlaneseq
    %v3463 = vshrl.u32 %v3462, 7
    %v3464 = vsub.s32 3, %v3463
    %v3465 = vrot.slane %v3443, %v3464
    %v3470 = vmul.f32 %v3447, %v3453
    %v3471 = vmul.f32 %v3447, %v3457
    %v3472 = vmul.f32 %v3447, %v3461
    %v3473 = vmul.f32 %v3447, %v3465
    %v3475 = vsel %vm132, %v3410, 0
    %3477 = vmatprep.subr.mxu0 %v3412
    %3478 = vmatpush1.msra.mxu0 %v3411
    %3479 = vmatprep.subr.mxu0 %v3416
    %3480 = vmatpush1.msra.mxu0 %v3415
    %3481 = vmatprep.subr.mxu0 %v3420
    %3482 = vmatpush1.msra.mxu0 %v3419
    %3483 = vmatprep.subr.mxu0 %v3424
    %3484 = vmatpush1.msra.mxu0 %v3423
    %3485 = vmatprep.subr.mxu0 %v3428
    %3486 = vmatpush1.msra.mxu0 %v3427
    %3487 = vmatprep.subr.mxu0 %v3432
    %3488 = vmatpush1.msra.mxu0 %v3431
    %3489 = vmatprep.subr.mxu0 %v3436
    %3490 = vmatpush1.msra.mxu0 %v3435
    %3491 = vmatprep.subr.mxu0 %v3440
    %3492 = vmatpush1.msra.mxu0 %v3439
    %3493 = vmatprep.subr.mxu0 0.0
    %3494 = vmatpush1.msra.mxu0 0.0
    %3495 = vmatprep.subr.mxu0 0.0
    %3496 = vmatpush1.msra.mxu0 0.0
    %3497 = vmatprep.subr.mxu0 0.0
    %3498 = vmatpush1.msra.mxu0 0.0
    %3499 = vmatprep.subr.mxu0 0.0
    %3500 = vmatpush1.msra.mxu0 0.0
    %3501 = vmatprep.subr.mxu0 0.0
    %3502 = vmatpush1.msra.mxu0 0.0
    %3503 = vmatprep.subr.mxu0 0.0
    %3504 = vmatpush1.msra.mxu0 0.0
    %3505 = vmatprep.subr.mxu0 0.0
    %3506 = vmatpush1.msra.mxu0 0.0
    %3507 = vmatprep.subr.mxu0 0.0
    %3508 = vmatpush1.msra.mxu0 0.0
    %3509 = vmatprep.subr.mxu0 0.0
    %3510 = vmatpush1.msra.mxu0 0.0
    %3511 = vmatprep.subr.mxu0 0.0
    %3512 = vmatpush1.msra.mxu0 0.0
    %3513 = vmatprep.subr.mxu0 0.0
    %3514 = vmatpush1.msra.mxu0 0.0
    %3515 = vmatprep.subr.mxu0 0.0
    %3516 = vmatpush1.msra.mxu0 0.0
    %3517 = vmatprep.subr.mxu0 0.0
    %3518 = vmatpush1.msra.mxu0 0.0
    %3519 = vmatprep.subr.mxu0 0.0
    %3520 = vmatpush1.msra.mxu0 0.0
    %3521 = vmatprep.subr.mxu0 0.0
    %3522 = vmatpush1.msra.mxu0 0.0
    %3523 = vmatprep.subr.mxu0 0.0
    %3524 = vmatpush1.msra.mxu0 0.0
    %3525 = vmatprep.subr.mxu0 0.0
    %3526 = vmatpush1.msra.mxu0 0.0
    %3527 = vmatprep.subr.mxu0 0.0
    %3528 = vmatpush1.msra.mxu0 0.0
    %3529 = vmatprep.subr.mxu0 0.0
    %3530 = vmatpush1.msra.mxu0 0.0
    %3531 = vmatprep.subr.mxu0 0.0
    %3532 = vmatpush1.msra.mxu0 0.0
    %3533 = vmatprep.subr.mxu0 0.0
    %3534 = vmatpush1.msra.mxu0 0.0
    %3535 = vmatprep.subr.mxu0 0.0
    %3536 = vmatpush1.msra.mxu0 0.0
    %3537 = vmatprep.subr.mxu0 0.0
    %3538 = vmatpush1.msra.mxu0 0.0
    %3539 = vmatprep.subr.mxu0 0.0
    %3540 = vmatpush1.msra.mxu0 0.0
    %3541 = vmatprep.mubr.f32.mxu0 0.0
    %3542 = vmatmul.mubr.f32.gmra.mrb[0].mxu0 %v3475
    %v3543 = vpop.f32.mrb[0].mxu0
    %v3544 = vadd.f32 %v3470, %v3543
    %v3545 = vpop.f32.mrb[0].mxu0
    %v3546 = vadd.f32 %v3471, %v3545
    %3547 = vdwg.mxu0
    %3548 = vmatprep.subr.mxu0 %v3414
    %3549 = vmatpush1.msra.mxu0 %v3413
    %3550 = vmatprep.subr.mxu0 %v3418
    %3551 = vmatpush1.msra.mxu0 %v3417
    %3552 = vmatprep.subr.mxu0 %v3422
    %3553 = vmatpush1.msra.mxu0 %v3421
    %3554 = vmatprep.subr.mxu0 %v3426
    %3555 = vmatpush1.msra.mxu0 %v3425
    %3556 = vmatprep.subr.mxu0 %v3430
    %3557 = vmatpush1.msra.mxu0 %v3429
    %3558 = vmatprep.subr.mxu0 %v3434
    %3559 = vmatpush1.msra.mxu0 %v3433
    %3560 = vmatprep.subr.mxu0 %v3438
    %3561 = vmatpush1.msra.mxu0 %v3437
    %3562 = vmatprep.subr.mxu0 %v3442
    %3563 = vmatpush1.msra.mxu0 %v3441
    %3564 = vmatprep.subr.mxu0 0.0
    %3565 = vmatpush1.msra.mxu0 0.0
    %3566 = vmatprep.subr.mxu0 0.0
    %3567 = vmatpush1.msra.mxu0 0.0
    %3568 = vmatprep.subr.mxu0 0.0
    %3569 = vmatpush1.msra.mxu0 0.0
    %3570 = vmatprep.subr.mxu0 0.0
    %3571 = vmatpush1.msra.mxu0 0.0
    %3572 = vmatprep.subr.mxu0 0.0
    %3573 = vmatpush1.msra.mxu0 0.0
    %3574 = vmatprep.subr.mxu0 0.0
    %3575 = vmatpush1.msra.mxu0 0.0
    %3576 = vmatprep.subr.mxu0 0.0
    %3577 = vmatpush1.msra.mxu0 0.0
    %3578 = vmatprep.subr.mxu0 0.0
    %3579 = vmatpush1.msra.mxu0 0.0
    %3580 = vmatprep.subr.mxu0 0.0
    %3581 = vmatpush1.msra.mxu0 0.0
    %3582 = vmatprep.subr.mxu0 0.0
    %3583 = vmatpush1.msra.mxu0 0.0
    %3584 = vmatprep.subr.mxu0 0.0
    %3585 = vmatpush1.msra.mxu0 0.0
    %3586 = vmatprep.subr.mxu0 0.0
    %3587 = vmatpush1.msra.mxu0 0.0
    %3588 = vmatprep.subr.mxu0 0.0
    %3589 = vmatpush1.msra.mxu0 0.0
    %3590 = vmatprep.subr.mxu0 0.0
    %3591 = vmatpush1.msra.mxu0 0.0
    %3592 = vmatprep.subr.mxu0 0.0
    %3593 = vmatpush1.msra.mxu0 0.0
    %3594 = vmatprep.subr.mxu0 0.0
    %3595 = vmatpush1.msra.mxu0 0.0
    %3596 = vmatprep.subr.mxu0 0.0
    %3597 = vmatpush1.msra.mxu0 0.0
    %3598 = vmatprep.subr.mxu0 0.0
    %3599 = vmatpush1.msra.mxu0 0.0
    %3600 = vmatprep.subr.mxu0 0.0
    %3601 = vmatpush1.msra.mxu0 0.0
    %3602 = vmatprep.subr.mxu0 0.0
    %3603 = vmatpush1.msra.mxu0 0.0
    %3604 = vmatprep.subr.mxu0 0.0
    %3605 = vmatpush1.msra.mxu0 0.0
    %3606 = vmatprep.subr.mxu0 0.0
    %3607 = vmatpush1.msra.mxu0 0.0
    %3608 = vmatprep.subr.mxu0 0.0
    %3609 = vmatpush1.msra.mxu0 0.0
    %3610 = vmatprep.subr.mxu0 0.0
    %3611 = vmatpush1.msra.mxu0 0.0
    %3612 = vmatprep.mubr.f32.mxu0 0.0
    %3613 = vmatmul.mubr.f32.gmra.mrb[0].mxu0 %v3475
    %v3614 = vpop.f32.mrb[0].mxu0
    %v3615 = vadd.f32 %v3472, %v3614
    %v3616 = vpop.f32.mrb[0].mxu0
    %v3617 = vadd.f32 %v3473, %v3616
    %3618 = vdwg.mxu0
    %v3619 = vld [vmem:[%s7] sm:$0xf]
    %v3621 = vlaneseq
    %v3622 = vshrl.u32 %v3621, 7
    %v3623 = vsub.s32 0, %v3622
    %v3624 = vrot.slane %v3619, %v3623
    %v3625 = vlaneseq
    %v3626 = vshrl.u32 %v3625, 7
    %v3627 = vsub.s32 1, %v3626
    %v3628 = vrot.slane %v3619, %v3627
    %v3629 = vlaneseq
    %v3630 = vshrl.u32 %v3629, 7
    %v3631 = vsub.s32 2, %v3630
    %v3632 = vrot.slane %v3619, %v3631
    %v3633 = vlaneseq
    %v3634 = vshrl.u32 %v3633, 7
    %v3635 = vsub.s32 3, %v3634
    %v3636 = vrot.slane %v3619, %v3635
    %v3641 = vadd.f32 %v3544, %v3624
    %v3642 = vadd.f32 %v3546, %v3628
    %v3643 = vadd.f32 %v3615, %v3632
    %v3644 = vadd.f32 %v3617, %v3636
    %v3645 = vmul.f32 %v3641, 0.5
    %v3646 = vtanh.pop %v3645
    %v3647 = vmul.f32 %v3646, 0.5
    %v3648 = vadd.f32 %v3647, 0.5
    %v3649 = vmul.f32 %v3642, 0.5
    %v3650 = vtanh.pop %v3649
    %v3651 = vmul.f32 %v3650, 0.5
    %v3652 = vadd.f32 %v3651, 0.5
    %v3653 = vtanh.pop %v3643
    %v3654 = vmul.f32 %v3644, 0.5
    %v3655 = vtanh.pop %v3654
    %v3656 = vmul.f32 %v3655, 0.5
    %v3657 = vadd.f32 %v3656, 0.5
    %v3658 = vmul.f32 %v3652, %v3145
    %v3659 = vmul.f32 %v3648, %v3653
    %v3660 = vadd.f32 %v3658, %v3659
    %v3661 = vtanh.pop %v3660
    %v3662 = vmul.f32 %v3657, %v3661
    %s3663 = scalar_lea.vmem %s8, 12
    %3664 = vst.msk [vmem:[%s3663] sm:$0x3] %vm573, %v3662
    %s3665 = scalar_lea.vmem %s1, 14
    %v3666 = vld [vmem:[%s3665] sm:$0x3]
    %s3667 = sld [smem:[#allocation3 + $0x7]]
    %p3668 = scmp.ne.s32.totalorder %s3667, 0
    %s3669 = scalar_select %p3668, 1, 0
    %v3670 = vstv %s3669
    %vm3671 = vcmp.eq.s32.totalorder %v3670, 1
    %v3672 = vsel %vm3671, %v3666, %v3662
    %v3673 = vld [vmem:[%s2] sm:$0xf]
    %3675 = vset.pattern.permute.xlu0 0
    %3676 = vperm.xlu0 %3675, %v3672
    %v3677 = vpop.permute.xlu0 %3676
    %v3680 = vlaneseq
    %v3681 = vshrl.u32 %v3680, 7
    %v3682 = vsub.s32 0, %v3681
    %v3683 = vrot.slane %v3673, %v3682
    %v3684 = vlaneseq
    %v3685 = vshrl.u32 %v3684, 7
    %v3686 = vsub.s32 1, %v3685
    %v3687 = vrot.slane %v3673, %v3686
    %v3688 = vlaneseq
    %v3689 = vshrl.u32 %v3688, 7
    %v3690 = vsub.s32 2, %v3689
    %v3691 = vrot.slane %v3673, %v3690
    %v3692 = vlaneseq
    %v3693 = vshrl.u32 %v3692, 7
    %v3694 = vsub.s32 3, %v3693
    %v3695 = vrot.slane %v3673, %v3694
    %v3700 = vmul.f32 %v3677, %v3683
    %v3701 = vmul.f32 %v3677, %v3687
    %v3702 = vmul.f32 %v3677, %v3691
    %v3703 = vmul.f32 %v3677, %v3695
    %v3704 = vld [vmem:[#allocation4] sm:$0xff]
    %v3705 = vld [vmem:[#allocation4 + $0x8] sm:$0xff]
    %v3706 = vld [vmem:[#allocation4 + $0x10] sm:$0xff]
    %v3707 = vld [vmem:[#allocation4 + $0x18] sm:$0xff]
    %v3708 = vld [vmem:[#allocation4 + $0x20] sm:$0xff]
    %v3709 = vld [vmem:[#allocation4 + $0x28] sm:$0xff]
    %v3710 = vld [vmem:[#allocation4 + $0x30] sm:$0xff]
    %v3711 = vld [vmem:[#allocation4 + $0x38] sm:$0xff]
    %v3712 = vld [vmem:[#allocation4 + $0x40] sm:$0xff]
    %v3713 = vld [vmem:[#allocation4 + $0x48] sm:$0xff]
    %v3714 = vld [vmem:[#allocation4 + $0x50] sm:$0xff]
    %v3715 = vld [vmem:[#allocation4 + $0x58] sm:$0xff]
    %v3716 = vld [vmem:[#allocation4 + $0x60] sm:$0xff]
    %v3717 = vld [vmem:[#allocation4 + $0x68] sm:$0xff]
    %v3718 = vld [vmem:[#allocation4 + $0x70] sm:$0xff]
    %v3719 = vld [vmem:[#allocation4 + $0x78] sm:$0xff]
    %v3720 = vld [vmem:[#allocation4 + $0x80] sm:$0xff]
    %v3721 = vld [vmem:[#allocation4 + $0x88] sm:$0xff]
    %v3722 = vld [vmem:[#allocation4 + $0x90] sm:$0xff]
    %v3723 = vld [vmem:[#allocation4 + $0x98] sm:$0xff]
    %v3724 = vld [vmem:[#allocation4 + $0xa0] sm:$0xff]
    %v3725 = vld [vmem:[#allocation4 + $0xa8] sm:$0xff]
    %v3726 = vld [vmem:[#allocation4 + $0xb0] sm:$0xff]
    %v3727 = vld [vmem:[#allocation4 + $0xb8] sm:$0xff]
    %v3728 = vld [vmem:[#allocation4 + $0xc0] sm:$0xff]
    %v3729 = vld [vmem:[#allocation4 + $0xc8] sm:$0xff]
    %v3730 = vld [vmem:[#allocation4 + $0xd0] sm:$0xff]
    %v3731 = vld [vmem:[#allocation4 + $0xd8] sm:$0xff]
    %v3732 = vld [vmem:[#allocation4 + $0xe0] sm:$0xff]
    %v3733 = vld [vmem:[#allocation4 + $0xe8] sm:$0xff]
    %v3734 = vld [vmem:[#allocation4 + $0xf0] sm:$0xff]
    %v3735 = vld [vmem:[#allocation4 + $0xf8] sm:$0xff]
    %3736 = vmatprep.subr.mxu0 %v3705
    %3737 = vmatpush1.msra.mxu0 %v3704
    %3738 = vmatprep.subr.mxu0 %v3709
    %3739 = vmatpush1.msra.mxu0 %v3708
    %3740 = vmatprep.subr.mxu0 %v3713
    %3741 = vmatpush1.msra.mxu0 %v3712
    %3742 = vmatprep.subr.mxu0 %v3717
    %3743 = vmatpush1.msra.mxu0 %v3716
    %3744 = vmatprep.subr.mxu0 %v3721
    %3745 = vmatpush1.msra.mxu0 %v3720
    %3746 = vmatprep.subr.mxu0 %v3725
    %3747 = vmatpush1.msra.mxu0 %v3724
    %3748 = vmatprep.subr.mxu0 %v3729
    %3749 = vmatpush1.msra.mxu0 %v3728
    %3750 = vmatprep.subr.mxu0 %v3733
    %3751 = vmatpush1.msra.mxu0 %v3732
    %3752 = vmatprep.subr.mxu0 0.0
    %3753 = vmatpush1.msra.mxu0 0.0
    %3754 = vmatprep.subr.mxu0 0.0
    %3755 = vmatpush1.msra.mxu0 0.0
    %3756 = vmatprep.subr.mxu0 0.0
    %3757 = vmatpush1.msra.mxu0 0.0
    %3758 = vmatprep.subr.mxu0 0.0
    %3759 = vmatpush1.msra.mxu0 0.0
    %3760 = vmatprep.subr.mxu0 0.0
    %3761 = vmatpush1.msra.mxu0 0.0
    %3762 = vmatprep.subr.mxu0 0.0
    %3763 = vmatpush1.msra.mxu0 0.0
    %3764 = vmatprep.subr.mxu0 0.0
    %3765 = vmatpush1.msra.mxu0 0.0
    %3766 = vmatprep.subr.mxu0 0.0
    %3767 = vmatpush1.msra.mxu0 0.0
    %3768 = vmatprep.subr.mxu0 0.0
    %3769 = vmatpush1.msra.mxu0 0.0
    %3770 = vmatprep.subr.mxu0 0.0
    %3771 = vmatpush1.msra.mxu0 0.0
    %3772 = vmatprep.subr.mxu0 0.0
    %3773 = vmatpush1.msra.mxu0 0.0
    %3774 = vmatprep.subr.mxu0 0.0
    %3775 = vmatpush1.msra.mxu0 0.0
    %3776 = vmatprep.subr.mxu0 0.0
    %3777 = vmatpush1.msra.mxu0 0.0
    %3778 = vmatprep.subr.mxu0 0.0
    %3779 = vmatpush1.msra.mxu0 0.0
    %3780 = vmatprep.subr.mxu0 0.0
    %3781 = vmatpush1.msra.mxu0 0.0
    %3782 = vmatprep.subr.mxu0 0.0
    %3783 = vmatpush1.msra.mxu0 0.0
    %3784 = vmatprep.subr.mxu0 0.0
    %3785 = vmatpush1.msra.mxu0 0.0
    %3786 = vmatprep.subr.mxu0 0.0
    %3787 = vmatpush1.msra.mxu0 0.0
    %3788 = vmatprep.subr.mxu0 0.0
    %3789 = vmatpush1.msra.mxu0 0.0
    %3790 = vmatprep.subr.mxu0 0.0
    %3791 = vmatpush1.msra.mxu0 0.0
    %3792 = vmatprep.subr.mxu0 0.0
    %3793 = vmatpush1.msra.mxu0 0.0
    %3794 = vmatprep.subr.mxu0 0.0
    %3795 = vmatpush1.msra.mxu0 0.0
    %3796 = vmatprep.subr.mxu0 0.0
    %3797 = vmatpush1.msra.mxu0 0.0
    %3798 = vmatprep.subr.mxu0 0.0
    %3799 = vmatpush1.msra.mxu0 0.0
    %3800 = vmatprep.mubr.f32.mxu0 0.0
    %3801 = vmatmul.mubr.f32.gmra.mrb[0].mxu0 %v3475
    %v3802 = vpop.f32.mrb[0].mxu0
    %v3803 = vadd.f32 0.0, %v3802
    %v3804 = vpop.f32.mrb[0].mxu0
    %v3805 = vadd.f32 0.0, %v3804
    %3806 = vdwg.mxu0
    %3807 = vmatprep.subr.mxu0 %v3707
    %3808 = vmatpush1.msra.mxu0 %v3706
    %3809 = vmatprep.subr.mxu0 %v3711
    %3810 = vmatpush1.msra.mxu0 %v3710
    %3811 = vmatprep.subr.mxu0 %v3715
    %3812 = vmatpush1.msra.mxu0 %v3714
    %3813 = vmatprep.subr.mxu0 %v3719
    %3814 = vmatpush1.msra.mxu0 %v3718
    %3815 = vmatprep.subr.mxu0 %v3723
    %3816 = vmatpush1.msra.mxu0 %v3722
    %3817 = vmatprep.subr.mxu0 %v3727
    %3818 = vmatpush1.msra.mxu0 %v3726
    %3819 = vmatprep.subr.mxu0 %v3731
    %3820 = vmatpush1.msra.mxu0 %v3730
    %3821 = vmatprep.subr.mxu0 %v3735
    %3822 = vmatpush1.msra.mxu0 %v3734
    %3823 = vmatprep.subr.mxu0 0.0
    %3824 = vmatpush1.msra.mxu0 0.0
    %3825 = vmatprep.subr.mxu0 0.0
    %3826 = vmatpush1.msra.mxu0 0.0
    %3827 = vmatprep.subr.mxu0 0.0
    %3828 = vmatpush1.msra.mxu0 0.0
    %3829 = vmatprep.subr.mxu0 0.0
    %3830 = vmatpush1.msra.mxu0 0.0
    %3831 = vmatprep.subr.mxu0 0.0
    %3832 = vmatpush1.msra.mxu0 0.0
    %3833 = vmatprep.subr.mxu0 0.0
    %3834 = vmatpush1.msra.mxu0 0.0
    %3835 = vmatprep.subr.mxu0 0.0
    %3836 = vmatpush1.msra.mxu0 0.0
    %3837 = vmatprep.subr.mxu0 0.0
    %3838 = vmatpush1.msra.mxu0 0.0
    %3839 = vmatprep.subr.mxu0 0.0
    %3840 = vmatpush1.msra.mxu0 0.0
    %3841 = vmatprep.subr.mxu0 0.0
    %3842 = vmatpush1.msra.mxu0 0.0
    %3843 = vmatprep.subr.mxu0 0.0
    %3844 = vmatpush1.msra.mxu0 0.0
    %3845 = vmatprep.subr.mxu0 0.0
    %3846 = vmatpush1.msra.mxu0 0.0
    %3847 = vmatprep.subr.mxu0 0.0
    %3848 = vmatpush1.msra.mxu0 0.0
    %3849 = vmatprep.subr.mxu0 0.0
    %3850 = vmatpush1.msra.mxu0 0.0
    %3851 = vmatprep.subr.mxu0 0.0
    %3852 = vmatpush1.msra.mxu0 0.0
    %3853 = vmatprep.subr.mxu0 0.0
    %3854 = vmatpush1.msra.mxu0 0.0
    %3855 = vmatprep.subr.mxu0 0.0
    %3856 = vmatpush1.msra.mxu0 0.0
    %3857 = vmatprep.subr.mxu0 0.0
    %3858 = vmatpush1.msra.mxu0 0.0
    %3859 = vmatprep.subr.mxu0 0.0
    %3860 = vmatpush1.msra.mxu0 0.0
    %3861 = vmatprep.subr.mxu0 0.0
    %3862 = vmatpush1.msra.mxu0 0.0
    %3863 = vmatprep.subr.mxu0 0.0
    %3864 = vmatpush1.msra.mxu0 0.0
    %3865 = vmatprep.subr.mxu0 0.0
    %3866 = vmatpush1.msra.mxu0 0.0
    %3867 = vmatprep.subr.mxu0 0.0
    %3868 = vmatpush1.msra.mxu0 0.0
    %3869 = vmatprep.subr.mxu0 0.0
    %3870 = vmatpush1.msra.mxu0 0.0
    %3871 = vmatprep.mubr.f32.mxu0 0.0
    %3872 = vmatmul.mubr.f32.gmra.mrb[0].mxu0 %v3475
    %v3873 = vpop.f32.mrb[0].mxu0
    %v3874 = vadd.f32 0.0, %v3873
    %v3875 = vpop.f32.mrb[0].mxu0
    %v3876 = vadd.f32 0.0, %v3875
    %3877 = vdwg.mxu0
    %v3878 = vadd.f32 %v3700, %v3803
    %v3879 = vadd.f32 %v3701, %v3805
    %v3880 = vadd.f32 %v3702, %v3874
    %v3881 = vadd.f32 %v3703, %v3876
    %v3882 = vld [vmem:[%s4] sm:$0xf]
    %v3884 = vlaneseq
    %v3885 = vshrl.u32 %v3884, 7
    %v3886 = vsub.s32 0, %v3885
    %v3887 = vrot.slane %v3882, %v3886
    %v3888 = vlaneseq
    %v3889 = vshrl.u32 %v3888, 7
    %v3890 = vsub.s32 1, %v3889
    %v3891 = vrot.slane %v3882, %v3890
    %v3892 = vlaneseq
    %v3893 = vshrl.u32 %v3892, 7
    %v3894 = vsub.s32 2, %v3893
    %v3895 = vrot.slane %v3882, %v3894
    %v3896 = vlaneseq
    %v3897 = vshrl.u32 %v3896, 7
    %v3898 = vsub.s32 3, %v3897
    %v3899 = vrot.slane %v3882, %v3898
    %v3904 = vadd.f32 %v3878, %v3887
    %v3905 = vadd.f32 %v3879, %v3891
    %v3906 = vadd.f32 %v3880, %v3895
    %v3907 = vadd.f32 %v3881, %v3899
    %v3908 = vmul.f32 %v3904, 0.5
    %v3909 = vtanh.pop %v3908
    %v3910 = vmul.f32 %v3909, 0.5
    %v3911 = vadd.f32 %v3910, 0.5
    %v3912 = vmul.f32 %v3905, 0.5
    %v3913 = vtanh.pop %v3912
    %v3914 = vmul.f32 %v3913, 0.5
    %v3915 = vadd.f32 %v3914, 0.5
    %v3916 = vtanh.pop %v3906
    %v3917 = vmul.f32 %v3907, 0.5
    %v3918 = vtanh.pop %v3917
    %v3919 = vmul.f32 %v3918, 0.5
    %v3920 = vadd.f32 %v3919, 0.5
    %v3921 = vmul.f32 %v3915, %v3408
    %v3922 = vmul.f32 %v3911, %v3916
    %v3923 = vadd.f32 %v3921, %v3922
    %v3924 = vtanh.pop %v3923
    %v3925 = vmul.f32 %v3920, %v3924
    %v3926 = vld [vmem:[#allocation7] sm:$0xff]
    %v3927 = vld [vmem:[#allocation7 + $0x8] sm:$0xff]
    %v3928 = vld [vmem:[#allocation7 + $0x10] sm:$0xff]
    %v3929 = vld [vmem:[#allocation7 + $0x18] sm:$0xff]
    %v3930 = vld [vmem:[#allocation7 + $0x20] sm:$0xff]
    %v3931 = vld [vmem:[#allocation7 + $0x28] sm:$0xff]
    %v3932 = vld [vmem:[#allocation7 + $0x30] sm:$0xff]
    %v3933 = vld [vmem:[#allocation7 + $0x38] sm:$0xff]
    %v3934 = vld [vmem:[#allocation7 + $0x40] sm:$0xff]
    %v3935 = vld [vmem:[#allocation7 + $0x48] sm:$0xff]
    %v3936 = vld [vmem:[#allocation7 + $0x50] sm:$0xff]
    %v3937 = vld [vmem:[#allocation7 + $0x58] sm:$0xff]
    %v3938 = vld [vmem:[#allocation7 + $0x60] sm:$0xff]
    %v3939 = vld [vmem:[#allocation7 + $0x68] sm:$0xff]
    %v3940 = vld [vmem:[#allocation7 + $0x70] sm:$0xff]
    %v3941 = vld [vmem:[#allocation7 + $0x78] sm:$0xff]
    %v3942 = vld [vmem:[#allocation7 + $0x80] sm:$0xff]
    %v3943 = vld [vmem:[#allocation7 + $0x88] sm:$0xff]
    %v3944 = vld [vmem:[#allocation7 + $0x90] sm:$0xff]
    %v3945 = vld [vmem:[#allocation7 + $0x98] sm:$0xff]
    %v3946 = vld [vmem:[#allocation7 + $0xa0] sm:$0xff]
    %v3947 = vld [vmem:[#allocation7 + $0xa8] sm:$0xff]
    %v3948 = vld [vmem:[#allocation7 + $0xb0] sm:$0xff]
    %v3949 = vld [vmem:[#allocation7 + $0xb8] sm:$0xff]
    %v3950 = vld [vmem:[#allocation7 + $0xc0] sm:$0xff]
    %v3951 = vld [vmem:[#allocation7 + $0xc8] sm:$0xff]
    %v3952 = vld [vmem:[#allocation7 + $0xd0] sm:$0xff]
    %v3953 = vld [vmem:[#allocation7 + $0xd8] sm:$0xff]
    %v3954 = vld [vmem:[#allocation7 + $0xe0] sm:$0xff]
    %v3955 = vld [vmem:[#allocation7 + $0xe8] sm:$0xff]
    %v3956 = vld [vmem:[#allocation7 + $0xf0] sm:$0xff]
    %v3957 = vld [vmem:[#allocation7 + $0xf8] sm:$0xff]
    %v3958 = vld [vmem:[%s6] sm:$0xf]
    %3960 = vset.pattern.permute.xlu0 0
    %3961 = vperm.xlu0 %3960, %v3662
    %v3962 = vpop.permute.xlu0 %3961
    %v3965 = vlaneseq
    %v3966 = vshrl.u32 %v3965, 7
    %v3967 = vsub.s32 0, %v3966
    %v3968 = vrot.slane %v3958, %v3967
    %v3969 = vlaneseq
    %v3970 = vshrl.u32 %v3969, 7
    %v3971 = vsub.s32 1, %v3970
    %v3972 = vrot.slane %v3958, %v3971
    %v3973 = vlaneseq
    %v3974 = vshrl.u32 %v3973, 7
    %v3975 = vsub.s32 2, %v3974
    %v3976 = vrot.slane %v3958, %v3975
    %v3977 = vlaneseq
    %v3978 = vshrl.u32 %v3977, 7
    %v3979 = vsub.s32 3, %v3978
    %v3980 = vrot.slane %v3958, %v3979
    %v3985 = vmul.f32 %v3962, %v3968
    %v3986 = vmul.f32 %v3962, %v3972
    %v3987 = vmul.f32 %v3962, %v3976
    %v3988 = vmul.f32 %v3962, %v3980
    %v3990 = vsel %vm132, %v3925, 0
    %3992 = vmatprep.subr.mxu0 %v3927
    %3993 = vmatpush1.msra.mxu0 %v3926
    %3994 = vmatprep.subr.mxu0 %v3931
    %3995 = vmatpush1.msra.mxu0 %v3930
    %3996 = vmatprep.subr.mxu0 %v3935
    %3997 = vmatpush1.msra.mxu0 %v3934
    %3998 = vmatprep.subr.mxu0 %v3939
    %3999 = vmatpush1.msra.mxu0 %v3938
    %4000 = vmatprep.subr.mxu0 %v3943
    %4001 = vmatpush1.msra.mxu0 %v3942
    %4002 = vmatprep.subr.mxu0 %v3947
    %4003 = vmatpush1.msra.mxu0 %v3946
    %4004 = vmatprep.subr.mxu0 %v3951
    %4005 = vmatpush1.msra.mxu0 %v3950
    %4006 = vmatprep.subr.mxu0 %v3955
    %4007 = vmatpush1.msra.mxu0 %v3954
    %4008 = vmatprep.subr.mxu0 0.0
    %4009 = vmatpush1.msra.mxu0 0.0
    %4010 = vmatprep.subr.mxu0 0.0
    %4011 = vmatpush1.msra.mxu0 0.0
    %4012 = vmatprep.subr.mxu0 0.0
    %4013 = vmatpush1.msra.mxu0 0.0
    %4014 = vmatprep.subr.mxu0 0.0
    %4015 = vmatpush1.msra.mxu0 0.0
    %4016 = vmatprep.subr.mxu0 0.0
    %4017 = vmatpush1.msra.mxu0 0.0
    %4018 = vmatprep.subr.mxu0 0.0
    %4019 = vmatpush1.msra.mxu0 0.0
    %4020 = vmatprep.subr.mxu0 0.0
    %4021 = vmatpush1.msra.mxu0 0.0
    %4022 = vmatprep.subr.mxu0 0.0
    %4023 = vmatpush1.msra.mxu0 0.0
    %4024 = vmatprep.subr.mxu0 0.0
    %4025 = vmatpush1.msra.mxu0 0.0
    %4026 = vmatprep.subr.mxu0 0.0
    %4027 = vmatpush1.msra.mxu0 0.0
    %4028 = vmatprep.subr.mxu0 0.0
    %4029 = vmatpush1.msra.mxu0 0.0
    %4030 = vmatprep.subr.mxu0 0.0
    %4031 = vmatpush1.msra.mxu0 0.0
    %4032 = vmatprep.subr.mxu0 0.0
    %4033 = vmatpush1.msra.mxu0 0.0
    %4034 = vmatprep.subr.mxu0 0.0
    %4035 = vmatpush1.msra.mxu0 0.0
    %4036 = vmatprep.subr.mxu0 0.0
    %4037 = vmatpush1.msra.mxu0 0.0
    %4038 = vmatprep.subr.mxu0 0.0
    %4039 = vmatpush1.msra.mxu0 0.0
    %4040 = vmatprep.subr.mxu0 0.0
    %4041 = vmatpush1.msra.mxu0 0.0
    %4042 = vmatprep.subr.mxu0 0.0
    %4043 = vmatpush1.msra.mxu0 0.0
    %4044 = vmatprep.subr.mxu0 0.0
    %4045 = vmatpush1.msra.mxu0 0.0
    %4046 = vmatprep.subr.mxu0 0.0
    %4047 = vmatpush1.msra.mxu0 0.0
    %4048 = vmatprep.subr.mxu0 0.0
    %4049 = vmatpush1.msra.mxu0 0.0
    %4050 = vmatprep.subr.mxu0 0.0
    %4051 = vmatpush1.msra.mxu0 0.0
    %4052 = vmatprep.subr.mxu0 0.0
    %4053 = vmatpush1.msra.mxu0 0.0
    %4054 = vmatprep.subr.mxu0 0.0
    %4055 = vmatpush1.msra.mxu0 0.0
    %4056 = vmatprep.mubr.f32.mxu0 0.0
    %4057 = vmatmul.mubr.f32.gmra.mrb[0].mxu0 %v3990
    %v4058 = vpop.f32.mrb[0].mxu0
    %v4059 = vadd.f32 %v3985, %v4058
    %v4060 = vpop.f32.mrb[0].mxu0
    %v4061 = vadd.f32 %v3986, %v4060
    %4062 = vdwg.mxu0
    %4063 = vmatprep.subr.mxu0 %v3929
    %4064 = vmatpush1.msra.mxu0 %v3928
    %4065 = vmatprep.subr.mxu0 %v3933
    %4066 = vmatpush1.msra.mxu0 %v3932
    %4067 = vmatprep.subr.mxu0 %v3937
    %4068 = vmatpush1.msra.mxu0 %v3936
    %4069 = vmatprep.subr.mxu0 %v3941
    %4070 = vmatpush1.msra.mxu0 %v3940
    %4071 = vmatprep.subr.mxu0 %v3945
    %4072 = vmatpush1.msra.mxu0 %v3944
    %4073 = vmatprep.subr.mxu0 %v3949
    %4074 = vmatpush1.msra.mxu0 %v3948
    %4075 = vmatprep.subr.mxu0 %v3953
    %4076 = vmatpush1.msra.mxu0 %v3952
    %4077 = vmatprep.subr.mxu0 %v3957
    %4078 = vmatpush1.msra.mxu0 %v3956
    %4079 = vmatprep.subr.mxu0 0.0
    %4080 = vmatpush1.msra.mxu0 0.0
    %4081 = vmatprep.subr.mxu0 0.0
    %4082 = vmatpush1.msra.mxu0 0.0
    %4083 = vmatprep.subr.mxu0 0.0
    %4084 = vmatpush1.msra.mxu0 0.0
    %4085 = vmatprep.subr.mxu0 0.0
    %4086 = vmatpush1.msra.mxu0 0.0
    %4087 = vmatprep.subr.mxu0 0.0
    %4088 = vmatpush1.msra.mxu0 0.0
    %4089 = vmatprep.subr.mxu0 0.0
    %4090 = vmatpush1.msra.mxu0 0.0
    %4091 = vmatprep.subr.mxu0 0.0
    %4092 = vmatpush1.msra.mxu0 0.0
    %4093 = vmatprep.subr.mxu0 0.0
    %4094 = vmatpush1.msra.mxu0 0.0
    %4095 = vmatprep.subr.mxu0 0.0
    %4096 = vmatpush1.msra.mxu0 0.0
    %4097 = vmatprep.subr.mxu0 0.0
    %4098 = vmatpush1.msra.mxu0 0.0
    %4099 = vmatprep.subr.mxu0 0.0
    %4100 = vmatpush1.msra.mxu0 0.0
    %4101 = vmatprep.subr.mxu0 0.0
    %4102 = vmatpush1.msra.mxu0 0.0
    %4103 = vmatprep.subr.mxu0 0.0
    %4104 = vmatpush1.msra.mxu0 0.0
    %4105 = vmatprep.subr.mxu0 0.0
    %4106 = vmatpush1.msra.mxu0 0.0
    %4107 = vmatprep.subr.mxu0 0.0
    %4108 = vmatpush1.msra.mxu0 0.0
    %4109 = vmatprep.subr.mxu0 0.0
    %4110 = vmatpush1.msra.mxu0 0.0
    %4111 = vmatprep.subr.mxu0 0.0
    %4112 = vmatpush1.msra.mxu0 0.0
    %4113 = vmatprep.subr.mxu0 0.0
    %4114 = vmatpush1.msra.mxu0 0.0
    %4115 = vmatprep.subr.mxu0 0.0
    %4116 = vmatpush1.msra.mxu0 0.0
    %4117 = vmatprep.subr.mxu0 0.0
    %4118 = vmatpush1.msra.mxu0 0.0
    %4119 = vmatprep.subr.mxu0 0.0
    %4120 = vmatpush1.msra.mxu0 0.0
    %4121 = vmatprep.subr.mxu0 0.0
    %4122 = vmatpush1.msra.mxu0 0.0
    %4123 = vmatprep.subr.mxu0 0.0
    %4124 = vmatpush1.msra.mxu0 0.0
    %4125 = vmatprep.subr.mxu0 0.0
    %4126 = vmatpush1.msra.mxu0 0.0
    %4127 = vmatprep.mubr.f32.mxu0 0.0
    %4128 = vmatmul.mubr.f32.gmra.mrb[0].mxu0 %v3990
    %v4129 = vpop.f32.mrb[0].mxu0
    %v4130 = vadd.f32 %v3987, %v4129
    %v4131 = vpop.f32.mrb[0].mxu0
    %v4132 = vadd.f32 %v3988, %v4131
    %4133 = vdwg.mxu0
    %v4134 = vld [vmem:[%s7] sm:$0xf]
    %v4136 = vlaneseq
    %v4137 = vshrl.u32 %v4136, 7
    %v4138 = vsub.s32 0, %v4137
    %v4139 = vrot.slane %v4134, %v4138
    %v4140 = vlaneseq
    %v4141 = vshrl.u32 %v4140, 7
    %v4142 = vsub.s32 1, %v4141
    %v4143 = vrot.slane %v4134, %v4142
    %v4144 = vlaneseq
    %v4145 = vshrl.u32 %v4144, 7
    %v4146 = vsub.s32 2, %v4145
    %v4147 = vrot.slane %v4134, %v4146
    %v4148 = vlaneseq
    %v4149 = vshrl.u32 %v4148, 7
    %v4150 = vsub.s32 3, %v4149
    %v4151 = vrot.slane %v4134, %v4150
    %v4156 = vadd.f32 %v4059, %v4139
    %v4157 = vadd.f32 %v4061, %v4143
    %v4158 = vadd.f32 %v4130, %v4147
    %v4159 = vadd.f32 %v4132, %v4151
    %v4160 = vmul.f32 %v4156, 0.5
    %v4161 = vtanh.pop %v4160
    %v4162 = vmul.f32 %v4161, 0.5
    %v4163 = vadd.f32 %v4162, 0.5
    %v4164 = vmul.f32 %v4157, 0.5
    %v4165 = vtanh.pop %v4164
    %v4166 = vmul.f32 %v4165, 0.5
    %v4167 = vadd.f32 %v4166, 0.5
    %v4168 = vtanh.pop %v4158
    %v4169 = vmul.f32 %v4159, 0.5
    %v4170 = vtanh.pop %v4169
    %v4171 = vmul.f32 %v4170, 0.5
    %v4172 = vadd.f32 %v4171, 0.5
    %v4173 = vmul.f32 %v4167, %v3660
    %v4174 = vmul.f32 %v4163, %v4168
    %v4175 = vadd.f32 %v4173, %v4174
    %v4176 = vtanh.pop %v4175
    %v4177 = vmul.f32 %v4172, %v4176
    %s4178 = scalar_lea.vmem %s8, 14
    %4179 = vst.msk [vmem:[%s4178] sm:$0x3] %vm573, %v4177
    %vm4180 = vcmask 517120
    %4181 = vst.msk [vmem:[#allocation9] sm:$0x3] %vm4180, %v3925
    %4182 = vst.msk [vmem:[#allocation10] sm:$0x3] %vm4180, %v3923
    %4183 = vst.msk [vmem:[%s11] sm:$0x3] %vm573, %v4177
    %4184 = vst.msk [vmem:[%s12] sm:$0x3] %vm573, %v4175
    // Predicated region
    $region38: #{sequence_forward.1} parent=1 // pred_check
      _
    $region39: #{sequence_forward.1} parent=1 // pred_check_branch
      %4186 = sbr.rel (0) target = $region41
    $region40: #{sequence_forward.1} parent=1 // pred_region
      _
    $region41: #{sequence_forward.1} parent=1 // pred_fallthru
      _
    // Predicated region
    $region42: #{sequence_forward.1} parent=1 // pred_check
      _
    $region43: #{sequence_forward.1} parent=1 // pred_check_branch
      %4188 = sbr.rel (0) target = $region45
    $region44: #{sequence_forward.1} parent=1 // pred_region
      %s4190 = ssub.s32 32, 32
      %4191 = vsyncadd [#allocation6], %s4190
      %s4193 = sshll.u32 [#allocation9], 4
      %s4194 = int_to_ptr.vmem [resolvable:$true] %s4193
      %4196 = dma.vmem_to_hbm [thread:$0]  %s4194, 32, %s9, [#allocation6]
    $region45: #{sequence_forward.1} parent=1 // pred_fallthru
      _
    // Predicated region
    $region46: #{sequence_forward.1} parent=1 // pred_check
      _
    $region47: #{sequence_forward.1} parent=1 // pred_check_branch
      %4198 = sbr.rel (0) target = $region49
    $region48: #{sequence_forward.1} parent=1 // pred_region
      %s4200 = ssub.s32 32, 32
      %4201 = vsyncadd [#allocation11], %s4200
      %s4203 = sshll.u32 [#allocation10], 4
      %s4204 = int_to_ptr.vmem [resolvable:$true] %s4203
      %4206 = dma.vmem_to_hbm [thread:$0]  %s4204, 32, %s10, [#allocation11]
    $region49: #{sequence_forward.1} parent=1 // pred_fallthru
      _
    // Predicated region
    $region50: #{sequence_forward.1} parent=1 // pred_check
      _
    $region51: #{sequence_forward.1} parent=1 // pred_check_branch
      %4208 = sbr.rel (0) target = $region53
    $region52: #{sequence_forward.1} parent=1 // pred_region
      _
    $region53: #{sequence_forward.1} parent=1 // pred_fallthru
      _
    // Predicated region
    $region54: #{sequence_forward.1} parent=1 // pred_check
      _
    $region55: #{sequence_forward.1} parent=1 // pred_check_branch
      %4210 = sbr.rel (0) target = $region57
    $region56: #{sequence_forward.1} parent=1 // pred_region
      _
    $region57: #{sequence_forward.1} parent=1 // pred_fallthru
      _
    // Predicated region
    $region58: #{sequence_forward.1} parent=1 // pred_check
      _
    $region59: #{sequence_forward.1} parent=1 // pred_check_branch
      %4212 = sbr.rel (0) target = $region61
    $region60: #{sequence_forward.1} parent=1 // pred_region
      _
    $region61: #{sequence_forward.1} parent=1 // pred_fallthru
      _
    // Predicated region
    $region62: #{sequence_forward.1} parent=1 // pred_check
      _
    $region63: #{sequence_forward.1} parent=1 // pred_check_branch
      %4214 = sbr.rel (0) target = $region65
    $region64: #{sequence_forward.1} parent=1 // pred_region
      %4215 = dma.done [#allocation6], 32
    $region65: #{sequence_forward.1} parent=1 // pred_fallthru
      _
    // Predicated region
    $region66: #{sequence_forward.1} parent=1 // pred_check
      _
    $region67: #{sequence_forward.1} parent=1 // pred_check_branch
      %4217 = sbr.rel (0) target = $region69
    $region68: #{sequence_forward.1} parent=1 // pred_region
      %4218 = dma.done [#allocation11], 32
    $region69: #{sequence_forward.1} parent=1 // pred_fallthru
      _
    // Predicated region
    $region70: #{sequence_forward.1} parent=1 // pred_check
      _
    $region71: #{sequence_forward.1} parent=1 // pred_check_branch
      %4220 = sbr.rel (0) target = $region73
    $region72: #{sequence_forward.1} parent=1 // pred_region
      _
    $region73: #{sequence_forward.1} parent=1 // pred_fallthru
      _
    // Predicated region
    $region74: #{sequence_forward.1} parent=1 // pred_check
      _
    $region75: #{sequence_forward.1} parent=1 // pred_check_branch
      %4222 = sbr.rel (0) target = $region77
    $region76: #{sequence_forward.1} parent=1 // pred_region
      _
    $region77: #{sequence_forward.1} parent=1 // pred_fallthru
      _
    %4223 = vsyncpa [#allocation5], 1
    %4224 = vsyncpa [#allocation8], 1
    %4225 = vsyncpa [#allocation6], 1
    %4226 = vsyncpa [#allocation11], 1

</llo_original>
